<compile_context>
chip_gen: v5e
topology: v5e:2x2
jax: 0.10.0
libtpu: 0.0.40
codegen_flags: <defaults>
</compile_context>

<pallas_src>
from functools import partial

import jax
import jax.numpy as jnp
from jax.experimental import pallas as pl
from jax.experimental.pallas import tpu as pltpu

LN_EPS = 1e-5
INV_SQRT2 = 0.7071067811865476


def _layernorm(v, g, b):
    mu = jnp.mean(v, axis=-1, keepdims=True)
    var = jnp.mean((v - mu) ** 2, axis=-1, keepdims=True)
    return (v - mu) * jax.lax.rsqrt(var + LN_EPS) * g + b


def _gelu_exact(x):
    # PyTorch nn.GELU default (erf-based, not tanh approx)
    return 0.5 * x * (1.0 + jax.lax.erf(x * INV_SQRT2))


def block_kernel(x_ref, g1_ref, b1_ref, wqkv_ref, wproj_ref, bproj_ref,
                 g2_ref, b2_ref, wfc1_ref, bfc1_ref, wfc2_ref, bfc2_ref,
                 o_ref, ocat_ref, *, num_heads):
    Bt, N, C = x_ref.shape
    hd = C // num_heads
    M = Bt * N
    cdt = jnp.bfloat16          # MXU input dtype; accumulation stays f32

    x = x_ref[...].reshape(M, C)                                   # (M, C) f32

    # ---- attention branch -------------------------------------------------
    ln1 = _layernorm(x, g1_ref[...], b1_ref[...])                  # f32
    # single wide QKV matmul (scale already folded into the q-columns of wqkv)
    qkv = jnp.dot(ln1.astype(cdt), wqkv_ref[...],
                  preferred_element_type=jnp.float32)              # (M, 3C) f32

    # TODO(synk): for nh >= 8 or large N, convert this static loop to a
    # lax.fori_loop to bound the live range of the per-head (Bt, N, N) tensors.
    for h in range(num_heads):                  # static unroll (small head count)
        qh = qkv[:, h * hd:(h + 1) * hd].reshape(Bt, N, hd).astype(cdt)
        kh = qkv[:, C + h * hd:C + (h + 1) * hd].reshape(Bt, N, hd).astype(cdt)
        vh = qkv[:, 2 * C + h * hd:2 * C + (h + 1) * hd].reshape(Bt, N, hd).astype(cdt)

        s = jnp.einsum("bnd,bmd->bnm", qh, kh,
                       preferred_element_type=jnp.float32)         # (Bt, N, N)
        s = s - jnp.max(s, axis=-1, keepdims=True)
        p = jnp.exp(s)
        l = jnp.sum(p, axis=-1, keepdims=True)                     # (Bt, N, 1)
        o = jnp.einsum("bnm,bmd->bnd", p.astype(cdt), vh,
                       preferred_element_type=jnp.float32)         # (Bt, N, hd)
        # deferred softmax normalization on the small (N, hd) output, EUP reciprocal
        o = o * pl.reciprocal(l, approx=True)
        # lane-packed head concat into VMEM scratch (static-slice masked stores)
        ocat_ref[:, h * hd:(h + 1) * hd] = o.reshape(M, hd)

    # single output projection with full K=C contraction depth; bias folded in
    attn = jnp.dot(ocat_ref[...].astype(cdt), wproj_ref[...],
                   preferred_element_type=jnp.float32) + bproj_ref[...]

    x1 = x + attn                               # residual 1 (f32)

    # ---- MLP branch ---------------------------------------------------------
    ln2 = _layernorm(x1, g2_ref[...], b2_ref[...])
    h1 = jnp.dot(ln2.astype(cdt), wfc1_ref[...],
                 preferred_element_type=jnp.float32) + bfc1_ref[...]
    h1 = _gelu_exact(h1)                        # f32 erf-GELU (matches nn.GELU)
    h2 = jnp.dot(h1.astype(cdt), wfc2_ref[...],
                 preferred_element_type=jnp.float32) + bfc2_ref[...]

    o_ref[...] = (x1 + h2).reshape(Bt, N, C).astype(o_ref.dtype)   # residual 2


def _vmem_limit_bytes():
    """Generation-aware VMEM budget: ~80% of physical per-core VMEM."""
    try:
        cap = pltpu.get_tpu_info().vmem_capacity_bytes
    except Exception:
        cap = 64 * 1024 * 1024   # conservative default (v7x-sized)
    return int(cap * 0.80)


def _pick_bt(B, N, C, H, nh, vmem_bytes):
    """Pick batch rows per grid step from a VMEM-derived row budget.

    Live f32 intermediates scale ~ M*(10*C + H + 2*nh*N) bytes*4 plus the bf16
    weights (worst case double-buffered) and double-buffered f32 I/O tiles.
    Prefer the largest divisor of B that fits; only keep >= 2 grid steps
    (megacore sharding on v7x) when each step still has M >= 512 rows.
    """
    weight_bytes = 2 * (3 * C * C + C * C + 2 * C * H)          # bf16 weights
    fixed = 2 * weight_bytes + (4 << 20)                        # 2x buffering + slack
    per_row = 4 * (10 * C + H + 2 * nh * N) + 4 * 4 * C         # f32 live + I/O bufs
    avail = max(vmem_bytes - fixed, per_row * N)                # always allow Bt = 1
    max_rows = max(avail // per_row, N)

    divisors = [bt for bt in range(1, B + 1) if B % bt == 0]
    feasible = [bt for bt in divisors if bt * N <= max_rows] or [1]
    best = max(feasible)
    # Prefer >= 2 grid steps only when each step still feeds the MXU M dim well.
    for bt in sorted(feasible, reverse=True):
        if B // bt >= 2 and bt * N >= 512:
            return bt
    return best


def vit_block(x, params, num_heads):
    B, N, C = x.shape
    H = params["w_fc1"].shape[1]
    nh = num_heads
    hd = C // nh
    scale = hd ** -0.5
    wdt = jnp.bfloat16

    # Fold attention scale into the q-columns of the qkv weight, then cast all
    # weights to bf16 for the MXU (kernel accumulates in f32).
    w_qkv = params["w_qkv"].astype(jnp.float32)
    w_qkv = w_qkv.at[:, :C].multiply(scale).astype(wdt)
    w_proj = params["w_proj"].astype(wdt)
    w_fc1 = params["w_fc1"].astype(wdt)
    w_fc2 = params["w_fc2"].astype(wdt)

    vmem_limit = _vmem_limit_bytes()
    Bt = _pick_bt(B, N, C, H, nh, vmem_limit)
    M = Bt * N

    args = (x, params["g1"], params["b1"], w_qkv, w_proj, params["b_proj"],
            params["g2"], params["b2"], w_fc1, params["b_fc1"], w_fc2,
            params["b_fc2"])

    def build(weight_mode):
        def wspec(shape):
            # Constant index_map -> never re-DMA'd; single-buffer when supported.
            if weight_mode is None:
                return pl.BlockSpec(shape, lambda b: (0,) * len(shape))
            return pl.BlockSpec(shape, lambda b: (0,) * len(shape),
                                pipeline_mode=weight_mode)

        kernel = partial(block_kernel, num_heads=nh)
        return pl.pallas_call(
            kernel,
            out_shape=jax.ShapeDtypeStruct((B, N, C), x.dtype),
            grid=(B // Bt,),
            in_specs=[
                pl.BlockSpec((Bt, N, C), lambda b: (b, 0, 0)),   # x tile
                wspec((1, C)), wspec((1, C)),                    # norm1 gamma/beta (f32)
                wspec((C, 3 * C)),                               # qkv weight (bf16, q pre-scaled)
                wspec((C, C)), wspec((1, C)),                    # proj weight / bias
                wspec((1, C)), wspec((1, C)),                    # norm2 gamma/beta (f32)
                wspec((C, H)), wspec((1, H)),                    # fc1 weight / bias
                wspec((H, C)), wspec((1, C)),                    # fc2 weight / bias
            ],
            out_specs=pl.BlockSpec((Bt, N, C), lambda b: (b, 0, 0)),
            scratch_shapes=[pltpu.VMEM((M, C), jnp.float32)],    # lane-packed head concat
            compiler_params=pltpu.CompilerParams(
                dimension_semantics=("parallel",),
                vmem_limit_bytes=vmem_limit,
            ),
        )

    buffered = getattr(pl, "Buffered", None)
    weight_mode = buffered(1) if buffered is not None else None
    try:
        return build(weight_mode)(*args)
    except Exception:
        # Fallback: default (double-buffered) weight pipelining.
        return build(None)(*args)


def vit_block_ref(x, params, num_heads):
    """Pure-JAX f32 reference mirroring the PyTorch Block forward (eval mode)."""
    B, N, C = x.shape
    hd = C // num_heads
    scale = hd ** -0.5

    ln1 = _layernorm(x, params["g1"][0], params["b1"][0])
    qkv = ln1 @ params["w_qkv"]                                   # (B, N, 3C)
    qkv = qkv.reshape(B, N, 3, num_heads, hd).transpose(2, 0, 3, 1, 4)
    q, k, v = qkv[0], qkv[1], qkv[2]                              # (B, h, N, hd)
    s = jnp.einsum("bhnd,bhmd->bhnm", q, k) * scale
    p = jax.nn.softmax(s, axis=-1)
    o = jnp.einsum("bhnm,bhmd->bhnd", p, v)
    o = o.transpose(0, 2, 1, 3).reshape(B, N, C)
    attn = o @ params["w_proj"] + params["b_proj"][0]
    x1 = x + attn

    ln2 = _layernorm(x1, params["g2"][0], params["b2"][0])
    h1 = _gelu_exact(ln2 @ params["w_fc1"] + params["b_fc1"][0])
    h2 = h1 @ params["w_fc2"] + params["b_fc2"][0]
    return x1 + h2


if __name__ == "__main__":
    # Small but TPU-friendly ViT-block config: lane-dense channels (C=128),
    # N multiple of 8.  B=2 batch, 4 heads (hd=32), mlp_ratio=4 (H=512).
    B, N, C = 2, 16, 128
    num_heads = 4
    H = int(C * 4.0)

    key = jax.random.PRNGKey(0)
    ks = jax.random.split(key, 11)

    params = {
        "g1": 1.0 + 0.02 * jax.random.normal(ks[0], (1, C), jnp.float32),
        "b1": 0.02 * jax.random.normal(ks[1], (1, C), jnp.float32),
        "w_qkv": 0.02 * jax.random.normal(ks[2], (C, 3 * C), jnp.float32),
        "w_proj": 0.02 * jax.random.normal(ks[3], (C, C), jnp.float32),
        "b_proj": 0.02 * jax.random.normal(ks[4], (1, C), jnp.float32),
        "g2": 1.0 + 0.02 * jax.random.normal(ks[5], (1, C), jnp.float32),
        "b2": 0.02 * jax.random.normal(ks[6], (1, C), jnp.float32),
        "w_fc1": 0.02 * jax.random.normal(ks[7], (C, H), jnp.float32),
        "b_fc1": 0.02 * jax.random.normal(ks[8], (1, H), jnp.float32),
        "w_fc2": 0.02 * jax.random.normal(ks[9], (H, C), jnp.float32),
        "b_fc2": 0.02 * jax.random.normal(ks[10], (1, C), jnp.float32),
    }
    x = jax.random.normal(jax.random.PRNGKey(42), (B, N, C), jnp.float32)

    out = jax.block_until_ready(vit_block(x, params, num_heads))
    ref = jax.block_until_ready(vit_block_ref(x, params, num_heads))

    assert out.shape == (B, N, C)
    # bf16 MXU feeding + approx reciprocal -> loosened tolerance vs. f32 reference.
    assert jnp.allclose(out, ref, rtol=3e-2, atol=3e-2), (
        f"max abs diff = {jnp.max(jnp.abs(out - ref))}")
    print("KERNEL_OK")
</pallas_src>

<mosaic_0001>
module attributes {stable_mosaic.version = 11 : i64} {
  func.func @block_kernel(%arg0: i32, %arg1: memref<2x16x128xf32, #tpu.memory_space<vmem>>, %arg2: memref<1x128xf32, #tpu.memory_space<vmem>>, %arg3: memref<1x128xf32, #tpu.memory_space<vmem>>, %arg4: memref<128x384xbf16, #tpu.memory_space<vmem>>, %arg5: memref<128x128xbf16, #tpu.memory_space<vmem>>, %arg6: memref<1x128xf32, #tpu.memory_space<vmem>>, %arg7: memref<1x128xf32, #tpu.memory_space<vmem>>, %arg8: memref<1x128xf32, #tpu.memory_space<vmem>>, %arg9: memref<128x512xbf16, #tpu.memory_space<vmem>>, %arg10: memref<1x512xf32, #tpu.memory_space<vmem>>, %arg11: memref<512x128xbf16, #tpu.memory_space<vmem>>, %arg12: memref<1x128xf32, #tpu.memory_space<vmem>>, %arg13: memref<2x16x128xf32, #tpu.memory_space<vmem>>, %arg14: memref<32x128xf32, #tpu.memory_space<vmem>>) attributes {dimension_semantics = [#tpu.dimension_semantics<parallel>], iteration_bounds = array<i64: 1>, scalar_prefetch = 0 : i64, scratch_operands = 1 : i64, tpu.core_type = #tpu.core_type<tc>, window_params = [{transform_indices = @transform_0, window_bounds = array<i64: 2, 16, 128>}, {pipeline_mode = #tpu.pipeline_mode<synchronous>, transform_indices = @transform_1, window_bounds = array<i64: 1, 128>}, {pipeline_mode = #tpu.pipeline_mode<synchronous>, transform_indices = @transform_2, window_bounds = array<i64: 1, 128>}, {pipeline_mode = #tpu.pipeline_mode<synchronous>, transform_indices = @transform_3, window_bounds = array<i64: 128, 384>}, {pipeline_mode = #tpu.pipeline_mode<synchronous>, transform_indices = @transform_4, window_bounds = array<i64: 128, 128>}, {pipeline_mode = #tpu.pipeline_mode<synchronous>, transform_indices = @transform_5, window_bounds = array<i64: 1, 128>}, {pipeline_mode = #tpu.pipeline_mode<synchronous>, transform_indices = @transform_6, window_bounds = array<i64: 1, 128>}, {pipeline_mode = #tpu.pipeline_mode<synchronous>, transform_indices = @transform_7, window_bounds = array<i64: 1, 128>}, {pipeline_mode = #tpu.pipeline_mode<synchronous>, transform_indices = @transform_8, window_bounds = array<i64: 128, 512>}, {pipeline_mode = #tpu.pipeline_mode<synchronous>, transform_indices = @transform_9, window_bounds = array<i64: 1, 512>}, {pipeline_mode = #tpu.pipeline_mode<synchronous>, transform_indices = @transform_10, window_bounds = array<i64: 512, 128>}, {pipeline_mode = #tpu.pipeline_mode<synchronous>, transform_indices = @transform_11, window_bounds = array<i64: 1, 128>}, {transform_indices = @transform_12, window_bounds = array<i64: 2, 16, 128>}]} {
    %c0 = arith.constant 0 : index
    %c0_0 = arith.constant 0 : index
    %c0_1 = arith.constant 0 : index
    %0 = vector.load %arg1[%c0, %c0_0, %c0_1] : memref<2x16x128xf32, #tpu.memory_space<vmem>>, vector<2x16x128xf32>
    %1 = vector.shape_cast %0 : vector<2x16x128xf32> to vector<32x128xf32>
    %c0_2 = arith.constant 0 : index
    %c0_3 = arith.constant 0 : index
    %2 = vector.load %arg2[%c0_2, %c0_3] : memref<1x128xf32, #tpu.memory_space<vmem>>, vector<1x128xf32>
    %c0_4 = arith.constant 0 : index
    %c0_5 = arith.constant 0 : index
    %3 = vector.load %arg3[%c0_4, %c0_5] : memref<1x128xf32, #tpu.memory_space<vmem>>, vector<1x128xf32>
    %cst = arith.constant dense<0.000000e+00> : vector<32xf32>
    %4 = vector.multi_reduction <add>, %1, %cst [1] : vector<32x128xf32> to vector<32xf32>
    %5 = vector.shape_cast %4 : vector<32xf32> to vector<32x1xf32>
    %cst_6 = arith.constant 1.280000e+02 : f32
    %6 = vector.broadcast %cst_6 : f32 to vector<32x1xf32>
    %7 = arith.divf %5, %6 : vector<32x1xf32>
    %8 = vector.broadcast %7 : vector<32x1xf32> to vector<32x128xf32>
    %9 = arith.subf %1, %8 : vector<32x128xf32>
    %10 = arith.mulf %9, %9 : vector<32x128xf32>
    %cst_7 = arith.constant dense<0.000000e+00> : vector<32xf32>
    %11 = vector.multi_reduction <add>, %10, %cst_7 [1] : vector<32x128xf32> to vector<32xf32>
    %12 = vector.shape_cast %11 : vector<32xf32> to vector<32x1xf32>
    %cst_8 = arith.constant 1.280000e+02 : f32
    %13 = vector.broadcast %cst_8 : f32 to vector<32x1xf32>
    %14 = arith.divf %12, %13 : vector<32x1xf32>
    %15 = vector.broadcast %7 : vector<32x1xf32> to vector<32x128xf32>
    %16 = arith.subf %1, %15 : vector<32x128xf32>
    %cst_9 = arith.constant 9.99999974E-6 : f32
    %17 = vector.broadcast %cst_9 : f32 to vector<32x1xf32>
    %18 = arith.addf %14, %17 : vector<32x1xf32>
    %19 = math.rsqrt %18 : vector<32x1xf32>
    %20 = vector.broadcast %19 : vector<32x1xf32> to vector<32x128xf32>
    %21 = arith.mulf %16, %20 : vector<32x128xf32>
    %22 = vector.broadcast %2 : vector<1x128xf32> to vector<32x128xf32>
    %23 = arith.mulf %21, %22 : vector<32x128xf32>
    %24 = vector.broadcast %3 : vector<1x128xf32> to vector<32x128xf32>
    %25 = arith.addf %23, %24 : vector<32x128xf32>
    %26 = arith.truncf %25 : vector<32x128xf32> to vector<32x128xbf16>
    %c0_10 = arith.constant 0 : index
    %c0_11 = arith.constant 0 : index
    %27 = vector.load %arg4[%c0_10, %c0_11] : memref<128x384xbf16, #tpu.memory_space<vmem>>, vector<128x384xbf16>
    %cst_12 = arith.constant dense<0.000000e+00> : vector<32x384xf32>
    %28 = tpu.matmul %26, %27, %cst_12 {dimension_numbers = #tpu.dot_dimension_numbers<[1], [0], [0], [1], [0, 0, 1, 1], [], []>} : vector<32x128xbf16>, vector<128x384xbf16>, vector<32x384xf32> -> vector<32x384xf32>
    %29 = vector.extract_strided_slice %28 {offsets = [0, 0], sizes = [32, 32], strides = [1, 1]} : vector<32x384xf32> to vector<32x32xf32>
    %30 = vector.shape_cast %29 : vector<32x32xf32> to vector<2x16x32xf32>
    %31 = arith.truncf %30 : vector<2x16x32xf32> to vector<2x16x32xbf16>
    %32 = vector.extract_strided_slice %28 {offsets = [0, 128], sizes = [32, 32], strides = [1, 1]} : vector<32x384xf32> to vector<32x32xf32>
    %33 = vector.shape_cast %32 : vector<32x32xf32> to vector<2x16x32xf32>
    %34 = arith.truncf %33 : vector<2x16x32xf32> to vector<2x16x32xbf16>
    %35 = vector.extract_strided_slice %28 {offsets = [0, 256], sizes = [32, 32], strides = [1, 1]} : vector<32x384xf32> to vector<32x32xf32>
    %36 = vector.shape_cast %35 : vector<32x32xf32> to vector<2x16x32xf32>
    %37 = arith.truncf %36 : vector<2x16x32xf32> to vector<2x16x32xbf16>
    "tpu.trace_start"() <{level = 10 : i32, message = "bnd,bmd->bnm"}> : () -> ()
    %cst_13 = arith.constant dense<0.000000e+00> : vector<2x16x16xf32>
    %38 = tpu.matmul %31, %34, %cst_13 {dimension_numbers = #tpu.dot_dimension_numbers<[2], [2], [1], [1], [0, 0, 0, 1, 1, 1], [0], [0]>} : vector<2x16x32xbf16>, vector<2x16x32xbf16>, vector<2x16x16xf32> -> vector<2x16x16xf32>
    "tpu.trace_stop"() : () -> ()
    %cst_14 = arith.constant dense<0xFF800000> : vector<2x16xf32>
    %39 = vector.multi_reduction <maximumf>, %38, %cst_14 [2] : vector<2x16x16xf32> to vector<2x16xf32>
    %40 = vector.shape_cast %39 : vector<2x16xf32> to vector<2x16x1xf32>
    %41 = vector.broadcast %40 : vector<2x16x1xf32> to vector<2x16x16xf32>
    %42 = arith.subf %38, %41 : vector<2x16x16xf32>
    %43 = math.exp %42 : vector<2x16x16xf32>
    %cst_15 = arith.constant dense<0.000000e+00> : vector<2x16xf32>
    %44 = vector.multi_reduction <add>, %43, %cst_15 [2] : vector<2x16x16xf32> to vector<2x16xf32>
    %45 = vector.shape_cast %44 : vector<2x16xf32> to vector<2x16x1xf32>
    %46 = arith.truncf %43 : vector<2x16x16xf32> to vector<2x16x16xbf16>
    "tpu.trace_start"() <{level = 10 : i32, message = "bnm,bmd->bnd"}> : () -> ()
    %cst_16 = arith.constant dense<0.000000e+00> : vector<2x16x32xf32>
    %47 = tpu.matmul %46, %37, %cst_16 {dimension_numbers = #tpu.dot_dimension_numbers<[2], [1], [1], [2], [0, 0, 0, 1, 1, 2], [0], [0]>} : vector<2x16x16xbf16>, vector<2x16x32xbf16>, vector<2x16x32xf32> -> vector<2x16x32xf32>
    "tpu.trace_stop"() : () -> ()
    %48 = tpu.reciprocal %45 {approx = true} : vector<2x16x1xf32> -> vector<2x16x1xf32>
    %49 = vector.broadcast %48 : vector<2x16x1xf32> to vector<2x16x32xf32>
    %50 = arith.mulf %47, %49 : vector<2x16x32xf32>
    %51 = vector.shape_cast %50 : vector<2x16x32xf32> to vector<32x32xf32>
    %c0_17 = arith.constant 0 : index
    %c0_18 = arith.constant 0 : index
    %52 = vector.load %arg14[%c0_17, %c0_18] : memref<32x128xf32, #tpu.memory_space<vmem>>, vector<32x32xf32>
    tpu.vector_store %arg14[%c0_17, %c0_18], %51 {strides = array<i32>} : memref<32x128xf32, #tpu.memory_space<vmem>>, vector<32x32xf32>,
    %53 = vector.extract_strided_slice %28 {offsets = [0, 32], sizes = [32, 32], strides = [1, 1]} : vector<32x384xf32> to vector<32x32xf32>
    %54 = vector.shape_cast %53 : vector<32x32xf32> to vector<2x16x32xf32>
    %55 = arith.truncf %54 : vector<2x16x32xf32> to vector<2x16x32xbf16>
    %56 = vector.extract_strided_slice %28 {offsets = [0, 160], sizes = [32, 32], strides = [1, 1]} : vector<32x384xf32> to vector<32x32xf32>
    %57 = vector.shape_cast %56 : vector<32x32xf32> to vector<2x16x32xf32>
    %58 = arith.truncf %57 : vector<2x16x32xf32> to vector<2x16x32xbf16>
    %59 = vector.extract_strided_slice %28 {offsets = [0, 288], sizes = [32, 32], strides = [1, 1]} : vector<32x384xf32> to vector<32x32xf32>
    %60 = vector.shape_cast %59 : vector<32x32xf32> to vector<2x16x32xf32>
    %61 = arith.truncf %60 : vector<2x16x32xf32> to vector<2x16x32xbf16>
    "tpu.trace_start"() <{level = 10 : i32, message = "bnd,bmd->bnm"}> : () -> ()
    %cst_19 = arith.constant dense<0.000000e+00> : vector<2x16x16xf32>
    %62 = tpu.matmul %55, %58, %cst_19 {dimension_numbers = #tpu.dot_dimension_numbers<[2], [2], [1], [1], [0, 0, 0, 1, 1, 1], [0], [0]>} : vector<2x16x32xbf16>, vector<2x16x32xbf16>, vector<2x16x16xf32> -> vector<2x16x16xf32>
    "tpu.trace_stop"() : () -> ()
    %cst_20 = arith.constant dense<0xFF800000> : vector<2x16xf32>
    %63 = vector.multi_reduction <maximumf>, %62, %cst_20 [2] : vector<2x16x16xf32> to vector<2x16xf32>
    %64 = vector.shape_cast %63 : vector<2x16xf32> to vector<2x16x1xf32>
    %65 = vector.broadcast %64 : vector<2x16x1xf32> to vector<2x16x16xf32>
    %66 = arith.subf %62, %65 : vector<2x16x16xf32>
    %67 = math.exp %66 : vector<2x16x16xf32>
    %cst_21 = arith.constant dense<0.000000e+00> : vector<2x16xf32>
    %68 = vector.multi_reduction <add>, %67, %cst_21 [2] : vector<2x16x16xf32> to vector<2x16xf32>
    %69 = vector.shape_cast %68 : vector<2x16xf32> to vector<2x16x1xf32>
    %70 = arith.truncf %67 : vector<2x16x16xf32> to vector<2x16x16xbf16>
    "tpu.trace_start"() <{level = 10 : i32, message = "bnm,bmd->bnd"}> : () -> ()
    %cst_22 = arith.constant dense<0.000000e+00> : vector<2x16x32xf32>
    %71 = tpu.matmul %70, %61, %cst_22 {dimension_numbers = #tpu.dot_dimension_numbers<[2], [1], [1], [2], [0, 0, 0, 1, 1, 2], [0], [0]>} : vector<2x16x16xbf16>, vector<2x16x32xbf16>, vector<2x16x32xf32> -> vector<2x16x32xf32>
    "tpu.trace_stop"() : () -> ()
    %72 = tpu.reciprocal %69 {approx = true} : vector<2x16x1xf32> -> vector<2x16x1xf32>
    %73 = vector.broadcast %72 : vector<2x16x1xf32> to vector<2x16x32xf32>
    %74 = arith.mulf %71, %73 : vector<2x16x32xf32>
    %75 = vector.shape_cast %74 : vector<2x16x32xf32> to vector<32x32xf32>
    %c0_23 = arith.constant 0 : index
    %c32 = arith.constant 32 : index
    %76 = vector.load %arg14[%c0_23, %c32] : memref<32x128xf32, #tpu.memory_space<vmem>>, vector<32x32xf32>
    tpu.vector_store %arg14[%c0_23, %c32], %75 {strides = array<i32>} : memref<32x128xf32, #tpu.memory_space<vmem>>, vector<32x32xf32>,
    %77 = vector.extract_strided_slice %28 {offsets = [0, 64], sizes = [32, 32], strides = [1, 1]} : vector<32x384xf32> to vector<32x32xf32>
    %78 = vector.shape_cast %77 : vector<32x32xf32> to vector<2x16x32xf32>
    %79 = arith.truncf %78 : vector<2x16x32xf32> to vector<2x16x32xbf16>
    %80 = vector.extract_strided_slice %28 {offsets = [0, 192], sizes = [32, 32], strides = [1, 1]} : vector<32x384xf32> to vector<32x32xf32>
    %81 = vector.shape_cast %80 : vector<32x32xf32> to vector<2x16x32xf32>
    %82 = arith.truncf %81 : vector<2x16x32xf32> to vector<2x16x32xbf16>
    %83 = vector.extract_strided_slice %28 {offsets = [0, 320], sizes = [32, 32], strides = [1, 1]} : vector<32x384xf32> to vector<32x32xf32>
    %84 = vector.shape_cast %83 : vector<32x32xf32> to vector<2x16x32xf32>
    %85 = arith.truncf %84 : vector<2x16x32xf32> to vector<2x16x32xbf16>
    "tpu.trace_start"() <{level = 10 : i32, message = "bnd,bmd->bnm"}> : () -> ()
    %cst_24 = arith.constant dense<0.000000e+00> : vector<2x16x16xf32>
    %86 = tpu.matmul %79, %82, %cst_24 {dimension_numbers = #tpu.dot_dimension_numbers<[2], [2], [1], [1], [0, 0, 0, 1, 1, 1], [0], [0]>} : vector<2x16x32xbf16>, vector<2x16x32xbf16>, vector<2x16x16xf32> -> vector<2x16x16xf32>
    "tpu.trace_stop"() : () -> ()
    %cst_25 = arith.constant dense<0xFF800000> : vector<2x16xf32>
    %87 = vector.multi_reduction <maximumf>, %86, %cst_25 [2] : vector<2x16x16xf32> to vector<2x16xf32>
    %88 = vector.shape_cast %87 : vector<2x16xf32> to vector<2x16x1xf32>
    %89 = vector.broadcast %88 : vector<2x16x1xf32> to vector<2x16x16xf32>
    %90 = arith.subf %86, %89 : vector<2x16x16xf32>
    %91 = math.exp %90 : vector<2x16x16xf32>
    %cst_26 = arith.constant dense<0.000000e+00> : vector<2x16xf32>
    %92 = vector.multi_reduction <add>, %91, %cst_26 [2] : vector<2x16x16xf32> to vector<2x16xf32>
    %93 = vector.shape_cast %92 : vector<2x16xf32> to vector<2x16x1xf32>
    %94 = arith.truncf %91 : vector<2x16x16xf32> to vector<2x16x16xbf16>
    "tpu.trace_start"() <{level = 10 : i32, message = "bnm,bmd->bnd"}> : () -> ()
    %cst_27 = arith.constant dense<0.000000e+00> : vector<2x16x32xf32>
    %95 = tpu.matmul %94, %85, %cst_27 {dimension_numbers = #tpu.dot_dimension_numbers<[2], [1], [1], [2], [0, 0, 0, 1, 1, 2], [0], [0]>} : vector<2x16x16xbf16>, vector<2x16x32xbf16>, vector<2x16x32xf32> -> vector<2x16x32xf32>
    "tpu.trace_stop"() : () -> ()
    %96 = tpu.reciprocal %93 {approx = true} : vector<2x16x1xf32> -> vector<2x16x1xf32>
    %97 = vector.broadcast %96 : vector<2x16x1xf32> to vector<2x16x32xf32>
    %98 = arith.mulf %95, %97 : vector<2x16x32xf32>
    %99 = vector.shape_cast %98 : vector<2x16x32xf32> to vector<32x32xf32>
    %c0_28 = arith.constant 0 : index
    %c64 = arith.constant 64 : index
    %100 = vector.load %arg14[%c0_28, %c64] : memref<32x128xf32, #tpu.memory_space<vmem>>, vector<32x32xf32>
    tpu.vector_store %arg14[%c0_28, %c64], %99 {strides = array<i32>} : memref<32x128xf32, #tpu.memory_space<vmem>>, vector<32x32xf32>,
    %101 = vector.extract_strided_slice %28 {offsets = [0, 96], sizes = [32, 32], strides = [1, 1]} : vector<32x384xf32> to vector<32x32xf32>
    %102 = vector.shape_cast %101 : vector<32x32xf32> to vector<2x16x32xf32>
    %103 = arith.truncf %102 : vector<2x16x32xf32> to vector<2x16x32xbf16>
    %104 = vector.extract_strided_slice %28 {offsets = [0, 224], sizes = [32, 32], strides = [1, 1]} : vector<32x384xf32> to vector<32x32xf32>
    %105 = vector.shape_cast %104 : vector<32x32xf32> to vector<2x16x32xf32>
    %106 = arith.truncf %105 : vector<2x16x32xf32> to vector<2x16x32xbf16>
    %107 = vector.extract_strided_slice %28 {offsets = [0, 352], sizes = [32, 32], strides = [1, 1]} : vector<32x384xf32> to vector<32x32xf32>
    %108 = vector.shape_cast %107 : vector<32x32xf32> to vector<2x16x32xf32>
    %109 = arith.truncf %108 : vector<2x16x32xf32> to vector<2x16x32xbf16>
    "tpu.trace_start"() <{level = 10 : i32, message = "bnd,bmd->bnm"}> : () -> ()
    %cst_29 = arith.constant dense<0.000000e+00> : vector<2x16x16xf32>
    %110 = tpu.matmul %103, %106, %cst_29 {dimension_numbers = #tpu.dot_dimension_numbers<[2], [2], [1], [1], [0, 0, 0, 1, 1, 1], [0], [0]>} : vector<2x16x32xbf16>, vector<2x16x32xbf16>, vector<2x16x16xf32> -> vector<2x16x16xf32>
    "tpu.trace_stop"() : () -> ()
    %cst_30 = arith.constant dense<0xFF800000> : vector<2x16xf32>
    %111 = vector.multi_reduction <maximumf>, %110, %cst_30 [2] : vector<2x16x16xf32> to vector<2x16xf32>
    %112 = vector.shape_cast %111 : vector<2x16xf32> to vector<2x16x1xf32>
    %113 = vector.broadcast %112 : vector<2x16x1xf32> to vector<2x16x16xf32>
    %114 = arith.subf %110, %113 : vector<2x16x16xf32>
    %115 = math.exp %114 : vector<2x16x16xf32>
    %cst_31 = arith.constant dense<0.000000e+00> : vector<2x16xf32>
    %116 = vector.multi_reduction <add>, %115, %cst_31 [2] : vector<2x16x16xf32> to vector<2x16xf32>
    %117 = vector.shape_cast %116 : vector<2x16xf32> to vector<2x16x1xf32>
    %118 = arith.truncf %115 : vector<2x16x16xf32> to vector<2x16x16xbf16>
    "tpu.trace_start"() <{level = 10 : i32, message = "bnm,bmd->bnd"}> : () -> ()
    %cst_32 = arith.constant dense<0.000000e+00> : vector<2x16x32xf32>
    %119 = tpu.matmul %118, %109, %cst_32 {dimension_numbers = #tpu.dot_dimension_numbers<[2], [1], [1], [2], [0, 0, 0, 1, 1, 2], [0], [0]>} : vector<2x16x16xbf16>, vector<2x16x32xbf16>, vector<2x16x32xf32> -> vector<2x16x32xf32>
    "tpu.trace_stop"() : () -> ()
    %120 = tpu.reciprocal %117 {approx = true} : vector<2x16x1xf32> -> vector<2x16x1xf32>
    %121 = vector.broadcast %120 : vector<2x16x1xf32> to vector<2x16x32xf32>
    %122 = arith.mulf %119, %121 : vector<2x16x32xf32>
    %123 = vector.shape_cast %122 : vector<2x16x32xf32> to vector<32x32xf32>
    %c0_33 = arith.constant 0 : index
    %c96 = arith.constant 96 : index
    %124 = vector.load %arg14[%c0_33, %c96] : memref<32x128xf32, #tpu.memory_space<vmem>>, vector<32x32xf32>
    tpu.vector_store %arg14[%c0_33, %c96], %123 {strides = array<i32>} : memref<32x128xf32, #tpu.memory_space<vmem>>, vector<32x32xf32>,
    %c0_34 = arith.constant 0 : index
    %c0_35 = arith.constant 0 : index
    %125 = vector.load %arg14[%c0_34, %c0_35] : memref<32x128xf32, #tpu.memory_space<vmem>>, vector<32x128xf32>
    %126 = arith.truncf %125 : vector<32x128xf32> to vector<32x128xbf16>
    %c0_36 = arith.constant 0 : index
    %c0_37 = arith.constant 0 : index
    %127 = vector.load %arg5[%c0_36, %c0_37] : memref<128x128xbf16, #tpu.memory_space<vmem>>, vector<128x128xbf16>
    %cst_38 = arith.constant dense<0.000000e+00> : vector<32x128xf32>
    %128 = tpu.matmul %126, %127, %cst_38 {dimension_numbers = #tpu.dot_dimension_numbers<[1], [0], [0], [1], [0, 0, 1, 1], [], []>} : vector<32x128xbf16>, vector<128x128xbf16>, vector<32x128xf32> -> vector<32x128xf32>
    %c0_39 = arith.constant 0 : index
    %c0_40 = arith.constant 0 : index
    %129 = vector.load %arg6[%c0_39, %c0_40] : memref<1x128xf32, #tpu.memory_space<vmem>>, vector<1x128xf32>
    %130 = vector.broadcast %129 : vector<1x128xf32> to vector<32x128xf32>
    %131 = arith.addf %128, %130 : vector<32x128xf32>
    %132 = arith.addf %1, %131 : vector<32x128xf32>
    %c0_41 = arith.constant 0 : index
    %c0_42 = arith.constant 0 : index
    %133 = vector.load %arg7[%c0_41, %c0_42] : memref<1x128xf32, #tpu.memory_space<vmem>>, vector<1x128xf32>
    %c0_43 = arith.constant 0 : index
    %c0_44 = arith.constant 0 : index
    %134 = vector.load %arg8[%c0_43, %c0_44] : memref<1x128xf32, #tpu.memory_space<vmem>>, vector<1x128xf32>
    %cst_45 = arith.constant dense<0.000000e+00> : vector<32xf32>
    %135 = vector.multi_reduction <add>, %132, %cst_45 [1] : vector<32x128xf32> to vector<32xf32>
    %136 = vector.shape_cast %135 : vector<32xf32> to vector<32x1xf32>
    %cst_46 = arith.constant 1.280000e+02 : f32
    %137 = vector.broadcast %cst_46 : f32 to vector<32x1xf32>
    %138 = arith.divf %136, %137 : vector<32x1xf32>
    %139 = vector.broadcast %138 : vector<32x1xf32> to vector<32x128xf32>
    %140 = arith.subf %132, %139 : vector<32x128xf32>
    %141 = arith.mulf %140, %140 : vector<32x128xf32>
    %cst_47 = arith.constant dense<0.000000e+00> : vector<32xf32>
    %142 = vector.multi_reduction <add>, %141, %cst_47 [1] : vector<32x128xf32> to vector<32xf32>
    %143 = vector.shape_cast %142 : vector<32xf32> to vector<32x1xf32>
    %cst_48 = arith.constant 1.280000e+02 : f32
    %144 = vector.broadcast %cst_48 : f32 to vector<32x1xf32>
    %145 = arith.divf %143, %144 : vector<32x1xf32>
    %146 = vector.broadcast %138 : vector<32x1xf32> to vector<32x128xf32>
    %147 = arith.subf %132, %146 : vector<32x128xf32>
    %cst_49 = arith.constant 9.99999974E-6 : f32
    %148 = vector.broadcast %cst_49 : f32 to vector<32x1xf32>
    %149 = arith.addf %145, %148 : vector<32x1xf32>
    %150 = math.rsqrt %149 : vector<32x1xf32>
    %151 = vector.broadcast %150 : vector<32x1xf32> to vector<32x128xf32>
    %152 = arith.mulf %147, %151 : vector<32x128xf32>
    %153 = vector.broadcast %133 : vector<1x128xf32> to vector<32x128xf32>
    %154 = arith.mulf %152, %153 : vector<32x128xf32>
    %155 = vector.broadcast %134 : vector<1x128xf32> to vector<32x128xf32>
    %156 = arith.addf %154, %155 : vector<32x128xf32>
    %157 = arith.truncf %156 : vector<32x128xf32> to vector<32x128xbf16>
    %c0_50 = arith.constant 0 : index
    %c0_51 = arith.constant 0 : index
    %158 = vector.load %arg9[%c0_50, %c0_51] : memref<128x512xbf16, #tpu.memory_space<vmem>>, vector<128x512xbf16>
    %cst_52 = arith.constant dense<0.000000e+00> : vector<32x512xf32>
    %159 = tpu.matmul %157, %158, %cst_52 {dimension_numbers = #tpu.dot_dimension_numbers<[1], [0], [0], [1], [0, 0, 1, 1], [], []>} : vector<32x128xbf16>, vector<128x512xbf16>, vector<32x512xf32> -> vector<32x512xf32>
    %c0_53 = arith.constant 0 : index
    %c0_54 = arith.constant 0 : index
    %160 = vector.load %arg10[%c0_53, %c0_54] : memref<1x512xf32, #tpu.memory_space<vmem>>, vector<1x512xf32>
    %161 = vector.broadcast %160 : vector<1x512xf32> to vector<32x512xf32>
    %162 = arith.addf %159, %161 : vector<32x512xf32>
    %cst_55 = arith.constant 5.000000e-01 : f32
    %163 = vector.broadcast %cst_55 : f32 to vector<32x512xf32>
    %164 = arith.mulf %163, %162 : vector<32x512xf32>
    %cst_56 = arith.constant 0.707106769 : f32
    %165 = vector.broadcast %cst_56 : f32 to vector<32x512xf32>
    %166 = arith.mulf %162, %165 : vector<32x512xf32>
    %167 = math.erf %166 : vector<32x512xf32>
    %cst_57 = arith.constant 1.000000e+00 : f32
    %168 = vector.broadcast %cst_57 : f32 to vector<32x512xf32>
    %169 = arith.addf %168, %167 : vector<32x512xf32>
    %170 = arith.mulf %164, %169 : vector<32x512xf32>
    %171 = arith.truncf %170 : vector<32x512xf32> to vector<32x512xbf16>
    %c0_58 = arith.constant 0 : index
    %c0_59 = arith.constant 0 : index
    %172 = vector.load %arg11[%c0_58, %c0_59] : memref<512x128xbf16, #tpu.memory_space<vmem>>, vector<512x128xbf16>
    %cst_60 = arith.constant dense<0.000000e+00> : vector<32x128xf32>
    %173 = tpu.matmul %171, %172, %cst_60 {dimension_numbers = #tpu.dot_dimension_numbers<[1], [0], [0], [1], [0, 0, 1, 1], [], []>} : vector<32x512xbf16>, vector<512x128xbf16>, vector<32x128xf32> -> vector<32x128xf32>
    %c0_61 = arith.constant 0 : index
    %c0_62 = arith.constant 0 : index
    %174 = vector.load %arg12[%c0_61, %c0_62] : memref<1x128xf32, #tpu.memory_space<vmem>>, vector<1x128xf32>
    %175 = vector.broadcast %174 : vector<1x128xf32> to vector<32x128xf32>
    %176 = arith.addf %173, %175 : vector<32x128xf32>
    %177 = arith.addf %132, %176 : vector<32x128xf32>
    %178 = vector.shape_cast %177 : vector<32x128xf32> to vector<2x16x128xf32>
    %c0_63 = arith.constant 0 : index
    %c0_64 = arith.constant 0 : index
    %c0_65 = arith.constant 0 : index
    %179 = vector.load %arg13[%c0_63, %c0_64, %c0_65] : memref<2x16x128xf32, #tpu.memory_space<vmem>>, vector<2x16x128xf32>
    tpu.vector_store %arg13[%c0_63, %c0_64, %c0_65], %178 {strides = array<i32>} : memref<2x16x128xf32, #tpu.memory_space<vmem>>, vector<2x16x128xf32>,
    return
  }
  func.func @transform_0(%arg0: i32) -> (i32, i32, i32) {
    %c0_i32 = arith.constant 0 : i32
    %c0_i32_0 = arith.constant 0 : i32
    %c0_i32_1 = arith.constant 0 : i32
    return %arg0, %c0_i32, %c0_i32_0 : i32, i32, i32
  }
  func.func @transform_1(%arg0: i32) -> (i32, i32) {
    %c0_i32 = arith.constant 0 : i32
    %c0_i32_0 = arith.constant 0 : i32
    %c0_i32_1 = arith.constant 0 : i32
    return %c0_i32, %c0_i32_0 : i32, i32
  }
  func.func @transform_2(%arg0: i32) -> (i32, i32) {
    %c0_i32 = arith.constant 0 : i32
    %c0_i32_0 = arith.constant 0 : i32
    %c0_i32_1 = arith.constant 0 : i32
    return %c0_i32, %c0_i32_0 : i32, i32
  }
  func.func @transform_3(%arg0: i32) -> (i32, i32) {
    %c0_i32 = arith.constant 0 : i32
    %c0_i32_0 = arith.constant 0 : i32
    %c0_i32_1 = arith.constant 0 : i32
    return %c0_i32, %c0_i32_0 : i32, i32
  }
  func.func @transform_4(%arg0: i32) -> (i32, i32) {
    %c0_i32 = arith.constant 0 : i32
    %c0_i32_0 = arith.constant 0 : i32
    %c0_i32_1 = arith.constant 0 : i32
    return %c0_i32, %c0_i32_0 : i32, i32
  }
  func.func @transform_5(%arg0: i32) -> (i32, i32) {
    %c0_i32 = arith.constant 0 : i32
    %c0_i32_0 = arith.constant 0 : i32
    %c0_i32_1 = arith.constant 0 : i32
    return %c0_i32, %c0_i32_0 : i32, i32
  }
  func.func @transform_6(%arg0: i32) -> (i32, i32) {
    %c0_i32 = arith.constant 0 : i32
    %c0_i32_0 = arith.constant 0 : i32
    %c0_i32_1 = arith.constant 0 : i32
    return %c0_i32, %c0_i32_0 : i32, i32
  }
  func.func @transform_7(%arg0: i32) -> (i32, i32) {
    %c0_i32 = arith.constant 0 : i32
    %c0_i32_0 = arith.constant 0 : i32
    %c0_i32_1 = arith.constant 0 : i32
    return %c0_i32, %c0_i32_0 : i32, i32
  }
  func.func @transform_8(%arg0: i32) -> (i32, i32) {
    %c0_i32 = arith.constant 0 : i32
    %c0_i32_0 = arith.constant 0 : i32
    %c0_i32_1 = arith.constant 0 : i32
    return %c0_i32, %c0_i32_0 : i32, i32
  }
  func.func @transform_9(%arg0: i32) -> (i32, i32) {
    %c0_i32 = arith.constant 0 : i32
    %c0_i32_0 = arith.constant 0 : i32
    %c0_i32_1 = arith.constant 0 : i32
    return %c0_i32, %c0_i32_0 : i32, i32
  }
  func.func @transform_10(%arg0: i32) -> (i32, i32) {
    %c0_i32 = arith.constant 0 : i32
    %c0_i32_0 = arith.constant 0 : i32
    %c0_i32_1 = arith.constant 0 : i32
    return %c0_i32, %c0_i32_0 : i32, i32
  }
  func.func @transform_11(%arg0: i32) -> (i32, i32) {
    %c0_i32 = arith.constant 0 : i32
    %c0_i32_0 = arith.constant 0 : i32
    %c0_i32_1 = arith.constant 0 : i32
    return %c0_i32, %c0_i32_0 : i32, i32
  }
  func.func @transform_12(%arg0: i32) -> (i32, i32, i32) {
    %c0_i32 = arith.constant 0 : i32
    %c0_i32_0 = arith.constant 0 : i32
    %c0_i32_1 = arith.constant 0 : i32
    return %arg0, %c0_i32, %c0_i32_0 : i32, i32, i32
  }
}

module attributes {stable_mosaic.version = 11 : i64} {
  func.func @block_kernel(%arg0: i32, %arg1: memref<2x16x128xf32, #tpu.memory_space<vmem>>, %arg2: memref<1x128xf32, #tpu.memory_space<vmem>>, %arg3: memref<1x128xf32, #tpu.memory_space<vmem>>, %arg4: memref<128x384xbf16, #tpu.memory_space<vmem>>, %arg5: memref<128x128xbf16, #tpu.memory_space<vmem>>, %arg6: memref<1x128xf32, #tpu.memory_space<vmem>>, %arg7: memref<1x128xf32, #tpu.memory_space<vmem>>, %arg8: memref<1x128xf32, #tpu.memory_space<vmem>>, %arg9: memref<128x512xbf16, #tpu.memory_space<vmem>>, %arg10: memref<1x512xf32, #tpu.memory_space<vmem>>, %arg11: memref<512x128xbf16, #tpu.memory_space<vmem>>, %arg12: memref<1x128xf32, #tpu.memory_space<vmem>>, %arg13: memref<2x16x128xf32, #tpu.memory_space<vmem>>, %arg14: memref<32x128xf32, #tpu.memory_space<vmem>>) attributes {dimension_semantics = [#tpu.dimension_semantics<parallel>], iteration_bounds = array<i64: 1>, scalar_prefetch = 0 : i64, scratch_operands = 1 : i64, tpu.core_type = #tpu.core_type<tc>, window_params = [{transform_indices = @transform_0, window_bounds = array<i64: 2, 16, 128>}, {pipeline_mode = #tpu.pipeline_mode<synchronous>, transform_indices = @transform_1, window_bounds = array<i64: 1, 128>}, {pipeline_mode = #tpu.pipeline_mode<synchronous>, transform_indices = @transform_2, window_bounds = array<i64: 1, 128>}, {pipeline_mode = #tpu.pipeline_mode<synchronous>, transform_indices = @transform_3, window_bounds = array<i64: 128, 384>}, {pipeline_mode = #tpu.pipeline_mode<synchronous>, transform_indices = @transform_4, window_bounds = array<i64: 128, 128>}, {pipeline_mode = #tpu.pipeline_mode<synchronous>, transform_indices = @transform_5, window_bounds = array<i64: 1, 128>}, {pipeline_mode = #tpu.pipeline_mode<synchronous>, transform_indices = @transform_6, window_bounds = array<i64: 1, 128>}, {pipeline_mode = #tpu.pipeline_mode<synchronous>, transform_indices = @transform_7, window_bounds = array<i64: 1, 128>}, {pipeline_mode = #tpu.pipeline_mode<synchronous>, transform_indices = @transform_8, window_bounds = array<i64: 128, 512>}, {pipeline_mode = #tpu.pipeline_mode<synchronous>, transform_indices = @transform_9, window_bounds = array<i64: 1, 512>}, {pipeline_mode = #tpu.pipeline_mode<synchronous>, transform_indices = @transform_10, window_bounds = array<i64: 512, 128>}, {pipeline_mode = #tpu.pipeline_mode<synchronous>, transform_indices = @transform_11, window_bounds = array<i64: 1, 128>}, {transform_indices = @transform_12, window_bounds = array<i64: 2, 16, 128>}]} {
    %c0 = arith.constant 0 : index
    %c0_0 = arith.constant 0 : index
    %c0_1 = arith.constant 0 : index
    %0 = vector.load %arg1[%c0, %c0_0, %c0_1] : memref<2x16x128xf32, #tpu.memory_space<vmem>>, vector<2x16x128xf32>
    %1 = vector.shape_cast %0 : vector<2x16x128xf32> to vector<32x128xf32>
    %c0_2 = arith.constant 0 : index
    %c0_3 = arith.constant 0 : index
    %2 = vector.load %arg2[%c0_2, %c0_3] : memref<1x128xf32, #tpu.memory_space<vmem>>, vector<1x128xf32>
    %c0_4 = arith.constant 0 : index
    %c0_5 = arith.constant 0 : index
    %3 = vector.load %arg3[%c0_4, %c0_5] : memref<1x128xf32, #tpu.memory_space<vmem>>, vector<1x128xf32>
    %cst = arith.constant dense<0.000000e+00> : vector<32xf32>
    %4 = vector.multi_reduction <add>, %1, %cst [1] : vector<32x128xf32> to vector<32xf32>
    %5 = vector.shape_cast %4 : vector<32xf32> to vector<32x1xf32>
    %cst_6 = arith.constant 1.280000e+02 : f32
    %6 = vector.broadcast %cst_6 : f32 to vector<32x1xf32>
    %7 = arith.divf %5, %6 : vector<32x1xf32>
    %8 = vector.broadcast %7 : vector<32x1xf32> to vector<32x128xf32>
    %9 = arith.subf %1, %8 : vector<32x128xf32>
    %10 = arith.mulf %9, %9 : vector<32x128xf32>
    %cst_7 = arith.constant dense<0.000000e+00> : vector<32xf32>
    %11 = vector.multi_reduction <add>, %10, %cst_7 [1] : vector<32x128xf32> to vector<32xf32>
    %12 = vector.shape_cast %11 : vector<32xf32> to vector<32x1xf32>
    %cst_8 = arith.constant 1.280000e+02 : f32
    %13 = vector.broadcast %cst_8 : f32 to vector<32x1xf32>
    %14 = arith.divf %12, %13 : vector<32x1xf32>
    %15 = vector.broadcast %7 : vector<32x1xf32> to vector<32x128xf32>
    %16 = arith.subf %1, %15 : vector<32x128xf32>
    %cst_9 = arith.constant 9.99999974E-6 : f32
    %17 = vector.broadcast %cst_9 : f32 to vector<32x1xf32>
    %18 = arith.addf %14, %17 : vector<32x1xf32>
    %19 = math.rsqrt %18 : vector<32x1xf32>
    %20 = vector.broadcast %19 : vector<32x1xf32> to vector<32x128xf32>
    %21 = arith.mulf %16, %20 : vector<32x128xf32>
    %22 = vector.broadcast %2 : vector<1x128xf32> to vector<32x128xf32>
    %23 = arith.mulf %21, %22 : vector<32x128xf32>
    %24 = vector.broadcast %3 : vector<1x128xf32> to vector<32x128xf32>
    %25 = arith.addf %23, %24 : vector<32x128xf32>
    %26 = arith.truncf %25 : vector<32x128xf32> to vector<32x128xbf16>
    %c0_10 = arith.constant 0 : index
    %c0_11 = arith.constant 0 : index
    %27 = vector.load %arg4[%c0_10, %c0_11] : memref<128x384xbf16, #tpu.memory_space<vmem>>, vector<128x384xbf16>
    %cst_12 = arith.constant dense<0.000000e+00> : vector<32x384xf32>
    %28 = tpu.matmul %26, %27, %cst_12 {dimension_numbers = #tpu.dot_dimension_numbers<[1], [0], [0], [1], [0, 0, 1, 1], [], []>} : vector<32x128xbf16>, vector<128x384xbf16>, vector<32x384xf32> -> vector<32x384xf32>
    %29 = vector.extract_strided_slice %28 {offsets = [0, 0], sizes = [32, 32], strides = [1, 1]} : vector<32x384xf32> to vector<32x32xf32>
    %30 = vector.shape_cast %29 : vector<32x32xf32> to vector<2x16x32xf32>
    %31 = arith.truncf %30 : vector<2x16x32xf32> to vector<2x16x32xbf16>
    %32 = vector.extract_strided_slice %28 {offsets = [0, 128], sizes = [32, 32], strides = [1, 1]} : vector<32x384xf32> to vector<32x32xf32>
    %33 = vector.shape_cast %32 : vector<32x32xf32> to vector<2x16x32xf32>
    %34 = arith.truncf %33 : vector<2x16x32xf32> to vector<2x16x32xbf16>
    %35 = vector.extract_strided_slice %28 {offsets = [0, 256], sizes = [32, 32], strides = [1, 1]} : vector<32x384xf32> to vector<32x32xf32>
    %36 = vector.shape_cast %35 : vector<32x32xf32> to vector<2x16x32xf32>
    %37 = arith.truncf %36 : vector<2x16x32xf32> to vector<2x16x32xbf16>
    "tpu.trace_start"() <{level = 10 : i32, message = "bnd,bmd->bnm"}> : () -> ()
    %cst_13 = arith.constant dense<0.000000e+00> : vector<2x16x16xf32>
    %38 = tpu.matmul %31, %34, %cst_13 {dimension_numbers = #tpu.dot_dimension_numbers<[2], [2], [1], [1], [0, 0, 0, 1, 1, 1], [0], [0]>} : vector<2x16x32xbf16>, vector<2x16x32xbf16>, vector<2x16x16xf32> -> vector<2x16x16xf32>
    "tpu.trace_stop"() : () -> ()
    %cst_14 = arith.constant dense<0xFF800000> : vector<2x16xf32>
    %39 = vector.multi_reduction <maximumf>, %38, %cst_14 [2] : vector<2x16x16xf32> to vector<2x16xf32>
    %40 = vector.shape_cast %39 : vector<2x16xf32> to vector<2x16x1xf32>
    %41 = vector.broadcast %40 : vector<2x16x1xf32> to vector<2x16x16xf32>
    %42 = arith.subf %38, %41 : vector<2x16x16xf32>
    %43 = math.exp %42 : vector<2x16x16xf32>
    %cst_15 = arith.constant dense<0.000000e+00> : vector<2x16xf32>
    %44 = vector.multi_reduction <add>, %43, %cst_15 [2] : vector<2x16x16xf32> to vector<2x16xf32>
    %45 = vector.shape_cast %44 : vector<2x16xf32> to vector<2x16x1xf32>
    %46 = arith.truncf %43 : vector<2x16x16xf32> to vector<2x16x16xbf16>
    "tpu.trace_start"() <{level = 10 : i32, message = "bnm,bmd->bnd"}> : () -> ()
    %cst_16 = arith.constant dense<0.000000e+00> : vector<2x16x32xf32>
    %47 = tpu.matmul %46, %37, %cst_16 {dimension_numbers = #tpu.dot_dimension_numbers<[2], [1], [1], [2], [0, 0, 0, 1, 1, 2], [0], [0]>} : vector<2x16x16xbf16>, vector<2x16x32xbf16>, vector<2x16x32xf32> -> vector<2x16x32xf32>
    "tpu.trace_stop"() : () -> ()
    %48 = tpu.reciprocal %45 {approx = true} : vector<2x16x1xf32> -> vector<2x16x1xf32>
    %49 = vector.broadcast %48 : vector<2x16x1xf32> to vector<2x16x32xf32>
    %50 = arith.mulf %47, %49 : vector<2x16x32xf32>
    %51 = vector.shape_cast %50 : vector<2x16x32xf32> to vector<32x32xf32>
    %c0_17 = arith.constant 0 : index
    %c0_18 = arith.constant 0 : index
    %52 = vector.load %arg14[%c0_17, %c0_18] : memref<32x128xf32, #tpu.memory_space<vmem>>, vector<32x32xf32>
    tpu.vector_store %arg14[%c0_17, %c0_18], %51 {strides = array<i32>} : memref<32x128xf32, #tpu.memory_space<vmem>>, vector<32x32xf32>,
    %53 = vector.extract_strided_slice %28 {offsets = [0, 32], sizes = [32, 32], strides = [1, 1]} : vector<32x384xf32> to vector<32x32xf32>
    %54 = vector.shape_cast %53 : vector<32x32xf32> to vector<2x16x32xf32>
    %55 = arith.truncf %54 : vector<2x16x32xf32> to vector<2x16x32xbf16>
    %56 = vector.extract_strided_slice %28 {offsets = [0, 160], sizes = [32, 32], strides = [1, 1]} : vector<32x384xf32> to vector<32x32xf32>
    %57 = vector.shape_cast %56 : vector<32x32xf32> to vector<2x16x32xf32>
    %58 = arith.truncf %57 : vector<2x16x32xf32> to vector<2x16x32xbf16>
    %59 = vector.extract_strided_slice %28 {offsets = [0, 288], sizes = [32, 32], strides = [1, 1]} : vector<32x384xf32> to vector<32x32xf32>
    %60 = vector.shape_cast %59 : vector<32x32xf32> to vector<2x16x32xf32>
    %61 = arith.truncf %60 : vector<2x16x32xf32> to vector<2x16x32xbf16>
    "tpu.trace_start"() <{level = 10 : i32, message = "bnd,bmd->bnm"}> : () -> ()
    %cst_19 = arith.constant dense<0.000000e+00> : vector<2x16x16xf32>
    %62 = tpu.matmul %55, %58, %cst_19 {dimension_numbers = #tpu.dot_dimension_numbers<[2], [2], [1], [1], [0, 0, 0, 1, 1, 1], [0], [0]>} : vector<2x16x32xbf16>, vector<2x16x32xbf16>, vector<2x16x16xf32> -> vector<2x16x16xf32>
    "tpu.trace_stop"() : () -> ()
    %cst_20 = arith.constant dense<0xFF800000> : vector<2x16xf32>
    %63 = vector.multi_reduction <maximumf>, %62, %cst_20 [2] : vector<2x16x16xf32> to vector<2x16xf32>
    %64 = vector.shape_cast %63 : vector<2x16xf32> to vector<2x16x1xf32>
    %65 = vector.broadcast %64 : vector<2x16x1xf32> to vector<2x16x16xf32>
    %66 = arith.subf %62, %65 : vector<2x16x16xf32>
    %67 = math.exp %66 : vector<2x16x16xf32>
    %cst_21 = arith.constant dense<0.000000e+00> : vector<2x16xf32>
    %68 = vector.multi_reduction <add>, %67, %cst_21 [2] : vector<2x16x16xf32> to vector<2x16xf32>
    %69 = vector.shape_cast %68 : vector<2x16xf32> to vector<2x16x1xf32>
    %70 = arith.truncf %67 : vector<2x16x16xf32> to vector<2x16x16xbf16>
    "tpu.trace_start"() <{level = 10 : i32, message = "bnm,bmd->bnd"}> : () -> ()
    %cst_22 = arith.constant dense<0.000000e+00> : vector<2x16x32xf32>
    %71 = tpu.matmul %70, %61, %cst_22 {dimension_numbers = #tpu.dot_dimension_numbers<[2], [1], [1], [2], [0, 0, 0, 1, 1, 2], [0], [0]>} : vector<2x16x16xbf16>, vector<2x16x32xbf16>, vector<2x16x32xf32> -> vector<2x16x32xf32>
    "tpu.trace_stop"() : () -> ()
    %72 = tpu.reciprocal %69 {approx = true} : vector<2x16x1xf32> -> vector<2x16x1xf32>
    %73 = vector.broadcast %72 : vector<2x16x1xf32> to vector<2x16x32xf32>
    %74 = arith.mulf %71, %73 : vector<2x16x32xf32>
    %75 = vector.shape_cast %74 : vector<2x16x32xf32> to vector<32x32xf32>
    %c0_23 = arith.constant 0 : index
    %c32 = arith.constant 32 : index
    %76 = vector.load %arg14[%c0_23, %c32] : memref<32x128xf32, #tpu.memory_space<vmem>>, vector<32x32xf32>
    tpu.vector_store %arg14[%c0_23, %c32], %75 {strides = array<i32>} : memref<32x128xf32, #tpu.memory_space<vmem>>, vector<32x32xf32>,
    %77 = vector.extract_strided_slice %28 {offsets = [0, 64], sizes = [32, 32], strides = [1, 1]} : vector<32x384xf32> to vector<32x32xf32>
    %78 = vector.shape_cast %77 : vector<32x32xf32> to vector<2x16x32xf32>
    %79 = arith.truncf %78 : vector<2x16x32xf32> to vector<2x16x32xbf16>
    %80 = vector.extract_strided_slice %28 {offsets = [0, 192], sizes = [32, 32], strides = [1, 1]} : vector<32x384xf32> to vector<32x32xf32>
    %81 = vector.shape_cast %80 : vector<32x32xf32> to vector<2x16x32xf32>
    %82 = arith.truncf %81 : vector<2x16x32xf32> to vector<2x16x32xbf16>
    %83 = vector.extract_strided_slice %28 {offsets = [0, 320], sizes = [32, 32], strides = [1, 1]} : vector<32x384xf32> to vector<32x32xf32>
    %84 = vector.shape_cast %83 : vector<32x32xf32> to vector<2x16x32xf32>
    %85 = arith.truncf %84 : vector<2x16x32xf32> to vector<2x16x32xbf16>
    "tpu.trace_start"() <{level = 10 : i32, message = "bnd,bmd->bnm"}> : () -> ()
    %cst_24 = arith.constant dense<0.000000e+00> : vector<2x16x16xf32>
    %86 = tpu.matmul %79, %82, %cst_24 {dimension_numbers = #tpu.dot_dimension_numbers<[2], [2], [1], [1], [0, 0, 0, 1, 1, 1], [0], [0]>} : vector<2x16x32xbf16>, vector<2x16x32xbf16>, vector<2x16x16xf32> -> vector<2x16x16xf32>
    "tpu.trace_stop"() : () -> ()
    %cst_25 = arith.constant dense<0xFF800000> : vector<2x16xf32>
    %87 = vector.multi_reduction <maximumf>, %86, %cst_25 [2] : vector<2x16x16xf32> to vector<2x16xf32>
    %88 = vector.shape_cast %87 : vector<2x16xf32> to vector<2x16x1xf32>
    %89 = vector.broadcast %88 : vector<2x16x1xf32> to vector<2x16x16xf32>
    %90 = arith.subf %86, %89 : vector<2x16x16xf32>
    %91 = math.exp %90 : vector<2x16x16xf32>
    %cst_26 = arith.constant dense<0.000000e+00> : vector<2x16xf32>
    %92 = vector.multi_reduction <add>, %91, %cst_26 [2] : vector<2x16x16xf32> to vector<2x16xf32>
    %93 = vector.shape_cast %92 : vector<2x16xf32> to vector<2x16x1xf32>
    %94 = arith.truncf %91 : vector<2x16x16xf32> to vector<2x16x16xbf16>
    "tpu.trace_start"() <{level = 10 : i32, message = "bnm,bmd->bnd"}> : () -> ()
    %cst_27 = arith.constant dense<0.000000e+00> : vector<2x16x32xf32>
    %95 = tpu.matmul %94, %85, %cst_27 {dimension_numbers = #tpu.dot_dimension_numbers<[2], [1], [1], [2], [0, 0, 0, 1, 1, 2], [0], [0]>} : vector<2x16x16xbf16>, vector<2x16x32xbf16>, vector<2x16x32xf32> -> vector<2x16x32xf32>
    "tpu.trace_stop"() : () -> ()
    %96 = tpu.reciprocal %93 {approx = true} : vector<2x16x1xf32> -> vector<2x16x1xf32>
    %97 = vector.broadcast %96 : vector<2x16x1xf32> to vector<2x16x32xf32>
    %98 = arith.mulf %95, %97 : vector<2x16x32xf32>
    %99 = vector.shape_cast %98 : vector<2x16x32xf32> to vector<32x32xf32>
    %c0_28 = arith.constant 0 : index
    %c64 = arith.constant 64 : index
    %100 = vector.load %arg14[%c0_28, %c64] : memref<32x128xf32, #tpu.memory_space<vmem>>, vector<32x32xf32>
    tpu.vector_store %arg14[%c0_28, %c64], %99 {strides = array<i32>} : memref<32x128xf32, #tpu.memory_space<vmem>>, vector<32x32xf32>,
    %101 = vector.extract_strided_slice %28 {offsets = [0, 96], sizes = [32, 32], strides = [1, 1]} : vector<32x384xf32> to vector<32x32xf32>
    %102 = vector.shape_cast %101 : vector<32x32xf32> to vector<2x16x32xf32>
    %103 = arith.truncf %102 : vector<2x16x32xf32> to vector<2x16x32xbf16>
    %104 = vector.extract_strided_slice %28 {offsets = [0, 224], sizes = [32, 32], strides = [1, 1]} : vector<32x384xf32> to vector<32x32xf32>
    %105 = vector.shape_cast %104 : vector<32x32xf32> to vector<2x16x32xf32>
    %106 = arith.truncf %105 : vector<2x16x32xf32> to vector<2x16x32xbf16>
    %107 = vector.extract_strided_slice %28 {offsets = [0, 352], sizes = [32, 32], strides = [1, 1]} : vector<32x384xf32> to vector<32x32xf32>
    %108 = vector.shape_cast %107 : vector<32x32xf32> to vector<2x16x32xf32>
    %109 = arith.truncf %108 : vector<2x16x32xf32> to vector<2x16x32xbf16>
    "tpu.trace_start"() <{level = 10 : i32, message = "bnd,bmd->bnm"}> : () -> ()
    %cst_29 = arith.constant dense<0.000000e+00> : vector<2x16x16xf32>
    %110 = tpu.matmul %103, %106, %cst_29 {dimension_numbers = #tpu.dot_dimension_numbers<[2], [2], [1], [1], [0, 0, 0, 1, 1, 1], [0], [0]>} : vector<2x16x32xbf16>, vector<2x16x32xbf16>, vector<2x16x16xf32> -> vector<2x16x16xf32>
    "tpu.trace_stop"() : () -> ()
    %cst_30 = arith.constant dense<0xFF800000> : vector<2x16xf32>
    %111 = vector.multi_reduction <maximumf>, %110, %cst_30 [2] : vector<2x16x16xf32> to vector<2x16xf32>
    %112 = vector.shape_cast %111 : vector<2x16xf32> to vector<2x16x1xf32>
    %113 = vector.broadcast %112 : vector<2x16x1xf32> to vector<2x16x16xf32>
    %114 = arith.subf %110, %113 : vector<2x16x16xf32>
    %115 = math.exp %114 : vector<2x16x16xf32>
    %cst_31 = arith.constant dense<0.000000e+00> : vector<2x16xf32>
    %116 = vector.multi_reduction <add>, %115, %cst_31 [2] : vector<2x16x16xf32> to vector<2x16xf32>
    %117 = vector.shape_cast %116 : vector<2x16xf32> to vector<2x16x1xf32>
    %118 = arith.truncf %115 : vector<2x16x16xf32> to vector<2x16x16xbf16>
    "tpu.trace_start"() <{level = 10 : i32, message = "bnm,bmd->bnd"}> : () -> ()
    %cst_32 = arith.constant dense<0.000000e+00> : vector<2x16x32xf32>
    %119 = tpu.matmul %118, %109, %cst_32 {dimension_numbers = #tpu.dot_dimension_numbers<[2], [1], [1], [2], [0, 0, 0, 1, 1, 2], [0], [0]>} : vector<2x16x16xbf16>, vector<2x16x32xbf16>, vector<2x16x32xf32> -> vector<2x16x32xf32>
    "tpu.trace_stop"() : () -> ()
    %120 = tpu.reciprocal %117 {approx = true} : vector<2x16x1xf32> -> vector<2x16x1xf32>
    %121 = vector.broadcast %120 : vector<2x16x1xf32> to vector<2x16x32xf32>
    %122 = arith.mulf %119, %121 : vector<2x16x32xf32>
    %123 = vector.shape_cast %122 : vector<2x16x32xf32> to vector<32x32xf32>
    %c0_33 = arith.constant 0 : index
    %c96 = arith.constant 96 : index
    %124 = vector.load %arg14[%c0_33, %c96] : memref<32x128xf32, #tpu.memory_space<vmem>>, vector<32x32xf32>
    tpu.vector_store %arg14[%c0_33, %c96], %123 {strides = array<i32>} : memref<32x128xf32, #tpu.memory_space<vmem>>, vector<32x32xf32>,
    %c0_34 = arith.constant 0 : index
    %c0_35 = arith.constant 0 : index
    %125 = vector.load %arg14[%c0_34, %c0_35] : memref<32x128xf32, #tpu.memory_space<vmem>>, vector<32x128xf32>
    %126 = arith.truncf %125 : vector<32x128xf32> to vector<32x128xbf16>
    %c0_36 = arith.constant 0 : index
    %c0_37 = arith.constant 0 : index
    %127 = vector.load %arg5[%c0_36, %c0_37] : memref<128x128xbf16, #tpu.memory_space<vmem>>, vector<128x128xbf16>
    %cst_38 = arith.constant dense<0.000000e+00> : vector<32x128xf32>
    %128 = tpu.matmul %126, %127, %cst_38 {dimension_numbers = #tpu.dot_dimension_numbers<[1], [0], [0], [1], [0, 0, 1, 1], [], []>} : vector<32x128xbf16>, vector<128x128xbf16>, vector<32x128xf32> -> vector<32x128xf32>
    %c0_39 = arith.constant 0 : index
    %c0_40 = arith.constant 0 : index
    %129 = vector.load %arg6[%c0_39, %c0_40] : memref<1x128xf32, #tpu.memory_space<vmem>>, vector<1x128xf32>
    %130 = vector.broadcast %129 : vector<1x128xf32> to vector<32x128xf32>
    %131 = arith.addf %128, %130 : vector<32x128xf32>
    %132 = arith.addf %1, %131 : vector<32x128xf32>
    %c0_41 = arith.constant 0 : index
    %c0_42 = arith.constant 0 : index
    %133 = vector.load %arg7[%c0_41, %c0_42] : memref<1x128xf32, #tpu.memory_space<vmem>>, vector<1x128xf32>
    %c0_43 = arith.constant 0 : index
    %c0_44 = arith.constant 0 : index
    %134 = vector.load %arg8[%c0_43, %c0_44] : memref<1x128xf32, #tpu.memory_space<vmem>>, vector<1x128xf32>
    %cst_45 = arith.constant dense<0.000000e+00> : vector<32xf32>
    %135 = vector.multi_reduction <add>, %132, %cst_45 [1] : vector<32x128xf32> to vector<32xf32>
    %136 = vector.shape_cast %135 : vector<32xf32> to vector<32x1xf32>
    %cst_46 = arith.constant 1.280000e+02 : f32
    %137 = vector.broadcast %cst_46 : f32 to vector<32x1xf32>
    %138 = arith.divf %136, %137 : vector<32x1xf32>
    %139 = vector.broadcast %138 : vector<32x1xf32> to vector<32x128xf32>
    %140 = arith.subf %132, %139 : vector<32x128xf32>
    %141 = arith.mulf %140, %140 : vector<32x128xf32>
    %cst_47 = arith.constant dense<0.000000e+00> : vector<32xf32>
    %142 = vector.multi_reduction <add>, %141, %cst_47 [1] : vector<32x128xf32> to vector<32xf32>
    %143 = vector.shape_cast %142 : vector<32xf32> to vector<32x1xf32>
    %cst_48 = arith.constant 1.280000e+02 : f32
    %144 = vector.broadcast %cst_48 : f32 to vector<32x1xf32>
    %145 = arith.divf %143, %144 : vector<32x1xf32>
    %146 = vector.broadcast %138 : vector<32x1xf32> to vector<32x128xf32>
    %147 = arith.subf %132, %146 : vector<32x128xf32>
    %cst_49 = arith.constant 9.99999974E-6 : f32
    %148 = vector.broadcast %cst_49 : f32 to vector<32x1xf32>
    %149 = arith.addf %145, %148 : vector<32x1xf32>
    %150 = math.rsqrt %149 : vector<32x1xf32>
    %151 = vector.broadcast %150 : vector<32x1xf32> to vector<32x128xf32>
    %152 = arith.mulf %147, %151 : vector<32x128xf32>
    %153 = vector.broadcast %133 : vector<1x128xf32> to vector<32x128xf32>
    %154 = arith.mulf %152, %153 : vector<32x128xf32>
    %155 = vector.broadcast %134 : vector<1x128xf32> to vector<32x128xf32>
    %156 = arith.addf %154, %155 : vector<32x128xf32>
    %157 = arith.truncf %156 : vector<32x128xf32> to vector<32x128xbf16>
    %c0_50 = arith.constant 0 : index
    %c0_51 = arith.constant 0 : index
    %158 = vector.load %arg9[%c0_50, %c0_51] : memref<128x512xbf16, #tpu.memory_space<vmem>>, vector<128x512xbf16>
    %cst_52 = arith.constant dense<0.000000e+00> : vector<32x512xf32>
    %159 = tpu.matmul %157, %158, %cst_52 {dimension_numbers = #tpu.dot_dimension_numbers<[1], [0], [0], [1], [0, 0, 1, 1], [], []>} : vector<32x128xbf16>, vector<128x512xbf16>, vector<32x512xf32> -> vector<32x512xf32>
    %c0_53 = arith.constant 0 : index
    %c0_54 = arith.constant 0 : index
    %160 = vector.load %arg10[%c0_53, %c0_54] : memref<1x512xf32, #tpu.memory_space<vmem>>, vector<1x512xf32>
    %161 = vector.broadcast %160 : vector<1x512xf32> to vector<32x512xf32>
    %162 = arith.addf %159, %161 : vector<32x512xf32>
    %cst_55 = arith.constant 5.000000e-01 : f32
    %163 = vector.broadcast %cst_55 : f32 to vector<32x512xf32>
    %164 = arith.mulf %163, %162 : vector<32x512xf32>
    %cst_56 = arith.constant 0.707106769 : f32
    %165 = vector.broadcast %cst_56 : f32 to vector<32x512xf32>
    %166 = arith.mulf %162, %165 : vector<32x512xf32>
    %167 = math.erf %166 : vector<32x512xf32>
    %cst_57 = arith.constant 1.000000e+00 : f32
    %168 = vector.broadcast %cst_57 : f32 to vector<32x512xf32>
    %169 = arith.addf %168, %167 : vector<32x512xf32>
    %170 = arith.mulf %164, %169 : vector<32x512xf32>
    %171 = arith.truncf %170 : vector<32x512xf32> to vector<32x512xbf16>
    %c0_58 = arith.constant 0 : index
    %c0_59 = arith.constant 0 : index
    %172 = vector.load %arg11[%c0_58, %c0_59] : memref<512x128xbf16, #tpu.memory_space<vmem>>, vector<512x128xbf16>
    %cst_60 = arith.constant dense<0.000000e+00> : vector<32x128xf32>
    %173 = tpu.matmul %171, %172, %cst_60 {dimension_numbers = #tpu.dot_dimension_numbers<[1], [0], [0], [1], [0, 0, 1, 1], [], []>} : vector<32x512xbf16>, vector<512x128xbf16>, vector<32x128xf32> -> vector<32x128xf32>
    %c0_61 = arith.constant 0 : index
    %c0_62 = arith.constant 0 : index
    %174 = vector.load %arg12[%c0_61, %c0_62] : memref<1x128xf32, #tpu.memory_space<vmem>>, vector<1x128xf32>
    %175 = vector.broadcast %174 : vector<1x128xf32> to vector<32x128xf32>
    %176 = arith.addf %173, %175 : vector<32x128xf32>
    %177 = arith.addf %132, %176 : vector<32x128xf32>
    %178 = vector.shape_cast %177 : vector<32x128xf32> to vector<2x16x128xf32>
    %c0_63 = arith.constant 0 : index
    %c0_64 = arith.constant 0 : index
    %c0_65 = arith.constant 0 : index
    %179 = vector.load %arg13[%c0_63, %c0_64, %c0_65] : memref<2x16x128xf32, #tpu.memory_space<vmem>>, vector<2x16x128xf32>
    tpu.vector_store %arg13[%c0_63, %c0_64, %c0_65], %178 {strides = array<i32>} : memref<2x16x128xf32, #tpu.memory_space<vmem>>, vector<2x16x128xf32>,
    return
  }
  func.func @transform_0(%arg0: i32) -> (i32, i32, i32) {
    %c0_i32 = arith.constant 0 : i32
    %c0_i32_0 = arith.constant 0 : i32
    %c0_i32_1 = arith.constant 0 : i32
    return %arg0, %c0_i32, %c0_i32_0 : i32, i32, i32
  }
  func.func @transform_1(%arg0: i32) -> (i32, i32) {
    %c0_i32 = arith.constant 0 : i32
    %c0_i32_0 = arith.constant 0 : i32
    %c0_i32_1 = arith.constant 0 : i32
    return %c0_i32, %c0_i32_0 : i32, i32
  }
  func.func @transform_2(%arg0: i32) -> (i32, i32) {
    %c0_i32 = arith.constant 0 : i32
    %c0_i32_0 = arith.constant 0 : i32
    %c0_i32_1 = arith.constant 0 : i32
    return %c0_i32, %c0_i32_0 : i32, i32
  }
  func.func @transform_3(%arg0: i32) -> (i32, i32) {
    %c0_i32 = arith.constant 0 : i32
    %c0_i32_0 = arith.constant 0 : i32
    %c0_i32_1 = arith.constant 0 : i32
    return %c0_i32, %c0_i32_0 : i32, i32
  }
  func.func @transform_4(%arg0: i32) -> (i32, i32) {
    %c0_i32 = arith.constant 0 : i32
    %c0_i32_0 = arith.constant 0 : i32
    %c0_i32_1 = arith.constant 0 : i32
    return %c0_i32, %c0_i32_0 : i32, i32
  }
  func.func @transform_5(%arg0: i32) -> (i32, i32) {
    %c0_i32 = arith.constant 0 : i32
    %c0_i32_0 = arith.constant 0 : i32
    %c0_i32_1 = arith.constant 0 : i32
    return %c0_i32, %c0_i32_0 : i32, i32
  }
  func.func @transform_6(%arg0: i32) -> (i32, i32) {
    %c0_i32 = arith.constant 0 : i32
    %c0_i32_0 = arith.constant 0 : i32
    %c0_i32_1 = arith.constant 0 : i32
    return %c0_i32, %c0_i32_0 : i32, i32
  }
  func.func @transform_7(%arg0: i32) -> (i32, i32) {
    %c0_i32 = arith.constant 0 : i32
    %c0_i32_0 = arith.constant 0 : i32
    %c0_i32_1 = arith.constant 0 : i32
    return %c0_i32, %c0_i32_0 : i32, i32
  }
  func.func @transform_8(%arg0: i32) -> (i32, i32) {
    %c0_i32 = arith.constant 0 : i32
    %c0_i32_0 = arith.constant 0 : i32
    %c0_i32_1 = arith.constant 0 : i32
    return %c0_i32, %c0_i32_0 : i32, i32
  }
  func.func @transform_9(%arg0: i32) -> (i32, i32) {
    %c0_i32 = arith.constant 0 : i32
    %c0_i32_0 = arith.constant 0 : i32
    %c0_i32_1 = arith.constant 0 : i32
    return %c0_i32, %c0_i32_0 : i32, i32
  }
  func.func @transform_10(%arg0: i32) -> (i32, i32) {
    %c0_i32 = arith.constant 0 : i32
    %c0_i32_0 = arith.constant 0 : i32
    %c0_i32_1 = arith.constant 0 : i32
    return %c0_i32, %c0_i32_0 : i32, i32
  }
  func.func @transform_11(%arg0: i32) -> (i32, i32) {
    %c0_i32 = arith.constant 0 : i32
    %c0_i32_0 = arith.constant 0 : i32
    %c0_i32_1 = arith.constant 0 : i32
    return %c0_i32, %c0_i32_0 : i32, i32
  }
  func.func @transform_12(%arg0: i32) -> (i32, i32, i32) {
    %c0_i32 = arith.constant 0 : i32
    %c0_i32_0 = arith.constant 0 : i32
    %c0_i32_1 = arith.constant 0 : i32
    return %arg0, %c0_i32, %c0_i32_0 : i32, i32, i32
  }
}

</mosaic_0001>

<llo_original>
// kernel: tpu_custom_call.1
$region0: #{tpu_custom_call.1}
  #allocation0 [shape = 'u32[]', space=smem, size = 0x4, offset = 0x4, fixed_abs, tag = 'smem constant byte address 0x4 - core index']
  #allocation1 [shape = 'u32[72,128]{1,0:T(1,128)}', space=vmem, size = 0x9000, scoped, tag = 'internal scratch']
  #allocation2 [shape = 'f32[32,128]{1,0:T(8,128)}', space=vmem, size = 0x4000, scoped, tag = 'scratch operand']
  %s0 = inlined_call_operand.hbm [shape: f32[2,16,128], index: 0, kind: input, shape index: {}]
  %s1 = inlined_call_operand.hbm [shape: f32[1,128], index: 1, kind: input, shape index: {}]
  %s2 = inlined_call_operand.vmem [shape: f32[1,128], index: 2, kind: input, shape index: {}]
  %s3 = inlined_call_operand.hbm [shape: bf16[128,384], index: 3, kind: input, shape index: {}]
  %s4 = inlined_call_operand.hbm [shape: bf16[128,128], index: 4, kind: input, shape index: {}]
  %s5 = inlined_call_operand.vmem [shape: f32[1,128], index: 5, kind: input, shape index: {}]
  %s6 = inlined_call_operand.vmem [shape: f32[1,128], index: 6, kind: input, shape index: {}]
  %s7 = inlined_call_operand.hbm [shape: f32[1,128], index: 7, kind: input, shape index: {}]
  %s8 = inlined_call_operand.hbm [shape: bf16[128,512], index: 8, kind: input, shape index: {}]
  %s9 = inlined_call_operand.vmem [shape: f32[1,512], index: 9, kind: input, shape index: {}]
  %s10 = inlined_call_operand.hbm [shape: bf16[512,128], index: 10, kind: input, shape index: {}]
  %s11 = inlined_call_operand.vmem [shape: f32[1,128], index: 11, kind: input, shape index: {}]
  %s12 = inlined_call_operand.hbm [shape: f32[2,16,128], index: 12, kind: output, shape index: {}]
  %s13 = sld [smem:[#allocation0]]
  $region86: #{tpu_custom_call.1} parent=0
    _
  %s15 = ssub.s32 1, %s13
  %s16 = scalar_select 0, %s15, %s13
  $region1: #{tpu_custom_call.1} parent=0
    #allocation3 [shape = 'u8[16384]{0}', space=vmem, size = 0x4000, scoped, tag = 'input window, operand 0, single buffered']
    #allocation4 [shape = 's32[1]{0}', space=sflag, size = 0x4, scoped, tag = 'scoped memory for tpu_custom_call.1']
    #allocation5 [shape = 's32[1]{0}', space=sflag, size = 0x4, scoped, tag = 'scoped memory for tpu_custom_call.1']
    #allocation6 [shape = 'u8[512]{0}', space=vmem, size = 0x400, scoped, tag = 'input window, operand 1, single buffered']
    #allocation7 [shape = 's32[1]{0}', space=sflag, size = 0x4, scoped, tag = 'scoped memory for tpu_custom_call.1']
    #allocation8 [shape = 'u8[98304]{0}', space=vmem, size = 0x18000, scoped, tag = 'input window, operand 3, single buffered']
    #allocation9 [shape = 'u8[32768]{0}', space=vmem, size = 0x8000, scoped, tag = 'input window, operand 4, single buffered']
    #allocation10 [shape = 's32[1]{0}', space=sflag, size = 0x4, scoped, tag = 'scoped memory for tpu_custom_call.1']
    #allocation11 [shape = 'u8[512]{0}', space=vmem, size = 0x400, scoped, tag = 'input window, operand 7, single buffered']
    #allocation12 [shape = 'u8[131072]{0}', space=vmem, size = 0x20000, scoped, tag = 'input window, operand 8, single buffered']
    #allocation13 [shape = 's32[1]{0}', space=sflag, size = 0x4, scoped, tag = 'scoped memory for tpu_custom_call.1']
    #allocation14 [shape = 'u8[131072]{0}', space=vmem, size = 0x20000, scoped, tag = 'input window, operand 10, single buffered']
    #allocation15 [shape = 'u8[16384]{0}', space=vmem, size = 0x4000, scoped, tag = 'output window, operand 0, single buffered']
    %17 = vsyncpa [#allocation4], 0
    %18 = vsyncpa [#allocation7], 0
    %19 = vsyncpa [#allocation10], 0
    %20 = vsyncpa [#allocation13], 0
    %21 = vsyncpa [#allocation5], 0
    // Predicated region
    $region2: #{tpu_custom_call.1} parent=1 // pred_check
      _
    $region3: #{tpu_custom_call.1} parent=1 // pred_check_branch
      %23 = sbr.rel (0) target = $region5
    $region4: #{tpu_custom_call.1} parent=1 // pred_region
      %25 = vsyncadd [#allocation4], 0
      %s26 = sshll.u32 %s0, 4
      %s27 = int_to_ptr.hbm [resolvable:$true] %s26
      %s28 = sshll.u32 [#allocation3], 4
      %s29 = int_to_ptr.vmem [resolvable:$true] %s28
      %34 = dma.hbm_to_vmem [thread:$0]  %s27, 512, %s29, [#allocation4], 128, 128, 8
    $region5: #{tpu_custom_call.1} parent=1 // pred_fallthru
      _
    // Predicated region
    $region6: #{tpu_custom_call.1} parent=1 // pred_check
      _
    $region7: #{tpu_custom_call.1} parent=1 // pred_check_branch
      %36 = sbr.rel (0) target = $region9
    $region8: #{tpu_custom_call.1} parent=1 // pred_region
      %38 = vsyncadd [#allocation7], 0
      %s40 = sshll.u32 %s1, 4
      %s41 = int_to_ptr.hbm [resolvable:$true] %s40
      %s42 = sshll.u32 [#allocation6], 4
      %s43 = int_to_ptr.vmem [resolvable:$true] %s42
      %45 = dma.hbm_to_vmem [thread:$0]  %s41, 16, %s43, [#allocation7]
    $region9: #{tpu_custom_call.1} parent=1 // pred_fallthru
      _
    // Predicated region
    $region10: #{tpu_custom_call.1} parent=1 // pred_check
      _
    $region11: #{tpu_custom_call.1} parent=1 // pred_check_branch
      %47 = sbr.rel (0) target = $region13
    $region12: #{tpu_custom_call.1} parent=1 // pred_region
      _
    $region13: #{tpu_custom_call.1} parent=1 // pred_fallthru
      _
    // Predicated region
    $region14: #{tpu_custom_call.1} parent=1 // pred_check
      _
    $region15: #{tpu_custom_call.1} parent=1 // pred_check_branch
      %49 = sbr.rel (0) target = $region17
    $region16: #{tpu_custom_call.1} parent=1 // pred_region
      %51 = vsyncadd [#allocation7], 0
      %s52 = sshll.u32 %s3, 4
      %s53 = int_to_ptr.hbm [resolvable:$true] %s52
      %s54 = sshll.u32 [#allocation8], 4
      %s55 = int_to_ptr.vmem [resolvable:$true] %s54
      %60 = dma.hbm_to_vmem [thread:$0]  %s53, 3072, %s55, [#allocation7], 192, 192, 12
    $region17: #{tpu_custom_call.1} parent=1 // pred_fallthru
      _
    // Predicated region
    $region18: #{tpu_custom_call.1} parent=1 // pred_check
      _
    $region19: #{tpu_custom_call.1} parent=1 // pred_check_branch
      %62 = sbr.rel (0) target = $region21
    $region20: #{tpu_custom_call.1} parent=1 // pred_region
      %64 = vsyncadd [#allocation10], 0
      %s65 = sshll.u32 %s4, 4
      %s66 = int_to_ptr.hbm [resolvable:$true] %s65
      %s67 = sshll.u32 [#allocation9], 4
      %s68 = int_to_ptr.vmem [resolvable:$true] %s67
      %73 = dma.hbm_to_vmem [thread:$0]  %s66, 1024, %s68, [#allocation10], 64, 64, 4
    $region21: #{tpu_custom_call.1} parent=1 // pred_fallthru
      _
    // Predicated region
    $region22: #{tpu_custom_call.1} parent=1 // pred_check
      _
    $region23: #{tpu_custom_call.1} parent=1 // pred_check_branch
      %75 = sbr.rel (0) target = $region25
    $region24: #{tpu_custom_call.1} parent=1 // pred_region
      _
    $region25: #{tpu_custom_call.1} parent=1 // pred_fallthru
      _
    // Predicated region
    $region26: #{tpu_custom_call.1} parent=1 // pred_check
      _
    $region27: #{tpu_custom_call.1} parent=1 // pred_check_branch
      %77 = sbr.rel (0) target = $region29
    $region28: #{tpu_custom_call.1} parent=1 // pred_region
      _
    $region29: #{tpu_custom_call.1} parent=1 // pred_fallthru
      _
    // Predicated region
    $region30: #{tpu_custom_call.1} parent=1 // pred_check
      _
    $region31: #{tpu_custom_call.1} parent=1 // pred_check_branch
      %79 = sbr.rel (0) target = $region33
    $region32: #{tpu_custom_call.1} parent=1 // pred_region
      %81 = vsyncadd [#allocation10], 0
      %s83 = sshll.u32 %s7, 4
      %s84 = int_to_ptr.hbm [resolvable:$true] %s83
      %s85 = sshll.u32 [#allocation11], 4
      %s86 = int_to_ptr.vmem [resolvable:$true] %s85
      %88 = dma.hbm_to_vmem [thread:$0]  %s84, 16, %s86, [#allocation10]
    $region33: #{tpu_custom_call.1} parent=1 // pred_fallthru
      _
    // Predicated region
    $region34: #{tpu_custom_call.1} parent=1 // pred_check
      _
    $region35: #{tpu_custom_call.1} parent=1 // pred_check_branch
      %90 = sbr.rel (0) target = $region37
    $region36: #{tpu_custom_call.1} parent=1 // pred_region
      %92 = vsyncadd [#allocation13], 0
      %s93 = sshll.u32 %s8, 4
      %s94 = int_to_ptr.hbm [resolvable:$true] %s93
      %s95 = sshll.u32 [#allocation12], 4
      %s96 = int_to_ptr.vmem [resolvable:$true] %s95
      %101 = dma.hbm_to_vmem [thread:$0]  %s94, 4096, %s96, [#allocation13], 256, 256, 16
    $region37: #{tpu_custom_call.1} parent=1 // pred_fallthru
      _
    // Predicated region
    $region38: #{tpu_custom_call.1} parent=1 // pred_check
      _
    $region39: #{tpu_custom_call.1} parent=1 // pred_check_branch
      %103 = sbr.rel (0) target = $region41
    $region40: #{tpu_custom_call.1} parent=1 // pred_region
      _
    $region41: #{tpu_custom_call.1} parent=1 // pred_fallthru
      _
    // Predicated region
    $region42: #{tpu_custom_call.1} parent=1 // pred_check
      _
    $region43: #{tpu_custom_call.1} parent=1 // pred_check_branch
      %105 = sbr.rel (0) target = $region45
    $region44: #{tpu_custom_call.1} parent=1 // pred_region
      %107 = vsyncadd [#allocation13], 0
      %s108 = sshll.u32 %s10, 4
      %s109 = int_to_ptr.hbm [resolvable:$true] %s108
      %s110 = sshll.u32 [#allocation14], 4
      %s111 = int_to_ptr.vmem [resolvable:$true] %s110
      %116 = dma.hbm_to_vmem [thread:$0]  %s109, 4096, %s111, [#allocation13], 64, 64, 4
    $region45: #{tpu_custom_call.1} parent=1 // pred_fallthru
      _
    // Predicated region
    $region46: #{tpu_custom_call.1} parent=1 // pred_check
      _
    $region47: #{tpu_custom_call.1} parent=1 // pred_check_branch
      %118 = sbr.rel (0) target = $region49
    $region48: #{tpu_custom_call.1} parent=1 // pred_region
      _
    $region49: #{tpu_custom_call.1} parent=1 // pred_fallthru
      _
    // Predicated region
    $region50: #{tpu_custom_call.1} parent=1 // pred_check
      _
    $region51: #{tpu_custom_call.1} parent=1 // pred_check_branch
      %120 = sbr.rel (0) target = $region53
    $region52: #{tpu_custom_call.1} parent=1 // pred_region
      %122 = dma.done [#allocation4], 512
    $region53: #{tpu_custom_call.1} parent=1 // pred_fallthru
      _
    // Predicated region
    $region54: #{tpu_custom_call.1} parent=1 // pred_check
      _
    $region55: #{tpu_custom_call.1} parent=1 // pred_check_branch
      %124 = sbr.rel (0) target = $region57
    $region56: #{tpu_custom_call.1} parent=1 // pred_region
      %126 = dma.done [#allocation7], 16
    $region57: #{tpu_custom_call.1} parent=1 // pred_fallthru
      _
    // Predicated region
    $region58: #{tpu_custom_call.1} parent=1 // pred_check
      _
    $region59: #{tpu_custom_call.1} parent=1 // pred_check_branch
      %128 = sbr.rel (0) target = $region61
    $region60: #{tpu_custom_call.1} parent=1 // pred_region
      %130 = dma.done [#allocation7], 3072
    $region61: #{tpu_custom_call.1} parent=1 // pred_fallthru
      _
    // Predicated region
    $region62: #{tpu_custom_call.1} parent=1 // pred_check
      _
    $region63: #{tpu_custom_call.1} parent=1 // pred_check_branch
      %132 = sbr.rel (0) target = $region65
    $region64: #{tpu_custom_call.1} parent=1 // pred_region
      %134 = dma.done [#allocation10], 1024
    $region65: #{tpu_custom_call.1} parent=1 // pred_fallthru
      _
    // Predicated region
    $region66: #{tpu_custom_call.1} parent=1 // pred_check
      _
    $region67: #{tpu_custom_call.1} parent=1 // pred_check_branch
      %136 = sbr.rel (0) target = $region69
    $region68: #{tpu_custom_call.1} parent=1 // pred_region
      %138 = dma.done [#allocation10], 16
    $region69: #{tpu_custom_call.1} parent=1 // pred_fallthru
      _
    // Predicated region
    $region70: #{tpu_custom_call.1} parent=1 // pred_check
      _
    $region71: #{tpu_custom_call.1} parent=1 // pred_check_branch
      %140 = sbr.rel (0) target = $region73
    $region72: #{tpu_custom_call.1} parent=1 // pred_region
      %142 = dma.done [#allocation13], 4096
    $region73: #{tpu_custom_call.1} parent=1 // pred_fallthru
      _
    // Predicated region
    $region74: #{tpu_custom_call.1} parent=1 // pred_check
      _
    $region75: #{tpu_custom_call.1} parent=1 // pred_check_branch
      %144 = sbr.rel (0) target = $region77
    $region76: #{tpu_custom_call.1} parent=1 // pred_region
      %146 = dma.done [#allocation13], 4096
    $region77: #{tpu_custom_call.1} parent=1 // pred_fallthru
      _
    %v148 = vld [vmem:[#allocation3] sm:$0xff]
    %v149 = vld [vmem:[#allocation3 + $0x8] sm:$0xff]
    %v150 = vld [vmem:[#allocation3 + $0x10] sm:$0xff]
    %v151 = vld [vmem:[#allocation3 + $0x18] sm:$0xff]
    %v152 = vld [vmem:[#allocation6] sm:$0x1]
    %v153 = vld [vmem:[%s2] sm:$0x1]
    %154 = vadd.xlane.f32.xlu0 %v148
    %v155 = vpop.xlane.xlu0 %154
    %156 = vadd.xlane.f32.xlu0 %v149
    %v157 = vpop.xlane.xlu0 %156
    %158 = vadd.xlane.f32.xlu0 %v150
    %v159 = vpop.xlane.xlu0 %158
    %160 = vadd.xlane.f32.xlu0 %v151
    %v161 = vpop.xlane.xlu0 %160
    %v162 = vrcp.pop 128.0
    %v163 = vmul.f32 128.0, %v162
    %v164 = vsub.f32 1.0, %v163
    %v165 = vmul.f32 %v162, %v164
    %v166 = vadd.f32 %v162, %v165
    %vm167 = vweird.f32 %v162
    %v168 = vsel %vm167, %v162, %v166
    %v169 = vmul.f32 %v155, %v168
    %v170 = vmul.f32 %v157, %v168
    %v171 = vmul.f32 %v159, %v168
    %v172 = vmul.f32 %v161, %v168
    %v173 = vsub.f32 %v148, %v169
    %v174 = vsub.f32 %v149, %v170
    %v175 = vsub.f32 %v150, %v171
    %v176 = vsub.f32 %v151, %v172
    %v177 = vmul.f32 %v173, %v173
    %v178 = vmul.f32 %v174, %v174
    %v179 = vmul.f32 %v175, %v175
    %v180 = vmul.f32 %v176, %v176
    %181 = vadd.xlane.f32.xlu0 %v177
    %v182 = vpop.xlane.xlu0 %181
    %183 = vadd.xlane.f32.xlu0 %v178
    %v184 = vpop.xlane.xlu0 %183
    %185 = vadd.xlane.f32.xlu0 %v179
    %v186 = vpop.xlane.xlu0 %185
    %187 = vadd.xlane.f32.xlu0 %v180
    %v188 = vpop.xlane.xlu0 %187
    %v189 = vmul.f32 %v182, %v168
    %v190 = vmul.f32 %v184, %v168
    %v191 = vmul.f32 %v186, %v168
    %v192 = vmul.f32 %v188, %v168
    %v193 = vadd.f32 %v189, 1e-05
    %v194 = vadd.f32 %v190, 1e-05
    %v195 = vadd.f32 %v191, 1e-05
    %v196 = vadd.f32 %v192, 1e-05
    %v197 = vrsqrt.pop %v193
    %v198 = vmul.f32 %v197, %v193
    %v199 = vmul.f32 %v198, %v197
    %v200 = vmul.f32 0.5, %v199
    %v201 = vsub.f32 1.5, %v200
    %v202 = vmul.f32 %v197, %v201
    %vm203 = vweird.f32 %v193
    %vm204 = vweird.f32 %v197
    %vm205 = vmor %vm203, %vm204
    %v206 = vsel %vm205, %v197, %v202
    %v207 = vrsqrt.pop %v194
    %v208 = vmul.f32 %v207, %v194
    %v209 = vmul.f32 %v208, %v207
    %v210 = vmul.f32 0.5, %v209
    %v211 = vsub.f32 1.5, %v210
    %v212 = vmul.f32 %v207, %v211
    %vm213 = vweird.f32 %v194
    %vm214 = vweird.f32 %v207
    %vm215 = vmor %vm213, %vm214
    %v216 = vsel %vm215, %v207, %v212
    %v217 = vrsqrt.pop %v195
    %v218 = vmul.f32 %v217, %v195
    %v219 = vmul.f32 %v218, %v217
    %v220 = vmul.f32 0.5, %v219
    %v221 = vsub.f32 1.5, %v220
    %v222 = vmul.f32 %v217, %v221
    %vm223 = vweird.f32 %v195
    %vm224 = vweird.f32 %v217
    %vm225 = vmor %vm223, %vm224
    %v226 = vsel %vm225, %v217, %v222
    %v227 = vrsqrt.pop %v196
    %v228 = vmul.f32 %v227, %v196
    %v229 = vmul.f32 %v228, %v227
    %v230 = vmul.f32 0.5, %v229
    %v231 = vsub.f32 1.5, %v230
    %v232 = vmul.f32 %v227, %v231
    %vm233 = vweird.f32 %v196
    %vm234 = vweird.f32 %v227
    %vm235 = vmor %vm233, %vm234
    %v236 = vsel %vm235, %v227, %v232
    %v237 = vmul.f32 %v173, %v206
    %v238 = vmul.f32 %v174, %v216
    %v239 = vmul.f32 %v175, %v226
    %v240 = vmul.f32 %v176, %v236
    %v242 = vperm.slane %v152, 0
    %v244 = vmul.f32 %v237, %v242
    %v245 = vmul.f32 %v238, %v242
    %v246 = vmul.f32 %v239, %v242
    %v247 = vmul.f32 %v240, %v242
    %v249 = vperm.slane %v153, 0
    %v251 = vadd.f32 %v244, %v249
    %v252 = vadd.f32 %v245, %v249
    %v253 = vadd.f32 %v246, %v249
    %v254 = vadd.f32 %v247, %v249
    %v255 = vpack.c.bf16 %v252, %v251
    %v256 = vpack.c.bf16 %v254, %v253
    %v257 = vld [vmem:[#allocation8] sm:$0xff]
    %v258 = vld [vmem:[#allocation8 + $0x8] sm:$0xf]
    %v259 = vld [vmem:[#allocation8 + $0xc] sm:$0xff]
    %v260 = vld [vmem:[#allocation8 + $0x14] sm:$0xf]
    %v261 = vld [vmem:[#allocation8 + $0x18] sm:$0xff]
    %v262 = vld [vmem:[#allocation8 + $0x20] sm:$0xf]
    %v263 = vld [vmem:[#allocation8 + $0x24] sm:$0xff]
    %v264 = vld [vmem:[#allocation8 + $0x2c] sm:$0xf]
    %v265 = vld [vmem:[#allocation8 + $0x30] sm:$0xff]
    %v266 = vld [vmem:[#allocation8 + $0x38] sm:$0xf]
    %v267 = vld [vmem:[#allocation8 + $0x3c] sm:$0xff]
    %v268 = vld [vmem:[#allocation8 + $0x44] sm:$0xf]
    %v269 = vld [vmem:[#allocation8 + $0x48] sm:$0xff]
    %v270 = vld [vmem:[#allocation8 + $0x50] sm:$0xf]
    %v271 = vld [vmem:[#allocation8 + $0x54] sm:$0xff]
    %v272 = vld [vmem:[#allocation8 + $0x5c] sm:$0xf]
    %v273 = vld [vmem:[#allocation8 + $0x60] sm:$0xff]
    %v274 = vld [vmem:[#allocation8 + $0x68] sm:$0xf]
    %v275 = vld [vmem:[#allocation8 + $0x6c] sm:$0xff]
    %v276 = vld [vmem:[#allocation8 + $0x74] sm:$0xf]
    %v277 = vld [vmem:[#allocation8 + $0x78] sm:$0xff]
    %v278 = vld [vmem:[#allocation8 + $0x80] sm:$0xf]
    %v279 = vld [vmem:[#allocation8 + $0x84] sm:$0xff]
    %v280 = vld [vmem:[#allocation8 + $0x8c] sm:$0xf]
    %v281 = vld [vmem:[#allocation8 + $0x90] sm:$0xff]
    %v282 = vld [vmem:[#allocation8 + $0x98] sm:$0xf]
    %v283 = vld [vmem:[#allocation8 + $0x9c] sm:$0xff]
    %v284 = vld [vmem:[#allocation8 + $0xa4] sm:$0xf]
    %v285 = vld [vmem:[#allocation8 + $0xa8] sm:$0xff]
    %v286 = vld [vmem:[#allocation8 + $0xb0] sm:$0xf]
    %v287 = vld [vmem:[#allocation8 + $0xb4] sm:$0xff]
    %v288 = vld [vmem:[#allocation8 + $0xbc] sm:$0xf]
    %v321 = vunpack.c.l.b16 %v257
    %v322 = vunpack.c.h.b16 %v257
    %v323 = vunpack.c.l.b16 %v258
    %v324 = vunpack.c.l.b16 %v259
    %v325 = vunpack.c.h.b16 %v259
    %v326 = vunpack.c.l.b16 %v260
    %v327 = vunpack.c.l.b16 %v261
    %v328 = vunpack.c.h.b16 %v261
    %v329 = vunpack.c.l.b16 %v262
    %v330 = vunpack.c.l.b16 %v263
    %v331 = vunpack.c.h.b16 %v263
    %v332 = vunpack.c.l.b16 %v264
    %v333 = vunpack.c.l.b16 %v265
    %v334 = vunpack.c.h.b16 %v265
    %v335 = vunpack.c.l.b16 %v266
    %v336 = vunpack.c.l.b16 %v267
    %v337 = vunpack.c.h.b16 %v267
    %v338 = vunpack.c.l.b16 %v268
    %v339 = vunpack.c.l.b16 %v269
    %v340 = vunpack.c.h.b16 %v269
    %v341 = vunpack.c.l.b16 %v270
    %v342 = vunpack.c.l.b16 %v271
    %v343 = vunpack.c.h.b16 %v271
    %v344 = vunpack.c.l.b16 %v272
    %v345 = vunpack.c.l.b16 %v273
    %v346 = vunpack.c.h.b16 %v273
    %v347 = vunpack.c.l.b16 %v274
    %v348 = vunpack.c.l.b16 %v275
    %v349 = vunpack.c.h.b16 %v275
    %v350 = vunpack.c.l.b16 %v276
    %v351 = vunpack.c.l.b16 %v277
    %v352 = vunpack.c.h.b16 %v277
    %v353 = vunpack.c.l.b16 %v278
    %v354 = vunpack.c.l.b16 %v279
    %v355 = vunpack.c.h.b16 %v279
    %v356 = vunpack.c.l.b16 %v280
    %v357 = vunpack.c.l.b16 %v281
    %v358 = vunpack.c.h.b16 %v281
    %v359 = vunpack.c.l.b16 %v282
    %v360 = vunpack.c.l.b16 %v283
    %v361 = vunpack.c.h.b16 %v283
    %v362 = vunpack.c.l.b16 %v284
    %v363 = vunpack.c.l.b16 %v285
    %v364 = vunpack.c.h.b16 %v285
    %v365 = vunpack.c.l.b16 %v286
    %v366 = vunpack.c.l.b16 %v287
    %v367 = vunpack.c.h.b16 %v287
    %v368 = vunpack.c.l.b16 %v288
    %v369 = vpack.c.b16 %v324, %v321
    %v370 = vpack.c.b16 %v325, %v322
    %v371 = vpack.c.b16 %v326, %v323
    %v372 = vpack.c.b16 %v330, %v327
    %v373 = vpack.c.b16 %v331, %v328
    %v374 = vpack.c.b16 %v332, %v329
    %v375 = vpack.c.b16 %v336, %v333
    %v376 = vpack.c.b16 %v337, %v334
    %v377 = vpack.c.b16 %v338, %v335
    %v378 = vpack.c.b16 %v342, %v339
    %v379 = vpack.c.b16 %v343, %v340
    %v380 = vpack.c.b16 %v344, %v341
    %v381 = vpack.c.b16 %v348, %v345
    %v382 = vpack.c.b16 %v349, %v346
    %v383 = vpack.c.b16 %v350, %v347
    %v384 = vpack.c.b16 %v354, %v351
    %v385 = vpack.c.b16 %v355, %v352
    %v386 = vpack.c.b16 %v356, %v353
    %v387 = vpack.c.b16 %v360, %v357
    %v388 = vpack.c.b16 %v361, %v358
    %v389 = vpack.c.b16 %v362, %v359
    %v390 = vpack.c.b16 %v366, %v363
    %v391 = vpack.c.b16 %v367, %v364
    %v392 = vpack.c.b16 %v368, %v365
    %417 = vmatpush.bf16.msra.mxu0 %v390
    %418 = vmatpush.bf16.msra.mxu0 %v387
    %419 = vmatpush.bf16.msra.mxu0 %v384
    %420 = vmatpush.bf16.msra.mxu0 %v381
    %421 = vmatpush.bf16.msra.mxu0 %v378
    %422 = vmatpush.bf16.msra.mxu0 %v375
    %423 = vmatpush.bf16.msra.mxu0 %v372
    %424 = vmatpush.bf16.msra.mxu0 %v369
    %425 = vmatmul.bf16.gmra.mxu0 %v255
    %v426 = vpop.f32.mrf.mxu0
    %v427 = vadd.f32 0.0, %v426
    %v428 = vpop.f32.mrf.mxu0
    %v429 = vadd.f32 0.0, %v428
    %430 = vmatmul.bf16.gmra.mxu0 %v256
    %v431 = vpop.f32.mrf.mxu0
    %v432 = vadd.f32 0.0, %v431
    %v433 = vpop.f32.mrf.mxu0
    %v434 = vadd.f32 0.0, %v433
    %435 = vdwg.mxu0
    %436 = vmatpush.bf16.msra.mxu0 %v391
    %437 = vmatpush.bf16.msra.mxu0 %v388
    %438 = vmatpush.bf16.msra.mxu0 %v385
    %439 = vmatpush.bf16.msra.mxu0 %v382
    %440 = vmatpush.bf16.msra.mxu0 %v379
    %441 = vmatpush.bf16.msra.mxu0 %v376
    %442 = vmatpush.bf16.msra.mxu0 %v373
    %443 = vmatpush.bf16.msra.mxu0 %v370
    %444 = vmatmul.bf16.gmra.mxu0 %v255
    %v445 = vpop.f32.mrf.mxu0
    %v446 = vadd.f32 0.0, %v445
    %v447 = vpop.f32.mrf.mxu0
    %v448 = vadd.f32 0.0, %v447
    %449 = vmatmul.bf16.gmra.mxu0 %v256
    %v450 = vpop.f32.mrf.mxu0
    %v451 = vadd.f32 0.0, %v450
    %v452 = vpop.f32.mrf.mxu0
    %v453 = vadd.f32 0.0, %v452
    %454 = vdwg.mxu0
    %455 = vmatpush.bf16.msra.mxu0 %v392
    %456 = vmatpush.bf16.msra.mxu0 %v389
    %457 = vmatpush.bf16.msra.mxu0 %v386
    %458 = vmatpush.bf16.msra.mxu0 %v383
    %459 = vmatpush.bf16.msra.mxu0 %v380
    %460 = vmatpush.bf16.msra.mxu0 %v377
    %461 = vmatpush.bf16.msra.mxu0 %v374
    %462 = vmatpush.bf16.msra.mxu0 %v371
    %463 = vmatmul.bf16.gmra.mxu0 %v255
    %v464 = vpop.f32.mrf.mxu0
    %v465 = vadd.f32 0.0, %v464
    %v466 = vpop.f32.mrf.mxu0
    %v467 = vadd.f32 0.0, %v466
    %468 = vmatmul.bf16.gmra.mxu0 %v256
    %v469 = vpop.f32.mrf.mxu0
    %v470 = vadd.f32 0.0, %v469
    %v471 = vpop.f32.mrf.mxu0
    %v472 = vadd.f32 0.0, %v471
    %473 = vdwg.mxu0
    %v474 = vpack.c.bf16 %v427, %v427
    %v475 = vpack.c.bf16 %v429, %v429
    %v476 = vpack.c.bf16 %v432, %v432
    %v477 = vpack.c.bf16 %v434, %v434
    %v478 = vpack.c.bf16 %v446, %v446
    %v479 = vpack.c.bf16 %v448, %v448
    %v480 = vpack.c.bf16 %v451, %v451
    %v481 = vpack.c.bf16 %v453, %v453
    %v482 = vpack.c.bf16 %v465, %v465
    %v483 = vpack.c.bf16 %v467, %v467
    %v484 = vpack.c.bf16 %v470, %v470
    %v485 = vpack.c.bf16 %v472, %v472
    %v488 = vunpack.c.l.b16 %v474
    %v489 = vunpack.c.l.b16 %v475
    %v490 = vpack.c.b16 %v489, %v488
    %v493 = vunpack.c.l.b16 %v478
    %v494 = vunpack.c.l.b16 %v479
    %v495 = vpack.c.b16 %v494, %v493
    %vm496 = vcmask 261120
    %v498 = vsel %vm496, %v490, 0
    %v501 = vsel %vm496, %v495, 0
    %503 = vmatpush.bf16.xpose.msra.mxu0 0
    %504 = vmatpush.bf16.xpose.msra.mxu0 0
    %505 = vmatpush.bf16.xpose.msra.mxu0 0
    %506 = vmatpush.bf16.xpose.msra.mxu0 0
    %507 = vmatpush.bf16.xpose.msra.mxu0 0
    %508 = vmatpush.bf16.xpose.msra.mxu0 0
    %509 = vmatpush.bf16.xpose.msra.mxu0 0
    %510 = vmatpush.bf16.xpose.msra.mxu0 %v501
    %511 = vmatmul.bf16.gmra.mxu0 %v498
    %v512 = vpop.f32.mrf.mxu0
    %v513 = vadd.f32 0.0, %v512
    %v514 = vpop.f32.mrf.mxu0
    %v515 = vadd.f32 0.0, %v514
    %516 = vdwg.mxu0
    %v519 = vunpack.c.l.b16 %v476
    %v520 = vunpack.c.l.b16 %v477
    %v521 = vpack.c.b16 %v520, %v519
    %v524 = vunpack.c.l.b16 %v480
    %v525 = vunpack.c.l.b16 %v481
    %v526 = vpack.c.b16 %v525, %v524
    %v528 = vsel %vm496, %v521, 0
    %v531 = vsel %vm496, %v526, 0
    %533 = vmatpush.bf16.xpose.msra.mxu0 0
    %534 = vmatpush.bf16.xpose.msra.mxu0 0
    %535 = vmatpush.bf16.xpose.msra.mxu0 0
    %536 = vmatpush.bf16.xpose.msra.mxu0 0
    %537 = vmatpush.bf16.xpose.msra.mxu0 0
    %538 = vmatpush.bf16.xpose.msra.mxu0 0
    %539 = vmatpush.bf16.xpose.msra.mxu0 0
    %540 = vmatpush.bf16.xpose.msra.mxu0 %v531
    %541 = vmatmul.bf16.gmra.mxu0 %v528
    %v542 = vpop.f32.mrf.mxu0
    %v543 = vadd.f32 0.0, %v542
    %v544 = vpop.f32.mrf.mxu0
    %v545 = vadd.f32 0.0, %v544
    %546 = vdwg.mxu0
    %vm547 = vcmask 130048
    %v548 = vsel %vm547, %v513, -inf
    %549 = vmax.xlane.f32.xlu0 %v548
    %v550 = vpop.xlane.xlu0 %549
    %v551 = vsel %vm547, %v515, -inf
    %552 = vmax.xlane.f32.xlu0 %v551
    %v553 = vpop.xlane.xlu0 %552
    %v554 = vsel %vm547, %v543, -inf
    %555 = vmax.xlane.f32.xlu0 %v554
    %v556 = vpop.xlane.xlu0 %555
    %v557 = vsel %vm547, %v545, -inf
    %558 = vmax.xlane.f32.xlu0 %v557
    %v559 = vpop.xlane.xlu0 %558
    %v560 = vsub.f32 %v513, %v550
    %v561 = vsub.f32 %v515, %v553
    %v562 = vsub.f32 %v543, %v556
    %v563 = vsub.f32 %v545, %v559
    %v564 = vmul.f32 %v560, 1.442695
    %v565 = vpow.pop %v564
    %v566 = vmul.f32 %v561, 1.442695
    %v567 = vpow.pop %v566
    %v568 = vmul.f32 %v562, 1.442695
    %v569 = vpow.pop %v568
    %v570 = vmul.f32 %v563, 1.442695
    %v571 = vpow.pop %v570
    %v572 = vsel %vm547, %v565, 0.0
    %573 = vadd.xlane.f32.xlu0 %v572
    %v574 = vpop.xlane.xlu0 %573
    %v575 = vsel %vm547, %v567, 0.0
    %576 = vadd.xlane.f32.xlu0 %v575
    %v577 = vpop.xlane.xlu0 %576
    %v578 = vsel %vm547, %v569, 0.0
    %579 = vadd.xlane.f32.xlu0 %v578
    %v580 = vpop.xlane.xlu0 %579
    %v581 = vsel %vm547, %v571, 0.0
    %582 = vadd.xlane.f32.xlu0 %v581
    %v583 = vpop.xlane.xlu0 %582
    %v584 = vpack.c.bf16 %v565, %v565
    %v585 = vpack.c.bf16 %v567, %v567
    %v586 = vpack.c.bf16 %v569, %v569
    %v587 = vpack.c.bf16 %v571, %v571
    %v590 = vunpack.c.l.b16 %v584
    %v591 = vunpack.c.l.b16 %v585
    %v592 = vpack.c.b16 %v591, %v590
    %v595 = vunpack.c.l.b16 %v482
    %v596 = vunpack.c.l.b16 %v483
    %v597 = vpack.c.b16 %v596, %v595
    %v600 = vsel %vm547, %v592, 0
    %602 = vmatpush.bf16.msra.mxu0 0
    %603 = vmatpush.bf16.msra.mxu0 0
    %604 = vmatpush.bf16.msra.mxu0 0
    %605 = vmatpush.bf16.msra.mxu0 0
    %606 = vmatpush.bf16.msra.mxu0 0
    %607 = vmatpush.bf16.msra.mxu0 0
    %608 = vmatpush.bf16.msra.mxu0 0
    %609 = vmatpush.bf16.msra.mxu0 %v597
    %610 = vmatmul.bf16.gmra.mxu0 %v600
    %v611 = vpop.f32.mrf.mxu0
    %v612 = vadd.f32 0.0, %v611
    %v613 = vpop.f32.mrf.mxu0
    %v614 = vadd.f32 0.0, %v613
    %615 = vdwg.mxu0
    %v618 = vunpack.c.l.b16 %v586
    %v619 = vunpack.c.l.b16 %v587
    %v620 = vpack.c.b16 %v619, %v618
    %v623 = vunpack.c.l.b16 %v484
    %v624 = vunpack.c.l.b16 %v485
    %v625 = vpack.c.b16 %v624, %v623
    %v628 = vsel %vm547, %v620, 0
    %630 = vmatpush.bf16.msra.mxu0 0
    %631 = vmatpush.bf16.msra.mxu0 0
    %632 = vmatpush.bf16.msra.mxu0 0
    %633 = vmatpush.bf16.msra.mxu0 0
    %634 = vmatpush.bf16.msra.mxu0 0
    %635 = vmatpush.bf16.msra.mxu0 0
    %636 = vmatpush.bf16.msra.mxu0 0
    %637 = vmatpush.bf16.msra.mxu0 %v625
    %638 = vmatmul.bf16.gmra.mxu0 %v628
    %v639 = vpop.f32.mrf.mxu0
    %v640 = vadd.f32 0.0, %v639
    %v641 = vpop.f32.mrf.mxu0
    %v642 = vadd.f32 0.0, %v641
    %643 = vdwg.mxu0
    %v644 = vrcp.pop %v574
    %v645 = vrcp.pop %v577
    %v646 = vrcp.pop %v580
    %v647 = vrcp.pop %v583
    %v648 = vmul.f32 %v612, %v644
    %v649 = vmul.f32 %v614, %v645
    %v650 = vmul.f32 %v640, %v646
    %v651 = vmul.f32 %v642, %v647
    %652 = vst.msk [vmem:[#allocation2] sm:$0xff] %vm496, %v648
    %653 = vst.msk [vmem:[#allocation2 + $0x8] sm:$0xff] %vm496, %v649
    %654 = vst.msk [vmem:[#allocation2 + $0x10] sm:$0xff] %vm496, %v650
    %655 = vst.msk [vmem:[#allocation2 + $0x18] sm:$0xff] %vm496, %v651
    %656 = vrot.lane.b32.xlu0 %v490, 96
    %v657 = vpop.permute.xlu0 %656
    %658 = vrot.lane.b32.xlu0 %v495, 96
    %v659 = vpop.permute.xlu0 %658
    %v661 = vsel %vm496, %v657, 0
    %v664 = vsel %vm496, %v659, 0
    %666 = vmatpush.bf16.xpose.msra.mxu0 0
    %667 = vmatpush.bf16.xpose.msra.mxu0 0
    %668 = vmatpush.bf16.xpose.msra.mxu0 0
    %669 = vmatpush.bf16.xpose.msra.mxu0 0
    %670 = vmatpush.bf16.xpose.msra.mxu0 0
    %671 = vmatpush.bf16.xpose.msra.mxu0 0
    %672 = vmatpush.bf16.xpose.msra.mxu0 0
    %673 = vmatpush.bf16.xpose.msra.mxu0 %v664
    %674 = vmatmul.bf16.gmra.mxu0 %v661
    %v675 = vpop.f32.mrf.mxu0
    %v676 = vadd.f32 0.0, %v675
    %v677 = vpop.f32.mrf.mxu0
    %v678 = vadd.f32 0.0, %v677
    %679 = vdwg.mxu0
    %680 = vrot.lane.b32.xlu0 %v521, 96
    %v681 = vpop.permute.xlu0 %680
    %682 = vrot.lane.b32.xlu0 %v526, 96
    %v683 = vpop.permute.xlu0 %682
    %v685 = vsel %vm496, %v681, 0
    %v688 = vsel %vm496, %v683, 0
    %690 = vmatpush.bf16.xpose.msra.mxu0 0
    %691 = vmatpush.bf16.xpose.msra.mxu0 0
    %692 = vmatpush.bf16.xpose.msra.mxu0 0
    %693 = vmatpush.bf16.xpose.msra.mxu0 0
    %694 = vmatpush.bf16.xpose.msra.mxu0 0
    %695 = vmatpush.bf16.xpose.msra.mxu0 0
    %696 = vmatpush.bf16.xpose.msra.mxu0 0
    %697 = vmatpush.bf16.xpose.msra.mxu0 %v688
    %698 = vmatmul.bf16.gmra.mxu0 %v685
    %v699 = vpop.f32.mrf.mxu0
    %v700 = vadd.f32 0.0, %v699
    %v701 = vpop.f32.mrf.mxu0
    %v702 = vadd.f32 0.0, %v701
    %703 = vdwg.mxu0
    %v704 = vsel %vm547, %v676, -inf
    %705 = vmax.xlane.f32.xlu0 %v704
    %v706 = vpop.xlane.xlu0 %705
    %v707 = vsel %vm547, %v678, -inf
    %708 = vmax.xlane.f32.xlu0 %v707
    %v709 = vpop.xlane.xlu0 %708
    %v710 = vsel %vm547, %v700, -inf
    %711 = vmax.xlane.f32.xlu0 %v710
    %v712 = vpop.xlane.xlu0 %711
    %v713 = vsel %vm547, %v702, -inf
    %714 = vmax.xlane.f32.xlu0 %v713
    %v715 = vpop.xlane.xlu0 %714
    %v716 = vsub.f32 %v676, %v706
    %v717 = vsub.f32 %v678, %v709
    %v718 = vsub.f32 %v700, %v712
    %v719 = vsub.f32 %v702, %v715
    %v720 = vmul.f32 %v716, 1.442695
    %v721 = vpow.pop %v720
    %v722 = vmul.f32 %v717, 1.442695
    %v723 = vpow.pop %v722
    %v724 = vmul.f32 %v718, 1.442695
    %v725 = vpow.pop %v724
    %v726 = vmul.f32 %v719, 1.442695
    %v727 = vpow.pop %v726
    %v728 = vsel %vm547, %v721, 0.0
    %729 = vadd.xlane.f32.xlu0 %v728
    %v730 = vpop.xlane.xlu0 %729
    %v731 = vsel %vm547, %v723, 0.0
    %732 = vadd.xlane.f32.xlu0 %v731
    %v733 = vpop.xlane.xlu0 %732
    %v734 = vsel %vm547, %v725, 0.0
    %735 = vadd.xlane.f32.xlu0 %v734
    %v736 = vpop.xlane.xlu0 %735
    %v737 = vsel %vm547, %v727, 0.0
    %738 = vadd.xlane.f32.xlu0 %v737
    %v739 = vpop.xlane.xlu0 %738
    %v740 = vpack.c.bf16 %v721, %v721
    %v741 = vpack.c.bf16 %v723, %v723
    %v742 = vpack.c.bf16 %v725, %v725
    %v743 = vpack.c.bf16 %v727, %v727
    %v746 = vunpack.c.l.b16 %v740
    %v747 = vunpack.c.l.b16 %v741
    %v748 = vpack.c.b16 %v747, %v746
    %749 = vrot.lane.b32.xlu0 %v597, 96
    %v750 = vpop.permute.xlu0 %749
    %v753 = vsel %vm547, %v748, 0
    %755 = vmatpush.bf16.msra.mxu0 0
    %756 = vmatpush.bf16.msra.mxu0 0
    %757 = vmatpush.bf16.msra.mxu0 0
    %758 = vmatpush.bf16.msra.mxu0 0
    %759 = vmatpush.bf16.msra.mxu0 0
    %760 = vmatpush.bf16.msra.mxu0 0
    %761 = vmatpush.bf16.msra.mxu0 0
    %762 = vmatpush.bf16.msra.mxu0 %v750
    %763 = vmatmul.bf16.gmra.mxu0 %v753
    %v764 = vpop.f32.mrf.mxu0
    %v765 = vadd.f32 0.0, %v764
    %v766 = vpop.f32.mrf.mxu0
    %v767 = vadd.f32 0.0, %v766
    %768 = vdwg.mxu0
    %v771 = vunpack.c.l.b16 %v742
    %v772 = vunpack.c.l.b16 %v743
    %v773 = vpack.c.b16 %v772, %v771
    %774 = vrot.lane.b32.xlu0 %v625, 96
    %v775 = vpop.permute.xlu0 %774
    %v778 = vsel %vm547, %v773, 0
    %780 = vmatpush.bf16.msra.mxu0 0
    %781 = vmatpush.bf16.msra.mxu0 0
    %782 = vmatpush.bf16.msra.mxu0 0
    %783 = vmatpush.bf16.msra.mxu0 0
    %784 = vmatpush.bf16.msra.mxu0 0
    %785 = vmatpush.bf16.msra.mxu0 0
    %786 = vmatpush.bf16.msra.mxu0 0
    %787 = vmatpush.bf16.msra.mxu0 %v775
    %788 = vmatmul.bf16.gmra.mxu0 %v778
    %v789 = vpop.f32.mrf.mxu0
    %v790 = vadd.f32 0.0, %v789
    %v791 = vpop.f32.mrf.mxu0
    %v792 = vadd.f32 0.0, %v791
    %793 = vdwg.mxu0
    %v794 = vrcp.pop %v730
    %v795 = vrcp.pop %v733
    %v796 = vrcp.pop %v736
    %v797 = vrcp.pop %v739
    %v798 = vmul.f32 %v765, %v794
    %v799 = vmul.f32 %v767, %v795
    %v800 = vmul.f32 %v790, %v796
    %v801 = vmul.f32 %v792, %v797
    %806 = vrot.lane.b32.xlu0 %v798, 32
    %v807 = vpop.permute.xlu0 %806
    %808 = vrot.lane.b32.xlu0 %v799, 32
    %v809 = vpop.permute.xlu0 %808
    %810 = vrot.lane.b32.xlu0 %v800, 32
    %v811 = vpop.permute.xlu0 %810
    %812 = vrot.lane.b32.xlu0 %v801, 32
    %v813 = vpop.permute.xlu0 %812
    %vm818 = vcmask 523520
    %819 = vst.msk [vmem:[#allocation2] sm:$0xff] %vm818, %v807
    %820 = vst.msk [vmem:[#allocation2 + $0x8] sm:$0xff] %vm818, %v809
    %821 = vst.msk [vmem:[#allocation2 + $0x10] sm:$0xff] %vm818, %v811
    %822 = vst.msk [vmem:[#allocation2 + $0x18] sm:$0xff] %vm818, %v813
    %823 = vrot.lane.b32.xlu0 %v490, 64
    %v824 = vpop.permute.xlu0 %823
    %825 = vrot.lane.b32.xlu0 %v495, 64
    %v826 = vpop.permute.xlu0 %825
    %v828 = vsel %vm496, %v824, 0
    %v831 = vsel %vm496, %v826, 0
    %833 = vmatpush.bf16.xpose.msra.mxu0 0
    %834 = vmatpush.bf16.xpose.msra.mxu0 0
    %835 = vmatpush.bf16.xpose.msra.mxu0 0
    %836 = vmatpush.bf16.xpose.msra.mxu0 0
    %837 = vmatpush.bf16.xpose.msra.mxu0 0
    %838 = vmatpush.bf16.xpose.msra.mxu0 0
    %839 = vmatpush.bf16.xpose.msra.mxu0 0
    %840 = vmatpush.bf16.xpose.msra.mxu0 %v831
    %841 = vmatmul.bf16.gmra.mxu0 %v828
    %v842 = vpop.f32.mrf.mxu0
    %v843 = vadd.f32 0.0, %v842
    %v844 = vpop.f32.mrf.mxu0
    %v845 = vadd.f32 0.0, %v844
    %846 = vdwg.mxu0
    %847 = vrot.lane.b32.xlu0 %v521, 64
    %v848 = vpop.permute.xlu0 %847
    %849 = vrot.lane.b32.xlu0 %v526, 64
    %v850 = vpop.permute.xlu0 %849
    %v852 = vsel %vm496, %v848, 0
    %v855 = vsel %vm496, %v850, 0
    %857 = vmatpush.bf16.xpose.msra.mxu0 0
    %858 = vmatpush.bf16.xpose.msra.mxu0 0
    %859 = vmatpush.bf16.xpose.msra.mxu0 0
    %860 = vmatpush.bf16.xpose.msra.mxu0 0
    %861 = vmatpush.bf16.xpose.msra.mxu0 0
    %862 = vmatpush.bf16.xpose.msra.mxu0 0
    %863 = vmatpush.bf16.xpose.msra.mxu0 0
    %864 = vmatpush.bf16.xpose.msra.mxu0 %v855
    %865 = vmatmul.bf16.gmra.mxu0 %v852
    %v866 = vpop.f32.mrf.mxu0
    %v867 = vadd.f32 0.0, %v866
    %v868 = vpop.f32.mrf.mxu0
    %v869 = vadd.f32 0.0, %v868
    %870 = vdwg.mxu0
    %v871 = vsel %vm547, %v843, -inf
    %872 = vmax.xlane.f32.xlu0 %v871
    %v873 = vpop.xlane.xlu0 %872
    %v874 = vsel %vm547, %v845, -inf
    %875 = vmax.xlane.f32.xlu0 %v874
    %v876 = vpop.xlane.xlu0 %875
    %v877 = vsel %vm547, %v867, -inf
    %878 = vmax.xlane.f32.xlu0 %v877
    %v879 = vpop.xlane.xlu0 %878
    %v880 = vsel %vm547, %v869, -inf
    %881 = vmax.xlane.f32.xlu0 %v880
    %v882 = vpop.xlane.xlu0 %881
    %v883 = vsub.f32 %v843, %v873
    %v884 = vsub.f32 %v845, %v876
    %v885 = vsub.f32 %v867, %v879
    %v886 = vsub.f32 %v869, %v882
    %v887 = vmul.f32 %v883, 1.442695
    %v888 = vpow.pop %v887
    %v889 = vmul.f32 %v884, 1.442695
    %v890 = vpow.pop %v889
    %v891 = vmul.f32 %v885, 1.442695
    %v892 = vpow.pop %v891
    %v893 = vmul.f32 %v886, 1.442695
    %v894 = vpow.pop %v893
    %v895 = vsel %vm547, %v888, 0.0
    %896 = vadd.xlane.f32.xlu0 %v895
    %v897 = vpop.xlane.xlu0 %896
    %v898 = vsel %vm547, %v890, 0.0
    %899 = vadd.xlane.f32.xlu0 %v898
    %v900 = vpop.xlane.xlu0 %899
    %v901 = vsel %vm547, %v892, 0.0
    %902 = vadd.xlane.f32.xlu0 %v901
    %v903 = vpop.xlane.xlu0 %902
    %v904 = vsel %vm547, %v894, 0.0
    %905 = vadd.xlane.f32.xlu0 %v904
    %v906 = vpop.xlane.xlu0 %905
    %v907 = vpack.c.bf16 %v888, %v888
    %v908 = vpack.c.bf16 %v890, %v890
    %v909 = vpack.c.bf16 %v892, %v892
    %v910 = vpack.c.bf16 %v894, %v894
    %v913 = vunpack.c.l.b16 %v907
    %v914 = vunpack.c.l.b16 %v908
    %v915 = vpack.c.b16 %v914, %v913
    %916 = vrot.lane.b32.xlu0 %v597, 64
    %v917 = vpop.permute.xlu0 %916
    %v920 = vsel %vm547, %v915, 0
    %922 = vmatpush.bf16.msra.mxu0 0
    %923 = vmatpush.bf16.msra.mxu0 0
    %924 = vmatpush.bf16.msra.mxu0 0
    %925 = vmatpush.bf16.msra.mxu0 0
    %926 = vmatpush.bf16.msra.mxu0 0
    %927 = vmatpush.bf16.msra.mxu0 0
    %928 = vmatpush.bf16.msra.mxu0 0
    %929 = vmatpush.bf16.msra.mxu0 %v917
    %930 = vmatmul.bf16.gmra.mxu0 %v920
    %v931 = vpop.f32.mrf.mxu0
    %v932 = vadd.f32 0.0, %v931
    %v933 = vpop.f32.mrf.mxu0
    %v934 = vadd.f32 0.0, %v933
    %935 = vdwg.mxu0
    %v938 = vunpack.c.l.b16 %v909
    %v939 = vunpack.c.l.b16 %v910
    %v940 = vpack.c.b16 %v939, %v938
    %941 = vrot.lane.b32.xlu0 %v625, 64
    %v942 = vpop.permute.xlu0 %941
    %v945 = vsel %vm547, %v940, 0
    %947 = vmatpush.bf16.msra.mxu0 0
    %948 = vmatpush.bf16.msra.mxu0 0
    %949 = vmatpush.bf16.msra.mxu0 0
    %950 = vmatpush.bf16.msra.mxu0 0
    %951 = vmatpush.bf16.msra.mxu0 0
    %952 = vmatpush.bf16.msra.mxu0 0
    %953 = vmatpush.bf16.msra.mxu0 0
    %954 = vmatpush.bf16.msra.mxu0 %v942
    %955 = vmatmul.bf16.gmra.mxu0 %v945
    %v956 = vpop.f32.mrf.mxu0
    %v957 = vadd.f32 0.0, %v956
    %v958 = vpop.f32.mrf.mxu0
    %v959 = vadd.f32 0.0, %v958
    %960 = vdwg.mxu0
    %v961 = vrcp.pop %v897
    %v962 = vrcp.pop %v900
    %v963 = vrcp.pop %v903
    %v964 = vrcp.pop %v906
    %v965 = vmul.f32 %v932, %v961
    %v966 = vmul.f32 %v934, %v962
    %v967 = vmul.f32 %v957, %v963
    %v968 = vmul.f32 %v959, %v964
    %973 = vrot.lane.b32.xlu0 %v965, 64
    %v974 = vpop.permute.xlu0 %973
    %975 = vrot.lane.b32.xlu0 %v966, 64
    %v976 = vpop.permute.xlu0 %975
    %977 = vrot.lane.b32.xlu0 %v967, 64
    %v978 = vpop.permute.xlu0 %977
    %979 = vrot.lane.b32.xlu0 %v968, 64
    %v980 = vpop.permute.xlu0 %979
    %vm985 = vcmask 785920
    %986 = vst.msk [vmem:[#allocation2] sm:$0xff] %vm985, %v974
    %987 = vst.msk [vmem:[#allocation2 + $0x8] sm:$0xff] %vm985, %v976
    %988 = vst.msk [vmem:[#allocation2 + $0x10] sm:$0xff] %vm985, %v978
    %989 = vst.msk [vmem:[#allocation2 + $0x18] sm:$0xff] %vm985, %v980
    %990 = vrot.lane.b32.xlu0 %v490, 32
    %v991 = vpop.permute.xlu0 %990
    %992 = vrot.lane.b32.xlu0 %v495, 32
    %v993 = vpop.permute.xlu0 %992
    %v995 = vsel %vm496, %v991, 0
    %v998 = vsel %vm496, %v993, 0
    %1000 = vmatpush.bf16.xpose.msra.mxu0 0
    %1001 = vmatpush.bf16.xpose.msra.mxu0 0
    %1002 = vmatpush.bf16.xpose.msra.mxu0 0
    %1003 = vmatpush.bf16.xpose.msra.mxu0 0
    %1004 = vmatpush.bf16.xpose.msra.mxu0 0
    %1005 = vmatpush.bf16.xpose.msra.mxu0 0
    %1006 = vmatpush.bf16.xpose.msra.mxu0 0
    %1007 = vmatpush.bf16.xpose.msra.mxu0 %v998
    %1008 = vmatmul.bf16.gmra.mxu0 %v995
    %v1009 = vpop.f32.mrf.mxu0
    %v1010 = vadd.f32 0.0, %v1009
    %v1011 = vpop.f32.mrf.mxu0
    %v1012 = vadd.f32 0.0, %v1011
    %1013 = vdwg.mxu0
    %1014 = vrot.lane.b32.xlu0 %v521, 32
    %v1015 = vpop.permute.xlu0 %1014
    %1016 = vrot.lane.b32.xlu0 %v526, 32
    %v1017 = vpop.permute.xlu0 %1016
    %v1019 = vsel %vm496, %v1015, 0
    %v1022 = vsel %vm496, %v1017, 0
    %1024 = vmatpush.bf16.xpose.msra.mxu0 0
    %1025 = vmatpush.bf16.xpose.msra.mxu0 0
    %1026 = vmatpush.bf16.xpose.msra.mxu0 0
    %1027 = vmatpush.bf16.xpose.msra.mxu0 0
    %1028 = vmatpush.bf16.xpose.msra.mxu0 0
    %1029 = vmatpush.bf16.xpose.msra.mxu0 0
    %1030 = vmatpush.bf16.xpose.msra.mxu0 0
    %1031 = vmatpush.bf16.xpose.msra.mxu0 %v1022
    %1032 = vmatmul.bf16.gmra.mxu0 %v1019
    %v1033 = vpop.f32.mrf.mxu0
    %v1034 = vadd.f32 0.0, %v1033
    %v1035 = vpop.f32.mrf.mxu0
    %v1036 = vadd.f32 0.0, %v1035
    %1037 = vdwg.mxu0
    %v1038 = vsel %vm547, %v1010, -inf
    %1039 = vmax.xlane.f32.xlu0 %v1038
    %v1040 = vpop.xlane.xlu0 %1039
    %v1041 = vsel %vm547, %v1012, -inf
    %1042 = vmax.xlane.f32.xlu0 %v1041
    %v1043 = vpop.xlane.xlu0 %1042
    %v1044 = vsel %vm547, %v1034, -inf
    %1045 = vmax.xlane.f32.xlu0 %v1044
    %v1046 = vpop.xlane.xlu0 %1045
    %v1047 = vsel %vm547, %v1036, -inf
    %1048 = vmax.xlane.f32.xlu0 %v1047
    %v1049 = vpop.xlane.xlu0 %1048
    %v1050 = vsub.f32 %v1010, %v1040
    %v1051 = vsub.f32 %v1012, %v1043
    %v1052 = vsub.f32 %v1034, %v1046
    %v1053 = vsub.f32 %v1036, %v1049
    %v1054 = vmul.f32 %v1050, 1.442695
    %v1055 = vpow.pop %v1054
    %v1056 = vmul.f32 %v1051, 1.442695
    %v1057 = vpow.pop %v1056
    %v1058 = vmul.f32 %v1052, 1.442695
    %v1059 = vpow.pop %v1058
    %v1060 = vmul.f32 %v1053, 1.442695
    %v1061 = vpow.pop %v1060
    %v1062 = vsel %vm547, %v1055, 0.0
    %1063 = vadd.xlane.f32.xlu0 %v1062
    %v1064 = vpop.xlane.xlu0 %1063
    %v1065 = vsel %vm547, %v1057, 0.0
    %1066 = vadd.xlane.f32.xlu0 %v1065
    %v1067 = vpop.xlane.xlu0 %1066
    %v1068 = vsel %vm547, %v1059, 0.0
    %1069 = vadd.xlane.f32.xlu0 %v1068
    %v1070 = vpop.xlane.xlu0 %1069
    %v1071 = vsel %vm547, %v1061, 0.0
    %1072 = vadd.xlane.f32.xlu0 %v1071
    %v1073 = vpop.xlane.xlu0 %1072
    %v1074 = vpack.c.bf16 %v1055, %v1055
    %v1075 = vpack.c.bf16 %v1057, %v1057
    %v1076 = vpack.c.bf16 %v1059, %v1059
    %v1077 = vpack.c.bf16 %v1061, %v1061
    %v1080 = vunpack.c.l.b16 %v1074
    %v1081 = vunpack.c.l.b16 %v1075
    %v1082 = vpack.c.b16 %v1081, %v1080
    %1083 = vrot.lane.b32.xlu0 %v597, 32
    %v1084 = vpop.permute.xlu0 %1083
    %v1087 = vsel %vm547, %v1082, 0
    %1089 = vmatpush.bf16.msra.mxu0 0
    %1090 = vmatpush.bf16.msra.mxu0 0
    %1091 = vmatpush.bf16.msra.mxu0 0
    %1092 = vmatpush.bf16.msra.mxu0 0
    %1093 = vmatpush.bf16.msra.mxu0 0
    %1094 = vmatpush.bf16.msra.mxu0 0
    %1095 = vmatpush.bf16.msra.mxu0 0
    %1096 = vmatpush.bf16.msra.mxu0 %v1084
    %1097 = vmatmul.bf16.gmra.mxu0 %v1087
    %v1098 = vpop.f32.mrf.mxu0
    %v1099 = vadd.f32 0.0, %v1098
    %v1100 = vpop.f32.mrf.mxu0
    %v1101 = vadd.f32 0.0, %v1100
    %1102 = vdwg.mxu0
    %v1105 = vunpack.c.l.b16 %v1076
    %v1106 = vunpack.c.l.b16 %v1077
    %v1107 = vpack.c.b16 %v1106, %v1105
    %1108 = vrot.lane.b32.xlu0 %v625, 32
    %v1109 = vpop.permute.xlu0 %1108
    %v1112 = vsel %vm547, %v1107, 0
    %1114 = vmatpush.bf16.msra.mxu0 0
    %1115 = vmatpush.bf16.msra.mxu0 0
    %1116 = vmatpush.bf16.msra.mxu0 0
    %1117 = vmatpush.bf16.msra.mxu0 0
    %1118 = vmatpush.bf16.msra.mxu0 0
    %1119 = vmatpush.bf16.msra.mxu0 0
    %1120 = vmatpush.bf16.msra.mxu0 0
    %1121 = vmatpush.bf16.msra.mxu0 %v1109
    %1122 = vmatmul.bf16.gmra.mxu0 %v1112
    %v1123 = vpop.f32.mrf.mxu0
    %v1124 = vadd.f32 0.0, %v1123
    %v1125 = vpop.f32.mrf.mxu0
    %v1126 = vadd.f32 0.0, %v1125
    %1127 = vdwg.mxu0
    %v1128 = vrcp.pop %v1064
    %v1129 = vrcp.pop %v1067
    %v1130 = vrcp.pop %v1070
    %v1131 = vrcp.pop %v1073
    %v1132 = vmul.f32 %v1099, %v1128
    %v1133 = vmul.f32 %v1101, %v1129
    %v1134 = vmul.f32 %v1124, %v1130
    %v1135 = vmul.f32 %v1126, %v1131
    %1140 = vrot.lane.b32.xlu0 %v1132, 96
    %v1141 = vpop.permute.xlu0 %1140
    %1142 = vrot.lane.b32.xlu0 %v1133, 96
    %v1143 = vpop.permute.xlu0 %1142
    %1144 = vrot.lane.b32.xlu0 %v1134, 96
    %v1145 = vpop.permute.xlu0 %1144
    %1146 = vrot.lane.b32.xlu0 %v1135, 96
    %v1147 = vpop.permute.xlu0 %1146
    %vm1152 = vcmask 1048320
    %1153 = vst.msk [vmem:[#allocation2] sm:$0xff] %vm1152, %v1141
    %1154 = vst.msk [vmem:[#allocation2 + $0x8] sm:$0xff] %vm1152, %v1143
    %1155 = vst.msk [vmem:[#allocation2 + $0x10] sm:$0xff] %vm1152, %v1145
    %1156 = vst.msk [vmem:[#allocation2 + $0x18] sm:$0xff] %vm1152, %v1147
    %v1157 = vld [vmem:[#allocation2] sm:$0xff]
    %v1158 = vld [vmem:[#allocation2 + $0x8] sm:$0xff]
    %v1159 = vld [vmem:[#allocation2 + $0x10] sm:$0xff]
    %v1160 = vld [vmem:[#allocation2 + $0x18] sm:$0xff]
    %v1161 = vpack.c.bf16 %v1158, %v1157
    %v1162 = vpack.c.bf16 %v1160, %v1159
    %v1163 = vld [vmem:[#allocation9] sm:$0xf]
    %v1164 = vld [vmem:[#allocation9 + $0x4] sm:$0xf]
    %v1165 = vld [vmem:[#allocation9 + $0x8] sm:$0xf]
    %v1166 = vld [vmem:[#allocation9 + $0xc] sm:$0xf]
    %v1167 = vld [vmem:[#allocation9 + $0x10] sm:$0xf]
    %v1168 = vld [vmem:[#allocation9 + $0x14] sm:$0xf]
    %v1169 = vld [vmem:[#allocation9 + $0x18] sm:$0xf]
    %v1170 = vld [vmem:[#allocation9 + $0x1c] sm:$0xf]
    %v1171 = vld [vmem:[#allocation9 + $0x20] sm:$0xf]
    %v1172 = vld [vmem:[#allocation9 + $0x24] sm:$0xf]
    %v1173 = vld [vmem:[#allocation9 + $0x28] sm:$0xf]
    %v1174 = vld [vmem:[#allocation9 + $0x2c] sm:$0xf]
    %v1175 = vld [vmem:[#allocation9 + $0x30] sm:$0xf]
    %v1176 = vld [vmem:[#allocation9 + $0x34] sm:$0xf]
    %v1177 = vld [vmem:[#allocation9 + $0x38] sm:$0xf]
    %v1178 = vld [vmem:[#allocation9 + $0x3c] sm:$0xf]
    %v1179 = vld [vmem:[%s5] sm:$0x1]
    %v1181 = vperm.slane %v1179, 0
    %v1199 = vunpack.c.l.b16 %v1163
    %v1200 = vunpack.c.l.b16 %v1164
    %v1201 = vunpack.c.l.b16 %v1165
    %v1202 = vunpack.c.l.b16 %v1166
    %v1203 = vunpack.c.l.b16 %v1167
    %v1204 = vunpack.c.l.b16 %v1168
    %v1205 = vunpack.c.l.b16 %v1169
    %v1206 = vunpack.c.l.b16 %v1170
    %v1207 = vunpack.c.l.b16 %v1171
    %v1208 = vunpack.c.l.b16 %v1172
    %v1209 = vunpack.c.l.b16 %v1173
    %v1210 = vunpack.c.l.b16 %v1174
    %v1211 = vunpack.c.l.b16 %v1175
    %v1212 = vunpack.c.l.b16 %v1176
    %v1213 = vunpack.c.l.b16 %v1177
    %v1214 = vunpack.c.l.b16 %v1178
    %v1215 = vpack.c.b16 %v1200, %v1199
    %v1216 = vpack.c.b16 %v1202, %v1201
    %v1217 = vpack.c.b16 %v1204, %v1203
    %v1218 = vpack.c.b16 %v1206, %v1205
    %v1219 = vpack.c.b16 %v1208, %v1207
    %v1220 = vpack.c.b16 %v1210, %v1209
    %v1221 = vpack.c.b16 %v1212, %v1211
    %v1222 = vpack.c.b16 %v1214, %v1213
    %1231 = vmatpush.bf16.msra.mxu0 %v1222
    %1232 = vmatpush.bf16.msra.mxu0 %v1221
    %1233 = vmatpush.bf16.msra.mxu0 %v1220
    %1234 = vmatpush.bf16.msra.mxu0 %v1219
    %1235 = vmatpush.bf16.msra.mxu0 %v1218
    %1236 = vmatpush.bf16.msra.mxu0 %v1217
    %1237 = vmatpush.bf16.msra.mxu0 %v1216
    %1238 = vmatpush.bf16.msra.mxu0 %v1215
    %1239 = vmatmul.bf16.gmra.mxu0 %v1161
    %v1240 = vpop.f32.mrf.mxu0
    %v1241 = vadd.f32 %v1181, %v1240
    %v1242 = vpop.f32.mrf.mxu0
    %v1243 = vadd.f32 %v1181, %v1242
    %1244 = vmatmul.bf16.gmra.mxu0 %v1162
    %v1245 = vpop.f32.mrf.mxu0
    %v1246 = vadd.f32 %v1181, %v1245
    %v1247 = vpop.f32.mrf.mxu0
    %v1248 = vadd.f32 %v1181, %v1247
    %1249 = vdwg.mxu0
    %v1250 = vadd.f32 %v148, %v1241
    %v1251 = vadd.f32 %v149, %v1243
    %v1252 = vadd.f32 %v150, %v1246
    %v1253 = vadd.f32 %v151, %v1248
    %v1254 = vld [vmem:[%s6] sm:$0x1]
    %v1255 = vld [vmem:[#allocation11] sm:$0x1]
    %1256 = vadd.xlane.f32.xlu0 %v1250
    %v1257 = vpop.xlane.xlu0 %1256
    %1258 = vadd.xlane.f32.xlu0 %v1251
    %v1259 = vpop.xlane.xlu0 %1258
    %1260 = vadd.xlane.f32.xlu0 %v1252
    %v1261 = vpop.xlane.xlu0 %1260
    %1262 = vadd.xlane.f32.xlu0 %v1253
    %v1263 = vpop.xlane.xlu0 %1262
    %v1264 = vmul.f32 %v1257, %v168
    %v1265 = vmul.f32 %v1259, %v168
    %v1266 = vmul.f32 %v1261, %v168
    %v1267 = vmul.f32 %v1263, %v168
    %v1268 = vsub.f32 %v1250, %v1264
    %v1269 = vsub.f32 %v1251, %v1265
    %v1270 = vsub.f32 %v1252, %v1266
    %v1271 = vsub.f32 %v1253, %v1267
    %v1272 = vmul.f32 %v1268, %v1268
    %v1273 = vmul.f32 %v1269, %v1269
    %v1274 = vmul.f32 %v1270, %v1270
    %v1275 = vmul.f32 %v1271, %v1271
    %1276 = vadd.xlane.f32.xlu0 %v1272
    %v1277 = vpop.xlane.xlu0 %1276
    %1278 = vadd.xlane.f32.xlu0 %v1273
    %v1279 = vpop.xlane.xlu0 %1278
    %1280 = vadd.xlane.f32.xlu0 %v1274
    %v1281 = vpop.xlane.xlu0 %1280
    %1282 = vadd.xlane.f32.xlu0 %v1275
    %v1283 = vpop.xlane.xlu0 %1282
    %v1284 = vmul.f32 %v1277, %v168
    %v1285 = vmul.f32 %v1279, %v168
    %v1286 = vmul.f32 %v1281, %v168
    %v1287 = vmul.f32 %v1283, %v168
    %v1288 = vadd.f32 %v1284, 1e-05
    %v1289 = vadd.f32 %v1285, 1e-05
    %v1290 = vadd.f32 %v1286, 1e-05
    %v1291 = vadd.f32 %v1287, 1e-05
    %v1292 = vrsqrt.pop %v1288
    %v1293 = vmul.f32 %v1292, %v1288
    %v1294 = vmul.f32 %v1293, %v1292
    %v1295 = vmul.f32 0.5, %v1294
    %v1296 = vsub.f32 1.5, %v1295
    %v1297 = vmul.f32 %v1292, %v1296
    %vm1298 = vweird.f32 %v1288
    %vm1299 = vweird.f32 %v1292
    %vm1300 = vmor %vm1298, %vm1299
    %v1301 = vsel %vm1300, %v1292, %v1297
    %v1302 = vrsqrt.pop %v1289
    %v1303 = vmul.f32 %v1302, %v1289
    %v1304 = vmul.f32 %v1303, %v1302
    %v1305 = vmul.f32 0.5, %v1304
    %v1306 = vsub.f32 1.5, %v1305
    %v1307 = vmul.f32 %v1302, %v1306
    %vm1308 = vweird.f32 %v1289
    %vm1309 = vweird.f32 %v1302
    %vm1310 = vmor %vm1308, %vm1309
    %v1311 = vsel %vm1310, %v1302, %v1307
    %v1312 = vrsqrt.pop %v1290
    %v1313 = vmul.f32 %v1312, %v1290
    %v1314 = vmul.f32 %v1313, %v1312
    %v1315 = vmul.f32 0.5, %v1314
    %v1316 = vsub.f32 1.5, %v1315
    %v1317 = vmul.f32 %v1312, %v1316
    %vm1318 = vweird.f32 %v1290
    %vm1319 = vweird.f32 %v1312
    %vm1320 = vmor %vm1318, %vm1319
    %v1321 = vsel %vm1320, %v1312, %v1317
    %v1322 = vrsqrt.pop %v1291
    %v1323 = vmul.f32 %v1322, %v1291
    %v1324 = vmul.f32 %v1323, %v1322
    %v1325 = vmul.f32 0.5, %v1324
    %v1326 = vsub.f32 1.5, %v1325
    %v1327 = vmul.f32 %v1322, %v1326
    %vm1328 = vweird.f32 %v1291
    %vm1329 = vweird.f32 %v1322
    %vm1330 = vmor %vm1328, %vm1329
    %v1331 = vsel %vm1330, %v1322, %v1327
    %v1332 = vmul.f32 %v1268, %v1301
    %v1333 = vmul.f32 %v1269, %v1311
    %v1334 = vmul.f32 %v1270, %v1321
    %v1335 = vmul.f32 %v1271, %v1331
    %v1337 = vperm.slane %v1254, 0
    %v1339 = vmul.f32 %v1332, %v1337
    %v1340 = vmul.f32 %v1333, %v1337
    %v1341 = vmul.f32 %v1334, %v1337
    %v1342 = vmul.f32 %v1335, %v1337
    %v1344 = vperm.slane %v1255, 0
    %v1346 = vadd.f32 %v1339, %v1344
    %v1347 = vadd.f32 %v1340, %v1344
    %v1348 = vadd.f32 %v1341, %v1344
    %v1349 = vadd.f32 %v1342, %v1344
    %v1350 = vpack.c.bf16 %v1347, %v1346
    %v1351 = vpack.c.bf16 %v1349, %v1348
    %v1352 = vld [vmem:[#allocation12] sm:$0xff]
    %v1353 = vld [vmem:[#allocation12 + $0x8] sm:$0xff]
    %v1354 = vld [vmem:[#allocation12 + $0x10] sm:$0xff]
    %v1355 = vld [vmem:[#allocation12 + $0x18] sm:$0xff]
    %v1356 = vld [vmem:[#allocation12 + $0x20] sm:$0xff]
    %v1357 = vld [vmem:[#allocation12 + $0x28] sm:$0xff]
    %v1358 = vld [vmem:[#allocation12 + $0x30] sm:$0xff]
    %v1359 = vld [vmem:[#allocation12 + $0x38] sm:$0xff]
    %v1360 = vld [vmem:[#allocation12 + $0x40] sm:$0xff]
    %v1361 = vld [vmem:[#allocation12 + $0x48] sm:$0xff]
    %v1362 = vld [vmem:[#allocation12 + $0x50] sm:$0xff]
    %v1363 = vld [vmem:[#allocation12 + $0x58] sm:$0xff]
    %v1364 = vld [vmem:[#allocation12 + $0x60] sm:$0xff]
    %v1365 = vld [vmem:[#allocation12 + $0x68] sm:$0xff]
    %v1366 = vld [vmem:[#allocation12 + $0x70] sm:$0xff]
    %v1367 = vld [vmem:[#allocation12 + $0x78] sm:$0xff]
    %v1368 = vld [vmem:[#allocation12 + $0x80] sm:$0xff]
    %v1369 = vld [vmem:[#allocation12 + $0x88] sm:$0xff]
    %v1370 = vld [vmem:[#allocation12 + $0x90] sm:$0xff]
    %v1371 = vld [vmem:[#allocation12 + $0x98] sm:$0xff]
    %v1372 = vld [vmem:[#allocation12 + $0xa0] sm:$0xff]
    %v1373 = vld [vmem:[#allocation12 + $0xa8] sm:$0xff]
    %v1374 = vld [vmem:[#allocation12 + $0xb0] sm:$0xff]
    %v1375 = vld [vmem:[#allocation12 + $0xb8] sm:$0xff]
    %v1376 = vld [vmem:[#allocation12 + $0xc0] sm:$0xff]
    %v1377 = vld [vmem:[#allocation12 + $0xc8] sm:$0xff]
    %v1378 = vld [vmem:[#allocation12 + $0xd0] sm:$0xff]
    %v1379 = vld [vmem:[#allocation12 + $0xd8] sm:$0xff]
    %v1380 = vld [vmem:[#allocation12 + $0xe0] sm:$0xff]
    %v1381 = vld [vmem:[#allocation12 + $0xe8] sm:$0xff]
    %v1382 = vld [vmem:[#allocation12 + $0xf0] sm:$0xff]
    %v1383 = vld [vmem:[#allocation12 + $0xf8] sm:$0xff]
    %v1384 = vld [vmem:[%s9] sm:$0xf]
    %v1386 = vperm.slane %v1384, 0
    %v1387 = vperm.slane %v1384, 1
    %v1388 = vperm.slane %v1384, 2
    %v1389 = vperm.slane %v1384, 3
    %v1426 = vunpack.c.l.b16 %v1352
    %v1427 = vunpack.c.h.b16 %v1352
    %v1428 = vunpack.c.l.b16 %v1353
    %v1429 = vunpack.c.h.b16 %v1353
    %v1430 = vunpack.c.l.b16 %v1354
    %v1431 = vunpack.c.h.b16 %v1354
    %v1432 = vunpack.c.l.b16 %v1355
    %v1433 = vunpack.c.h.b16 %v1355
    %v1434 = vunpack.c.l.b16 %v1356
    %v1435 = vunpack.c.h.b16 %v1356
    %v1436 = vunpack.c.l.b16 %v1357
    %v1437 = vunpack.c.h.b16 %v1357
    %v1438 = vunpack.c.l.b16 %v1358
    %v1439 = vunpack.c.h.b16 %v1358
    %v1440 = vunpack.c.l.b16 %v1359
    %v1441 = vunpack.c.h.b16 %v1359
    %v1442 = vunpack.c.l.b16 %v1360
    %v1443 = vunpack.c.h.b16 %v1360
    %v1444 = vunpack.c.l.b16 %v1361
    %v1445 = vunpack.c.h.b16 %v1361
    %v1446 = vunpack.c.l.b16 %v1362
    %v1447 = vunpack.c.h.b16 %v1362
    %v1448 = vunpack.c.l.b16 %v1363
    %v1449 = vunpack.c.h.b16 %v1363
    %v1450 = vunpack.c.l.b16 %v1364
    %v1451 = vunpack.c.h.b16 %v1364
    %v1452 = vunpack.c.l.b16 %v1365
    %v1453 = vunpack.c.h.b16 %v1365
    %v1454 = vunpack.c.l.b16 %v1366
    %v1455 = vunpack.c.h.b16 %v1366
    %v1456 = vunpack.c.l.b16 %v1367
    %v1457 = vunpack.c.h.b16 %v1367
    %v1458 = vunpack.c.l.b16 %v1368
    %v1459 = vunpack.c.h.b16 %v1368
    %v1460 = vunpack.c.l.b16 %v1369
    %v1461 = vunpack.c.h.b16 %v1369
    %v1462 = vunpack.c.l.b16 %v1370
    %v1463 = vunpack.c.h.b16 %v1370
    %v1464 = vunpack.c.l.b16 %v1371
    %v1465 = vunpack.c.h.b16 %v1371
    %v1466 = vunpack.c.l.b16 %v1372
    %v1467 = vunpack.c.h.b16 %v1372
    %v1468 = vunpack.c.l.b16 %v1373
    %v1469 = vunpack.c.h.b16 %v1373
    %v1470 = vunpack.c.l.b16 %v1374
    %v1471 = vunpack.c.h.b16 %v1374
    %v1472 = vunpack.c.l.b16 %v1375
    %v1473 = vunpack.c.h.b16 %v1375
    %v1474 = vunpack.c.l.b16 %v1376
    %v1475 = vunpack.c.h.b16 %v1376
    %v1476 = vunpack.c.l.b16 %v1377
    %v1477 = vunpack.c.h.b16 %v1377
    %v1478 = vunpack.c.l.b16 %v1378
    %v1479 = vunpack.c.h.b16 %v1378
    %v1480 = vunpack.c.l.b16 %v1379
    %v1481 = vunpack.c.h.b16 %v1379
    %v1482 = vunpack.c.l.b16 %v1380
    %v1483 = vunpack.c.h.b16 %v1380
    %v1484 = vunpack.c.l.b16 %v1381
    %v1485 = vunpack.c.h.b16 %v1381
    %v1486 = vunpack.c.l.b16 %v1382
    %v1487 = vunpack.c.h.b16 %v1382
    %v1488 = vunpack.c.l.b16 %v1383
    %v1489 = vunpack.c.h.b16 %v1383
    %v1490 = vpack.c.b16 %v1430, %v1426
    %v1491 = vpack.c.b16 %v1431, %v1427
    %v1492 = vpack.c.b16 %v1432, %v1428
    %v1493 = vpack.c.b16 %v1433, %v1429
    %v1494 = vpack.c.b16 %v1438, %v1434
    %v1495 = vpack.c.b16 %v1439, %v1435
    %v1496 = vpack.c.b16 %v1440, %v1436
    %v1497 = vpack.c.b16 %v1441, %v1437
    %v1498 = vpack.c.b16 %v1446, %v1442
    %v1499 = vpack.c.b16 %v1447, %v1443
    %v1500 = vpack.c.b16 %v1448, %v1444
    %v1501 = vpack.c.b16 %v1449, %v1445
    %v1502 = vpack.c.b16 %v1454, %v1450
    %v1503 = vpack.c.b16 %v1455, %v1451
    %v1504 = vpack.c.b16 %v1456, %v1452
    %v1505 = vpack.c.b16 %v1457, %v1453
    %v1506 = vpack.c.b16 %v1462, %v1458
    %v1507 = vpack.c.b16 %v1463, %v1459
    %v1508 = vpack.c.b16 %v1464, %v1460
    %v1509 = vpack.c.b16 %v1465, %v1461
    %v1510 = vpack.c.b16 %v1470, %v1466
    %v1511 = vpack.c.b16 %v1471, %v1467
    %v1512 = vpack.c.b16 %v1472, %v1468
    %v1513 = vpack.c.b16 %v1473, %v1469
    %v1514 = vpack.c.b16 %v1478, %v1474
    %v1515 = vpack.c.b16 %v1479, %v1475
    %v1516 = vpack.c.b16 %v1480, %v1476
    %v1517 = vpack.c.b16 %v1481, %v1477
    %v1518 = vpack.c.b16 %v1486, %v1482
    %v1519 = vpack.c.b16 %v1487, %v1483
    %v1520 = vpack.c.b16 %v1488, %v1484
    %v1521 = vpack.c.b16 %v1489, %v1485
    %1554 = vmatpush.bf16.msra.mxu0 %v1518
    %1555 = vmatpush.bf16.msra.mxu0 %v1514
    %1556 = vmatpush.bf16.msra.mxu0 %v1510
    %1557 = vmatpush.bf16.msra.mxu0 %v1506
    %1558 = vmatpush.bf16.msra.mxu0 %v1502
    %1559 = vmatpush.bf16.msra.mxu0 %v1498
    %1560 = vmatpush.bf16.msra.mxu0 %v1494
    %1561 = vmatpush.bf16.msra.mxu0 %v1490
    %1562 = vmatmul.bf16.gmra.mxu0 %v1350
    %v1563 = vpop.f32.mrf.mxu0
    %v1564 = vadd.f32 %v1386, %v1563
    %v1565 = vpop.f32.mrf.mxu0
    %v1566 = vadd.f32 %v1386, %v1565
    %1567 = vmatmul.bf16.gmra.mxu0 %v1351
    %v1568 = vpop.f32.mrf.mxu0
    %v1569 = vadd.f32 %v1386, %v1568
    %v1570 = vpop.f32.mrf.mxu0
    %v1571 = vadd.f32 %v1386, %v1570
    %1572 = vdwg.mxu0
    %1573 = vmatpush.bf16.msra.mxu0 %v1519
    %1574 = vmatpush.bf16.msra.mxu0 %v1515
    %1575 = vmatpush.bf16.msra.mxu0 %v1511
    %1576 = vmatpush.bf16.msra.mxu0 %v1507
    %1577 = vmatpush.bf16.msra.mxu0 %v1503
    %1578 = vmatpush.bf16.msra.mxu0 %v1499
    %1579 = vmatpush.bf16.msra.mxu0 %v1495
    %1580 = vmatpush.bf16.msra.mxu0 %v1491
    %1581 = vmatmul.bf16.gmra.mxu0 %v1350
    %v1582 = vpop.f32.mrf.mxu0
    %v1583 = vadd.f32 %v1387, %v1582
    %v1584 = vpop.f32.mrf.mxu0
    %v1585 = vadd.f32 %v1387, %v1584
    %1586 = vmatmul.bf16.gmra.mxu0 %v1351
    %v1587 = vpop.f32.mrf.mxu0
    %v1588 = vadd.f32 %v1387, %v1587
    %v1589 = vpop.f32.mrf.mxu0
    %v1590 = vadd.f32 %v1387, %v1589
    %1591 = vdwg.mxu0
    %1592 = vmatpush.bf16.msra.mxu0 %v1520
    %1593 = vmatpush.bf16.msra.mxu0 %v1516
    %1594 = vmatpush.bf16.msra.mxu0 %v1512
    %1595 = vmatpush.bf16.msra.mxu0 %v1508
    %1596 = vmatpush.bf16.msra.mxu0 %v1504
    %1597 = vmatpush.bf16.msra.mxu0 %v1500
    %1598 = vmatpush.bf16.msra.mxu0 %v1496
    %1599 = vmatpush.bf16.msra.mxu0 %v1492
    %1600 = vmatmul.bf16.gmra.mxu0 %v1350
    %v1601 = vpop.f32.mrf.mxu0
    %v1602 = vadd.f32 %v1388, %v1601
    %v1603 = vpop.f32.mrf.mxu0
    %v1604 = vadd.f32 %v1388, %v1603
    %1605 = vmatmul.bf16.gmra.mxu0 %v1351
    %v1606 = vpop.f32.mrf.mxu0
    %v1607 = vadd.f32 %v1388, %v1606
    %v1608 = vpop.f32.mrf.mxu0
    %v1609 = vadd.f32 %v1388, %v1608
    %1610 = vdwg.mxu0
    %1611 = vmatpush.bf16.msra.mxu0 %v1521
    %1612 = vmatpush.bf16.msra.mxu0 %v1517
    %1613 = vmatpush.bf16.msra.mxu0 %v1513
    %1614 = vmatpush.bf16.msra.mxu0 %v1509
    %1615 = vmatpush.bf16.msra.mxu0 %v1505
    %1616 = vmatpush.bf16.msra.mxu0 %v1501
    %1617 = vmatpush.bf16.msra.mxu0 %v1497
    %1618 = vmatpush.bf16.msra.mxu0 %v1493
    %1619 = vmatmul.bf16.gmra.mxu0 %v1350
    %v1620 = vpop.f32.mrf.mxu0
    %v1621 = vadd.f32 %v1389, %v1620
    %v1622 = vpop.f32.mrf.mxu0
    %v1623 = vadd.f32 %v1389, %v1622
    %1624 = vmatmul.bf16.gmra.mxu0 %v1351
    %v1625 = vpop.f32.mrf.mxu0
    %v1626 = vadd.f32 %v1389, %v1625
    %v1627 = vpop.f32.mrf.mxu0
    %v1628 = vadd.f32 %v1389, %v1627
    %1629 = vdwg.mxu0
    %v1630 = vmul.f32 %v1564, 0.5
    %v1631 = vmul.f32 %v1583, 0.5
    %v1632 = vmul.f32 %v1602, 0.5
    %v1633 = vmul.f32 %v1621, 0.5
    %v1634 = vmul.f32 %v1566, 0.5
    %v1635 = vmul.f32 %v1585, 0.5
    %v1636 = vmul.f32 %v1604, 0.5
    %v1637 = vmul.f32 %v1623, 0.5
    %v1638 = vmul.f32 %v1569, 0.5
    %v1639 = vmul.f32 %v1588, 0.5
    %v1640 = vmul.f32 %v1607, 0.5
    %v1641 = vmul.f32 %v1626, 0.5
    %v1642 = vmul.f32 %v1571, 0.5
    %v1643 = vmul.f32 %v1590, 0.5
    %v1644 = vmul.f32 %v1609, 0.5
    %v1645 = vmul.f32 %v1628, 0.5
    %v1646 = vmul.f32 %v1564, 0.70710677
    %v1647 = vmul.f32 %v1583, 0.70710677
    %v1648 = vmul.f32 %v1602, 0.70710677
    %v1649 = vmul.f32 %v1621, 0.70710677
    %v1650 = vmul.f32 %v1566, 0.70710677
    %v1651 = vmul.f32 %v1585, 0.70710677
    %v1652 = vmul.f32 %v1604, 0.70710677
    %v1653 = vmul.f32 %v1623, 0.70710677
    %v1654 = vmul.f32 %v1569, 0.70710677
    %v1655 = vmul.f32 %v1588, 0.70710677
    %v1656 = vmul.f32 %v1607, 0.70710677
    %v1657 = vmul.f32 %v1626, 0.70710677
    %v1658 = vmul.f32 %v1571, 0.70710677
    %v1659 = vmul.f32 %v1590, 0.70710677
    %v1660 = vmul.f32 %v1609, 0.70710677
    %v1661 = vmul.f32 %v1628, 0.70710677
    %v1662 = vmul.f32 %v1646, %v1646
    %v1663 = vmin.f32 16.0, %v1662
    %v1664 = vmul.f32 %v1663, 2.1237322e-06
    %v1665 = vadd.f32 %v1664, 0.00028619796
    %v1666 = vmul.f32 %v1663, %v1665
    %v1667 = vadd.f32 %v1666, 0.0036580483
    %v1668 = vmul.f32 %v1663, %v1667
    %v1669 = vadd.f32 %v1668, 0.05243302
    %v1670 = vmul.f32 %v1663, %v1669
    %v1671 = vadd.f32 %v1670, 0.18741608
    %v1672 = vmul.f32 %v1663, %v1671
    %v1673 = vadd.f32 %v1672, 1.1283791
    %v1674 = vmul.f32 %v1646, %v1673
    %v1675 = vmul.f32 %v1663, 3.8918573e-05
    %v1676 = vadd.f32 %v1675, 0.001143296
    %v1677 = vmul.f32 %v1663, %v1676
    %v1678 = vadd.f32 %v1677, 0.014752088
    %v1679 = vmul.f32 %v1663, %v1678
    %v1680 = vadd.f32 %v1679, 0.112945676
    %v1681 = vmul.f32 %v1663, %v1680
    %v1682 = vadd.f32 %v1681, 0.4994258
    %v1683 = vmul.f32 %v1663, %v1682
    %v1684 = vadd.f32 %v1683, 1.0
    %v1685 = vrcp.pop %v1684
    %v1686 = vmul.f32 %v1684, %v1685
    %v1687 = vsub.f32 1.0, %v1686
    %v1688 = vmul.f32 %v1685, %v1687
    %v1689 = vadd.f32 %v1685, %v1688
    %vm1690 = vweird.f32 %v1684
    %vm1691 = vweird.f32 %v1685
    %vm1692 = vmor %vm1690, %vm1691
    %v1693 = vsel %vm1692, %v1685, %v1689
    %v1694 = vand.u32 2147483647, %v1684
    %vm1695 = vcmp.eq.f32.partialorder %v1694, 8.507059e+37
    %v1696 = vand.u32 %v1684, 2147483648
    %v1697 = vor.u32 1.1754944e-38, %v1696
    %v1698 = vsel %vm1695, %v1697, %v1693
    %v1699 = vmul.f32 %v1674, %v1698
    %v1700 = vmin.f32 %v1699, 1.0
    %v1701 = vmax.f32 %v1700, -1.0
    %v1702 = vmul.f32 %v1647, %v1647
    %v1703 = vmin.f32 16.0, %v1702
    %v1704 = vmul.f32 %v1703, 2.1237322e-06
    %v1705 = vadd.f32 %v1704, 0.00028619796
    %v1706 = vmul.f32 %v1703, %v1705
    %v1707 = vadd.f32 %v1706, 0.0036580483
    %v1708 = vmul.f32 %v1703, %v1707
    %v1709 = vadd.f32 %v1708, 0.05243302
    %v1710 = vmul.f32 %v1703, %v1709
    %v1711 = vadd.f32 %v1710, 0.18741608
    %v1712 = vmul.f32 %v1703, %v1711
    %v1713 = vadd.f32 %v1712, 1.1283791
    %v1714 = vmul.f32 %v1647, %v1713
    %v1715 = vmul.f32 %v1703, 3.8918573e-05
    %v1716 = vadd.f32 %v1715, 0.001143296
    %v1717 = vmul.f32 %v1703, %v1716
    %v1718 = vadd.f32 %v1717, 0.014752088
    %v1719 = vmul.f32 %v1703, %v1718
    %v1720 = vadd.f32 %v1719, 0.112945676
    %v1721 = vmul.f32 %v1703, %v1720
    %v1722 = vadd.f32 %v1721, 0.4994258
    %v1723 = vmul.f32 %v1703, %v1722
    %v1724 = vadd.f32 %v1723, 1.0
    %v1725 = vrcp.pop %v1724
    %v1726 = vmul.f32 %v1724, %v1725
    %v1727 = vsub.f32 1.0, %v1726
    %v1728 = vmul.f32 %v1725, %v1727
    %v1729 = vadd.f32 %v1725, %v1728
    %vm1730 = vweird.f32 %v1724
    %vm1731 = vweird.f32 %v1725
    %vm1732 = vmor %vm1730, %vm1731
    %v1733 = vsel %vm1732, %v1725, %v1729
    %v1734 = vand.u32 2147483647, %v1724
    %vm1735 = vcmp.eq.f32.partialorder %v1734, 8.507059e+37
    %v1736 = vand.u32 %v1724, 2147483648
    %v1737 = vor.u32 1.1754944e-38, %v1736
    %v1738 = vsel %vm1735, %v1737, %v1733
    %v1739 = vmul.f32 %v1714, %v1738
    %v1740 = vmin.f32 %v1739, 1.0
    %v1741 = vmax.f32 %v1740, -1.0
    %v1742 = vmul.f32 %v1648, %v1648
    %v1743 = vmin.f32 16.0, %v1742
    %v1744 = vmul.f32 %v1743, 2.1237322e-06
    %v1745 = vadd.f32 %v1744, 0.00028619796
    %v1746 = vmul.f32 %v1743, %v1745
    %v1747 = vadd.f32 %v1746, 0.0036580483
    %v1748 = vmul.f32 %v1743, %v1747
    %v1749 = vadd.f32 %v1748, 0.05243302
    %v1750 = vmul.f32 %v1743, %v1749
    %v1751 = vadd.f32 %v1750, 0.18741608
    %v1752 = vmul.f32 %v1743, %v1751
    %v1753 = vadd.f32 %v1752, 1.1283791
    %v1754 = vmul.f32 %v1648, %v1753
    %v1755 = vmul.f32 %v1743, 3.8918573e-05
    %v1756 = vadd.f32 %v1755, 0.001143296
    %v1757 = vmul.f32 %v1743, %v1756
    %v1758 = vadd.f32 %v1757, 0.014752088
    %v1759 = vmul.f32 %v1743, %v1758
    %v1760 = vadd.f32 %v1759, 0.112945676
    %v1761 = vmul.f32 %v1743, %v1760
    %v1762 = vadd.f32 %v1761, 0.4994258
    %v1763 = vmul.f32 %v1743, %v1762
    %v1764 = vadd.f32 %v1763, 1.0
    %v1765 = vrcp.pop %v1764
    %v1766 = vmul.f32 %v1764, %v1765
    %v1767 = vsub.f32 1.0, %v1766
    %v1768 = vmul.f32 %v1765, %v1767
    %v1769 = vadd.f32 %v1765, %v1768
    %vm1770 = vweird.f32 %v1764
    %vm1771 = vweird.f32 %v1765
    %vm1772 = vmor %vm1770, %vm1771
    %v1773 = vsel %vm1772, %v1765, %v1769
    %v1774 = vand.u32 2147483647, %v1764
    %vm1775 = vcmp.eq.f32.partialorder %v1774, 8.507059e+37
    %v1776 = vand.u32 %v1764, 2147483648
    %v1777 = vor.u32 1.1754944e-38, %v1776
    %v1778 = vsel %vm1775, %v1777, %v1773
    %v1779 = vmul.f32 %v1754, %v1778
    %v1780 = vmin.f32 %v1779, 1.0
    %v1781 = vmax.f32 %v1780, -1.0
    %v1782 = vmul.f32 %v1649, %v1649
    %v1783 = vmin.f32 16.0, %v1782
    %v1784 = vmul.f32 %v1783, 2.1237322e-06
    %v1785 = vadd.f32 %v1784, 0.00028619796
    %v1786 = vmul.f32 %v1783, %v1785
    %v1787 = vadd.f32 %v1786, 0.0036580483
    %v1788 = vmul.f32 %v1783, %v1787
    %v1789 = vadd.f32 %v1788, 0.05243302
    %v1790 = vmul.f32 %v1783, %v1789
    %v1791 = vadd.f32 %v1790, 0.18741608
    %v1792 = vmul.f32 %v1783, %v1791
    %v1793 = vadd.f32 %v1792, 1.1283791
    %v1794 = vmul.f32 %v1649, %v1793
    %v1795 = vmul.f32 %v1783, 3.8918573e-05
    %v1796 = vadd.f32 %v1795, 0.001143296
    %v1797 = vmul.f32 %v1783, %v1796
    %v1798 = vadd.f32 %v1797, 0.014752088
    %v1799 = vmul.f32 %v1783, %v1798
    %v1800 = vadd.f32 %v1799, 0.112945676
    %v1801 = vmul.f32 %v1783, %v1800
    %v1802 = vadd.f32 %v1801, 0.4994258
    %v1803 = vmul.f32 %v1783, %v1802
    %v1804 = vadd.f32 %v1803, 1.0
    %v1805 = vrcp.pop %v1804
    %v1806 = vmul.f32 %v1804, %v1805
    %v1807 = vsub.f32 1.0, %v1806
    %v1808 = vmul.f32 %v1805, %v1807
    %v1809 = vadd.f32 %v1805, %v1808
    %vm1810 = vweird.f32 %v1804
    %vm1811 = vweird.f32 %v1805
    %vm1812 = vmor %vm1810, %vm1811
    %v1813 = vsel %vm1812, %v1805, %v1809
    %v1814 = vand.u32 2147483647, %v1804
    %vm1815 = vcmp.eq.f32.partialorder %v1814, 8.507059e+37
    %v1816 = vand.u32 %v1804, 2147483648
    %v1817 = vor.u32 1.1754944e-38, %v1816
    %v1818 = vsel %vm1815, %v1817, %v1813
    %v1819 = vmul.f32 %v1794, %v1818
    %v1820 = vmin.f32 %v1819, 1.0
    %v1821 = vmax.f32 %v1820, -1.0
    %v1822 = vmul.f32 %v1650, %v1650
    %v1823 = vmin.f32 16.0, %v1822
    %v1824 = vmul.f32 %v1823, 2.1237322e-06
    %v1825 = vadd.f32 %v1824, 0.00028619796
    %v1826 = vmul.f32 %v1823, %v1825
    %v1827 = vadd.f32 %v1826, 0.0036580483
    %v1828 = vmul.f32 %v1823, %v1827
    %v1829 = vadd.f32 %v1828, 0.05243302
    %v1830 = vmul.f32 %v1823, %v1829
    %v1831 = vadd.f32 %v1830, 0.18741608
    %v1832 = vmul.f32 %v1823, %v1831
    %v1833 = vadd.f32 %v1832, 1.1283791
    %v1834 = vmul.f32 %v1650, %v1833
    %v1835 = vmul.f32 %v1823, 3.8918573e-05
    %v1836 = vadd.f32 %v1835, 0.001143296
    %v1837 = vmul.f32 %v1823, %v1836
    %v1838 = vadd.f32 %v1837, 0.014752088
    %v1839 = vmul.f32 %v1823, %v1838
    %v1840 = vadd.f32 %v1839, 0.112945676
    %v1841 = vmul.f32 %v1823, %v1840
    %v1842 = vadd.f32 %v1841, 0.4994258
    %v1843 = vmul.f32 %v1823, %v1842
    %v1844 = vadd.f32 %v1843, 1.0
    %v1845 = vrcp.pop %v1844
    %v1846 = vmul.f32 %v1844, %v1845
    %v1847 = vsub.f32 1.0, %v1846
    %v1848 = vmul.f32 %v1845, %v1847
    %v1849 = vadd.f32 %v1845, %v1848
    %vm1850 = vweird.f32 %v1844
    %vm1851 = vweird.f32 %v1845
    %vm1852 = vmor %vm1850, %vm1851
    %v1853 = vsel %vm1852, %v1845, %v1849
    %v1854 = vand.u32 2147483647, %v1844
    %vm1855 = vcmp.eq.f32.partialorder %v1854, 8.507059e+37
    %v1856 = vand.u32 %v1844, 2147483648
    %v1857 = vor.u32 1.1754944e-38, %v1856
    %v1858 = vsel %vm1855, %v1857, %v1853
    %v1859 = vmul.f32 %v1834, %v1858
    %v1860 = vmin.f32 %v1859, 1.0
    %v1861 = vmax.f32 %v1860, -1.0
    %v1862 = vmul.f32 %v1651, %v1651
    %v1863 = vmin.f32 16.0, %v1862
    %v1864 = vmul.f32 %v1863, 2.1237322e-06
    %v1865 = vadd.f32 %v1864, 0.00028619796
    %v1866 = vmul.f32 %v1863, %v1865
    %v1867 = vadd.f32 %v1866, 0.0036580483
    %v1868 = vmul.f32 %v1863, %v1867
    %v1869 = vadd.f32 %v1868, 0.05243302
    %v1870 = vmul.f32 %v1863, %v1869
    %v1871 = vadd.f32 %v1870, 0.18741608
    %v1872 = vmul.f32 %v1863, %v1871
    %v1873 = vadd.f32 %v1872, 1.1283791
    %v1874 = vmul.f32 %v1651, %v1873
    %v1875 = vmul.f32 %v1863, 3.8918573e-05
    %v1876 = vadd.f32 %v1875, 0.001143296
    %v1877 = vmul.f32 %v1863, %v1876
    %v1878 = vadd.f32 %v1877, 0.014752088
    %v1879 = vmul.f32 %v1863, %v1878
    %v1880 = vadd.f32 %v1879, 0.112945676
    %v1881 = vmul.f32 %v1863, %v1880
    %v1882 = vadd.f32 %v1881, 0.4994258
    %v1883 = vmul.f32 %v1863, %v1882
    %v1884 = vadd.f32 %v1883, 1.0
    %v1885 = vrcp.pop %v1884
    %v1886 = vmul.f32 %v1884, %v1885
    %v1887 = vsub.f32 1.0, %v1886
    %v1888 = vmul.f32 %v1885, %v1887
    %v1889 = vadd.f32 %v1885, %v1888
    %vm1890 = vweird.f32 %v1884
    %vm1891 = vweird.f32 %v1885
    %vm1892 = vmor %vm1890, %vm1891
    %v1893 = vsel %vm1892, %v1885, %v1889
    %v1894 = vand.u32 2147483647, %v1884
    %vm1895 = vcmp.eq.f32.partialorder %v1894, 8.507059e+37
    %v1896 = vand.u32 %v1884, 2147483648
    %v1897 = vor.u32 1.1754944e-38, %v1896
    %v1898 = vsel %vm1895, %v1897, %v1893
    %v1899 = vmul.f32 %v1874, %v1898
    %v1900 = vmin.f32 %v1899, 1.0
    %v1901 = vmax.f32 %v1900, -1.0
    %v1902 = vmul.f32 %v1652, %v1652
    %v1903 = vmin.f32 16.0, %v1902
    %v1904 = vmul.f32 %v1903, 2.1237322e-06
    %v1905 = vadd.f32 %v1904, 0.00028619796
    %v1906 = vmul.f32 %v1903, %v1905
    %v1907 = vadd.f32 %v1906, 0.0036580483
    %v1908 = vmul.f32 %v1903, %v1907
    %v1909 = vadd.f32 %v1908, 0.05243302
    %v1910 = vmul.f32 %v1903, %v1909
    %v1911 = vadd.f32 %v1910, 0.18741608
    %v1912 = vmul.f32 %v1903, %v1911
    %v1913 = vadd.f32 %v1912, 1.1283791
    %v1914 = vmul.f32 %v1652, %v1913
    %v1915 = vmul.f32 %v1903, 3.8918573e-05
    %v1916 = vadd.f32 %v1915, 0.001143296
    %v1917 = vmul.f32 %v1903, %v1916
    %v1918 = vadd.f32 %v1917, 0.014752088
    %v1919 = vmul.f32 %v1903, %v1918
    %v1920 = vadd.f32 %v1919, 0.112945676
    %v1921 = vmul.f32 %v1903, %v1920
    %v1922 = vadd.f32 %v1921, 0.4994258
    %v1923 = vmul.f32 %v1903, %v1922
    %v1924 = vadd.f32 %v1923, 1.0
    %v1925 = vrcp.pop %v1924
    %v1926 = vmul.f32 %v1924, %v1925
    %v1927 = vsub.f32 1.0, %v1926
    %v1928 = vmul.f32 %v1925, %v1927
    %v1929 = vadd.f32 %v1925, %v1928
    %vm1930 = vweird.f32 %v1924
    %vm1931 = vweird.f32 %v1925
    %vm1932 = vmor %vm1930, %vm1931
    %v1933 = vsel %vm1932, %v1925, %v1929
    %v1934 = vand.u32 2147483647, %v1924
    %vm1935 = vcmp.eq.f32.partialorder %v1934, 8.507059e+37
    %v1936 = vand.u32 %v1924, 2147483648
    %v1937 = vor.u32 1.1754944e-38, %v1936
    %v1938 = vsel %vm1935, %v1937, %v1933
    %v1939 = vmul.f32 %v1914, %v1938
    %v1940 = vmin.f32 %v1939, 1.0
    %v1941 = vmax.f32 %v1940, -1.0
    %v1942 = vmul.f32 %v1653, %v1653
    %v1943 = vmin.f32 16.0, %v1942
    %v1944 = vmul.f32 %v1943, 2.1237322e-06
    %v1945 = vadd.f32 %v1944, 0.00028619796
    %v1946 = vmul.f32 %v1943, %v1945
    %v1947 = vadd.f32 %v1946, 0.0036580483
    %v1948 = vmul.f32 %v1943, %v1947
    %v1949 = vadd.f32 %v1948, 0.05243302
    %v1950 = vmul.f32 %v1943, %v1949
    %v1951 = vadd.f32 %v1950, 0.18741608
    %v1952 = vmul.f32 %v1943, %v1951
    %v1953 = vadd.f32 %v1952, 1.1283791
    %v1954 = vmul.f32 %v1653, %v1953
    %v1955 = vmul.f32 %v1943, 3.8918573e-05
    %v1956 = vadd.f32 %v1955, 0.001143296
    %v1957 = vmul.f32 %v1943, %v1956
    %v1958 = vadd.f32 %v1957, 0.014752088
    %v1959 = vmul.f32 %v1943, %v1958
    %v1960 = vadd.f32 %v1959, 0.112945676
    %v1961 = vmul.f32 %v1943, %v1960
    %v1962 = vadd.f32 %v1961, 0.4994258
    %v1963 = vmul.f32 %v1943, %v1962
    %v1964 = vadd.f32 %v1963, 1.0
    %v1965 = vrcp.pop %v1964
    %v1966 = vmul.f32 %v1964, %v1965
    %v1967 = vsub.f32 1.0, %v1966
    %v1968 = vmul.f32 %v1965, %v1967
    %v1969 = vadd.f32 %v1965, %v1968
    %vm1970 = vweird.f32 %v1964
    %vm1971 = vweird.f32 %v1965
    %vm1972 = vmor %vm1970, %vm1971
    %v1973 = vsel %vm1972, %v1965, %v1969
    %v1974 = vand.u32 2147483647, %v1964
    %vm1975 = vcmp.eq.f32.partialorder %v1974, 8.507059e+37
    %v1976 = vand.u32 %v1964, 2147483648
    %v1977 = vor.u32 1.1754944e-38, %v1976
    %v1978 = vsel %vm1975, %v1977, %v1973
    %v1979 = vmul.f32 %v1954, %v1978
    %v1980 = vmin.f32 %v1979, 1.0
    %v1981 = vmax.f32 %v1980, -1.0
    %v1982 = vmul.f32 %v1654, %v1654
    %v1983 = vmin.f32 16.0, %v1982
    %v1984 = vmul.f32 %v1983, 2.1237322e-06
    %v1985 = vadd.f32 %v1984, 0.00028619796
    %v1986 = vmul.f32 %v1983, %v1985
    %v1987 = vadd.f32 %v1986, 0.0036580483
    %v1988 = vmul.f32 %v1983, %v1987
    %v1989 = vadd.f32 %v1988, 0.05243302
    %v1990 = vmul.f32 %v1983, %v1989
    %v1991 = vadd.f32 %v1990, 0.18741608
    %v1992 = vmul.f32 %v1983, %v1991
    %v1993 = vadd.f32 %v1992, 1.1283791
    %v1994 = vmul.f32 %v1654, %v1993
    %v1995 = vmul.f32 %v1983, 3.8918573e-05
    %v1996 = vadd.f32 %v1995, 0.001143296
    %v1997 = vmul.f32 %v1983, %v1996
    %v1998 = vadd.f32 %v1997, 0.014752088
    %v1999 = vmul.f32 %v1983, %v1998
    %v2000 = vadd.f32 %v1999, 0.112945676
    %v2001 = vmul.f32 %v1983, %v2000
    %v2002 = vadd.f32 %v2001, 0.4994258
    %v2003 = vmul.f32 %v1983, %v2002
    %v2004 = vadd.f32 %v2003, 1.0
    %v2005 = vrcp.pop %v2004
    %v2006 = vmul.f32 %v2004, %v2005
    %v2007 = vsub.f32 1.0, %v2006
    %v2008 = vmul.f32 %v2005, %v2007
    %v2009 = vadd.f32 %v2005, %v2008
    %vm2010 = vweird.f32 %v2004
    %vm2011 = vweird.f32 %v2005
    %vm2012 = vmor %vm2010, %vm2011
    %v2013 = vsel %vm2012, %v2005, %v2009
    %v2014 = vand.u32 2147483647, %v2004
    %vm2015 = vcmp.eq.f32.partialorder %v2014, 8.507059e+37
    %v2016 = vand.u32 %v2004, 2147483648
    %v2017 = vor.u32 1.1754944e-38, %v2016
    %v2018 = vsel %vm2015, %v2017, %v2013
    %v2019 = vmul.f32 %v1994, %v2018
    %v2020 = vmin.f32 %v2019, 1.0
    %v2021 = vmax.f32 %v2020, -1.0
    %v2022 = vmul.f32 %v1655, %v1655
    %v2023 = vmin.f32 16.0, %v2022
    %v2024 = vmul.f32 %v2023, 2.1237322e-06
    %v2025 = vadd.f32 %v2024, 0.00028619796
    %v2026 = vmul.f32 %v2023, %v2025
    %v2027 = vadd.f32 %v2026, 0.0036580483
    %v2028 = vmul.f32 %v2023, %v2027
    %v2029 = vadd.f32 %v2028, 0.05243302
    %v2030 = vmul.f32 %v2023, %v2029
    %v2031 = vadd.f32 %v2030, 0.18741608
    %v2032 = vmul.f32 %v2023, %v2031
    %v2033 = vadd.f32 %v2032, 1.1283791
    %v2034 = vmul.f32 %v1655, %v2033
    %v2035 = vmul.f32 %v2023, 3.8918573e-05
    %v2036 = vadd.f32 %v2035, 0.001143296
    %v2037 = vmul.f32 %v2023, %v2036
    %v2038 = vadd.f32 %v2037, 0.014752088
    %v2039 = vmul.f32 %v2023, %v2038
    %v2040 = vadd.f32 %v2039, 0.112945676
    %v2041 = vmul.f32 %v2023, %v2040
    %v2042 = vadd.f32 %v2041, 0.4994258
    %v2043 = vmul.f32 %v2023, %v2042
    %v2044 = vadd.f32 %v2043, 1.0
    %v2045 = vrcp.pop %v2044
    %v2046 = vmul.f32 %v2044, %v2045
    %v2047 = vsub.f32 1.0, %v2046
    %v2048 = vmul.f32 %v2045, %v2047
    %v2049 = vadd.f32 %v2045, %v2048
    %vm2050 = vweird.f32 %v2044
    %vm2051 = vweird.f32 %v2045
    %vm2052 = vmor %vm2050, %vm2051
    %v2053 = vsel %vm2052, %v2045, %v2049
    %v2054 = vand.u32 2147483647, %v2044
    %vm2055 = vcmp.eq.f32.partialorder %v2054, 8.507059e+37
    %v2056 = vand.u32 %v2044, 2147483648
    %v2057 = vor.u32 1.1754944e-38, %v2056
    %v2058 = vsel %vm2055, %v2057, %v2053
    %v2059 = vmul.f32 %v2034, %v2058
    %v2060 = vmin.f32 %v2059, 1.0
    %v2061 = vmax.f32 %v2060, -1.0
    %v2062 = vmul.f32 %v1656, %v1656
    %v2063 = vmin.f32 16.0, %v2062
    %v2064 = vmul.f32 %v2063, 2.1237322e-06
    %v2065 = vadd.f32 %v2064, 0.00028619796
    %v2066 = vmul.f32 %v2063, %v2065
    %v2067 = vadd.f32 %v2066, 0.0036580483
    %v2068 = vmul.f32 %v2063, %v2067
    %v2069 = vadd.f32 %v2068, 0.05243302
    %v2070 = vmul.f32 %v2063, %v2069
    %v2071 = vadd.f32 %v2070, 0.18741608
    %v2072 = vmul.f32 %v2063, %v2071
    %v2073 = vadd.f32 %v2072, 1.1283791
    %v2074 = vmul.f32 %v1656, %v2073
    %v2075 = vmul.f32 %v2063, 3.8918573e-05
    %v2076 = vadd.f32 %v2075, 0.001143296
    %v2077 = vmul.f32 %v2063, %v2076
    %v2078 = vadd.f32 %v2077, 0.014752088
    %v2079 = vmul.f32 %v2063, %v2078
    %v2080 = vadd.f32 %v2079, 0.112945676
    %v2081 = vmul.f32 %v2063, %v2080
    %v2082 = vadd.f32 %v2081, 0.4994258
    %v2083 = vmul.f32 %v2063, %v2082
    %v2084 = vadd.f32 %v2083, 1.0
    %v2085 = vrcp.pop %v2084
    %v2086 = vmul.f32 %v2084, %v2085
    %v2087 = vsub.f32 1.0, %v2086
    %v2088 = vmul.f32 %v2085, %v2087
    %v2089 = vadd.f32 %v2085, %v2088
    %vm2090 = vweird.f32 %v2084
    %vm2091 = vweird.f32 %v2085
    %vm2092 = vmor %vm2090, %vm2091
    %v2093 = vsel %vm2092, %v2085, %v2089
    %v2094 = vand.u32 2147483647, %v2084
    %vm2095 = vcmp.eq.f32.partialorder %v2094, 8.507059e+37
    %v2096 = vand.u32 %v2084, 2147483648
    %v2097 = vor.u32 1.1754944e-38, %v2096
    %v2098 = vsel %vm2095, %v2097, %v2093
    %v2099 = vmul.f32 %v2074, %v2098
    %v2100 = vmin.f32 %v2099, 1.0
    %v2101 = vmax.f32 %v2100, -1.0
    %v2102 = vmul.f32 %v1657, %v1657
    %v2103 = vmin.f32 16.0, %v2102
    %v2104 = vmul.f32 %v2103, 2.1237322e-06
    %v2105 = vadd.f32 %v2104, 0.00028619796
    %v2106 = vmul.f32 %v2103, %v2105
    %v2107 = vadd.f32 %v2106, 0.0036580483
    %v2108 = vmul.f32 %v2103, %v2107
    %v2109 = vadd.f32 %v2108, 0.05243302
    %v2110 = vmul.f32 %v2103, %v2109
    %v2111 = vadd.f32 %v2110, 0.18741608
    %v2112 = vmul.f32 %v2103, %v2111
    %v2113 = vadd.f32 %v2112, 1.1283791
    %v2114 = vmul.f32 %v1657, %v2113
    %v2115 = vmul.f32 %v2103, 3.8918573e-05
    %v2116 = vadd.f32 %v2115, 0.001143296
    %v2117 = vmul.f32 %v2103, %v2116
    %v2118 = vadd.f32 %v2117, 0.014752088
    %v2119 = vmul.f32 %v2103, %v2118
    %v2120 = vadd.f32 %v2119, 0.112945676
    %v2121 = vmul.f32 %v2103, %v2120
    %v2122 = vadd.f32 %v2121, 0.4994258
    %v2123 = vmul.f32 %v2103, %v2122
    %v2124 = vadd.f32 %v2123, 1.0
    %v2125 = vrcp.pop %v2124
    %v2126 = vmul.f32 %v2124, %v2125
    %v2127 = vsub.f32 1.0, %v2126
    %v2128 = vmul.f32 %v2125, %v2127
    %v2129 = vadd.f32 %v2125, %v2128
    %vm2130 = vweird.f32 %v2124
    %vm2131 = vweird.f32 %v2125
    %vm2132 = vmor %vm2130, %vm2131
    %v2133 = vsel %vm2132, %v2125, %v2129
    %v2134 = vand.u32 2147483647, %v2124
    %vm2135 = vcmp.eq.f32.partialorder %v2134, 8.507059e+37
    %v2136 = vand.u32 %v2124, 2147483648
    %v2137 = vor.u32 1.1754944e-38, %v2136
    %v2138 = vsel %vm2135, %v2137, %v2133
    %v2139 = vmul.f32 %v2114, %v2138
    %v2140 = vmin.f32 %v2139, 1.0
    %v2141 = vmax.f32 %v2140, -1.0
    %v2142 = vmul.f32 %v1658, %v1658
    %v2143 = vmin.f32 16.0, %v2142
    %v2144 = vmul.f32 %v2143, 2.1237322e-06
    %v2145 = vadd.f32 %v2144, 0.00028619796
    %v2146 = vmul.f32 %v2143, %v2145
    %v2147 = vadd.f32 %v2146, 0.0036580483
    %v2148 = vmul.f32 %v2143, %v2147
    %v2149 = vadd.f32 %v2148, 0.05243302
    %v2150 = vmul.f32 %v2143, %v2149
    %v2151 = vadd.f32 %v2150, 0.18741608
    %v2152 = vmul.f32 %v2143, %v2151
    %v2153 = vadd.f32 %v2152, 1.1283791
    %v2154 = vmul.f32 %v1658, %v2153
    %v2155 = vmul.f32 %v2143, 3.8918573e-05
    %v2156 = vadd.f32 %v2155, 0.001143296
    %v2157 = vmul.f32 %v2143, %v2156
    %v2158 = vadd.f32 %v2157, 0.014752088
    %v2159 = vmul.f32 %v2143, %v2158
    %v2160 = vadd.f32 %v2159, 0.112945676
    %v2161 = vmul.f32 %v2143, %v2160
    %v2162 = vadd.f32 %v2161, 0.4994258
    %v2163 = vmul.f32 %v2143, %v2162
    %v2164 = vadd.f32 %v2163, 1.0
    %v2165 = vrcp.pop %v2164
    %v2166 = vmul.f32 %v2164, %v2165
    %v2167 = vsub.f32 1.0, %v2166
    %v2168 = vmul.f32 %v2165, %v2167
    %v2169 = vadd.f32 %v2165, %v2168
    %vm2170 = vweird.f32 %v2164
    %vm2171 = vweird.f32 %v2165
    %vm2172 = vmor %vm2170, %vm2171
    %v2173 = vsel %vm2172, %v2165, %v2169
    %v2174 = vand.u32 2147483647, %v2164
    %vm2175 = vcmp.eq.f32.partialorder %v2174, 8.507059e+37
    %v2176 = vand.u32 %v2164, 2147483648
    %v2177 = vor.u32 1.1754944e-38, %v2176
    %v2178 = vsel %vm2175, %v2177, %v2173
    %v2179 = vmul.f32 %v2154, %v2178
    %v2180 = vmin.f32 %v2179, 1.0
    %v2181 = vmax.f32 %v2180, -1.0
    %v2182 = vmul.f32 %v1659, %v1659
    %v2183 = vmin.f32 16.0, %v2182
    %v2184 = vmul.f32 %v2183, 2.1237322e-06
    %v2185 = vadd.f32 %v2184, 0.00028619796
    %v2186 = vmul.f32 %v2183, %v2185
    %v2187 = vadd.f32 %v2186, 0.0036580483
    %v2188 = vmul.f32 %v2183, %v2187
    %v2189 = vadd.f32 %v2188, 0.05243302
    %v2190 = vmul.f32 %v2183, %v2189
    %v2191 = vadd.f32 %v2190, 0.18741608
    %v2192 = vmul.f32 %v2183, %v2191
    %v2193 = vadd.f32 %v2192, 1.1283791
    %v2194 = vmul.f32 %v1659, %v2193
    %v2195 = vmul.f32 %v2183, 3.8918573e-05
    %v2196 = vadd.f32 %v2195, 0.001143296
    %v2197 = vmul.f32 %v2183, %v2196
    %v2198 = vadd.f32 %v2197, 0.014752088
    %v2199 = vmul.f32 %v2183, %v2198
    %v2200 = vadd.f32 %v2199, 0.112945676
    %v2201 = vmul.f32 %v2183, %v2200
    %v2202 = vadd.f32 %v2201, 0.4994258
    %v2203 = vmul.f32 %v2183, %v2202
    %v2204 = vadd.f32 %v2203, 1.0
    %v2205 = vrcp.pop %v2204
    %v2206 = vmul.f32 %v2204, %v2205
    %v2207 = vsub.f32 1.0, %v2206
    %v2208 = vmul.f32 %v2205, %v2207
    %v2209 = vadd.f32 %v2205, %v2208
    %vm2210 = vweird.f32 %v2204
    %vm2211 = vweird.f32 %v2205
    %vm2212 = vmor %vm2210, %vm2211
    %v2213 = vsel %vm2212, %v2205, %v2209
    %v2214 = vand.u32 2147483647, %v2204
    %vm2215 = vcmp.eq.f32.partialorder %v2214, 8.507059e+37
    %v2216 = vand.u32 %v2204, 2147483648
    %v2217 = vor.u32 1.1754944e-38, %v2216
    %v2218 = vsel %vm2215, %v2217, %v2213
    %v2219 = vmul.f32 %v2194, %v2218
    %v2220 = vmin.f32 %v2219, 1.0
    %v2221 = vmax.f32 %v2220, -1.0
    %v2222 = vmul.f32 %v1660, %v1660
    %v2223 = vmin.f32 16.0, %v2222
    %v2224 = vmul.f32 %v2223, 2.1237322e-06
    %v2225 = vadd.f32 %v2224, 0.00028619796
    %v2226 = vmul.f32 %v2223, %v2225
    %v2227 = vadd.f32 %v2226, 0.0036580483
    %v2228 = vmul.f32 %v2223, %v2227
    %v2229 = vadd.f32 %v2228, 0.05243302
    %v2230 = vmul.f32 %v2223, %v2229
    %v2231 = vadd.f32 %v2230, 0.18741608
    %v2232 = vmul.f32 %v2223, %v2231
    %v2233 = vadd.f32 %v2232, 1.1283791
    %v2234 = vmul.f32 %v1660, %v2233
    %v2235 = vmul.f32 %v2223, 3.8918573e-05
    %v2236 = vadd.f32 %v2235, 0.001143296
    %v2237 = vmul.f32 %v2223, %v2236
    %v2238 = vadd.f32 %v2237, 0.014752088
    %v2239 = vmul.f32 %v2223, %v2238
    %v2240 = vadd.f32 %v2239, 0.112945676
    %v2241 = vmul.f32 %v2223, %v2240
    %v2242 = vadd.f32 %v2241, 0.4994258
    %v2243 = vmul.f32 %v2223, %v2242
    %v2244 = vadd.f32 %v2243, 1.0
    %v2245 = vrcp.pop %v2244
    %v2246 = vmul.f32 %v2244, %v2245
    %v2247 = vsub.f32 1.0, %v2246
    %v2248 = vmul.f32 %v2245, %v2247
    %v2249 = vadd.f32 %v2245, %v2248
    %vm2250 = vweird.f32 %v2244
    %vm2251 = vweird.f32 %v2245
    %vm2252 = vmor %vm2250, %vm2251
    %v2253 = vsel %vm2252, %v2245, %v2249
    %v2254 = vand.u32 2147483647, %v2244
    %vm2255 = vcmp.eq.f32.partialorder %v2254, 8.507059e+37
    %v2256 = vand.u32 %v2244, 2147483648
    %v2257 = vor.u32 1.1754944e-38, %v2256
    %v2258 = vsel %vm2255, %v2257, %v2253
    %v2259 = vmul.f32 %v2234, %v2258
    %v2260 = vmin.f32 %v2259, 1.0
    %v2261 = vmax.f32 %v2260, -1.0
    %v2262 = vmul.f32 %v1661, %v1661
    %v2263 = vmin.f32 16.0, %v2262
    %v2264 = vmul.f32 %v2263, 2.1237322e-06
    %v2265 = vadd.f32 %v2264, 0.00028619796
    %v2266 = vmul.f32 %v2263, %v2265
    %v2267 = vadd.f32 %v2266, 0.0036580483
    %v2268 = vmul.f32 %v2263, %v2267
    %v2269 = vadd.f32 %v2268, 0.05243302
    %v2270 = vmul.f32 %v2263, %v2269
    %v2271 = vadd.f32 %v2270, 0.18741608
    %v2272 = vmul.f32 %v2263, %v2271
    %v2273 = vadd.f32 %v2272, 1.1283791
    %v2274 = vmul.f32 %v1661, %v2273
    %v2275 = vmul.f32 %v2263, 3.8918573e-05
    %v2276 = vadd.f32 %v2275, 0.001143296
    %v2277 = vmul.f32 %v2263, %v2276
    %v2278 = vadd.f32 %v2277, 0.014752088
    %v2279 = vmul.f32 %v2263, %v2278
    %v2280 = vadd.f32 %v2279, 0.112945676
    %v2281 = vmul.f32 %v2263, %v2280
    %v2282 = vadd.f32 %v2281, 0.4994258
    %v2283 = vmul.f32 %v2263, %v2282
    %v2284 = vadd.f32 %v2283, 1.0
    %v2285 = vrcp.pop %v2284
    %v2286 = vmul.f32 %v2284, %v2285
    %v2287 = vsub.f32 1.0, %v2286
    %v2288 = vmul.f32 %v2285, %v2287
    %v2289 = vadd.f32 %v2285, %v2288
    %vm2290 = vweird.f32 %v2284
    %vm2291 = vweird.f32 %v2285
    %vm2292 = vmor %vm2290, %vm2291
    %v2293 = vsel %vm2292, %v2285, %v2289
    %v2294 = vand.u32 2147483647, %v2284
    %vm2295 = vcmp.eq.f32.partialorder %v2294, 8.507059e+37
    %v2296 = vand.u32 %v2284, 2147483648
    %v2297 = vor.u32 1.1754944e-38, %v2296
    %v2298 = vsel %vm2295, %v2297, %v2293
    %v2299 = vmul.f32 %v2274, %v2298
    %v2300 = vmin.f32 %v2299, 1.0
    %v2301 = vmax.f32 %v2300, -1.0
    %v2302 = vadd.f32 %v1701, 1.0
    %v2303 = vadd.f32 %v1741, 1.0
    %v2304 = vadd.f32 %v1781, 1.0
    %v2305 = vadd.f32 %v1821, 1.0
    %v2306 = vadd.f32 %v1861, 1.0
    %v2307 = vadd.f32 %v1901, 1.0
    %v2308 = vadd.f32 %v1941, 1.0
    %v2309 = vadd.f32 %v1981, 1.0
    %v2310 = vadd.f32 %v2021, 1.0
    %v2311 = vadd.f32 %v2061, 1.0
    %v2312 = vadd.f32 %v2101, 1.0
    %v2313 = vadd.f32 %v2141, 1.0
    %v2314 = vadd.f32 %v2181, 1.0
    %v2315 = vadd.f32 %v2221, 1.0
    %v2316 = vadd.f32 %v2261, 1.0
    %v2317 = vadd.f32 %v2301, 1.0
    %v2318 = vmul.f32 %v1630, %v2302
    %v2319 = vmul.f32 %v1631, %v2303
    %v2320 = vmul.f32 %v1632, %v2304
    %v2321 = vmul.f32 %v1633, %v2305
    %v2322 = vmul.f32 %v1634, %v2306
    %v2323 = vmul.f32 %v1635, %v2307
    %v2324 = vmul.f32 %v1636, %v2308
    %v2325 = vmul.f32 %v1637, %v2309
    %v2326 = vmul.f32 %v1638, %v2310
    %v2327 = vmul.f32 %v1639, %v2311
    %v2328 = vmul.f32 %v1640, %v2312
    %v2329 = vmul.f32 %v1641, %v2313
    %v2330 = vmul.f32 %v1642, %v2314
    %v2331 = vmul.f32 %v1643, %v2315
    %v2332 = vmul.f32 %v1644, %v2316
    %v2333 = vmul.f32 %v1645, %v2317
    %v2334 = vpack.c.bf16 %v2322, %v2318
    %v2335 = vpack.c.bf16 %v2323, %v2319
    %v2336 = vpack.c.bf16 %v2324, %v2320
    %v2337 = vpack.c.bf16 %v2325, %v2321
    %v2338 = vpack.c.bf16 %v2330, %v2326
    %v2339 = vpack.c.bf16 %v2331, %v2327
    %v2340 = vpack.c.bf16 %v2332, %v2328
    %v2341 = vpack.c.bf16 %v2333, %v2329
    %v2342 = vld [vmem:[#allocation14] sm:$0xf]
    %v2343 = vld [vmem:[#allocation14 + $0x4] sm:$0xf]
    %v2344 = vld [vmem:[#allocation14 + $0x8] sm:$0xf]
    %v2345 = vld [vmem:[#allocation14 + $0xc] sm:$0xf]
    %v2346 = vld [vmem:[#allocation14 + $0x10] sm:$0xf]
    %v2347 = vld [vmem:[#allocation14 + $0x14] sm:$0xf]
    %v2348 = vld [vmem:[#allocation14 + $0x18] sm:$0xf]
    %v2349 = vld [vmem:[#allocation14 + $0x1c] sm:$0xf]
    %v2350 = vld [vmem:[#allocation14 + $0x20] sm:$0xf]
    %v2351 = vld [vmem:[#allocation14 + $0x24] sm:$0xf]
    %v2352 = vld [vmem:[#allocation14 + $0x28] sm:$0xf]
    %v2353 = vld [vmem:[#allocation14 + $0x2c] sm:$0xf]
    %v2354 = vld [vmem:[#allocation14 + $0x30] sm:$0xf]
    %v2355 = vld [vmem:[#allocation14 + $0x34] sm:$0xf]
    %v2356 = vld [vmem:[#allocation14 + $0x38] sm:$0xf]
    %v2357 = vld [vmem:[#allocation14 + $0x3c] sm:$0xf]
    %v2358 = vld [vmem:[#allocation14 + $0x40] sm:$0xf]
    %v2359 = vld [vmem:[#allocation14 + $0x44] sm:$0xf]
    %v2360 = vld [vmem:[#allocation14 + $0x48] sm:$0xf]
    %v2361 = vld [vmem:[#allocation14 + $0x4c] sm:$0xf]
    %v2362 = vld [vmem:[#allocation14 + $0x50] sm:$0xf]
    %v2363 = vld [vmem:[#allocation14 + $0x54] sm:$0xf]
    %v2364 = vld [vmem:[#allocation14 + $0x58] sm:$0xf]
    %v2365 = vld [vmem:[#allocation14 + $0x5c] sm:$0xf]
    %v2366 = vld [vmem:[#allocation14 + $0x60] sm:$0xf]
    %v2367 = vld [vmem:[#allocation14 + $0x64] sm:$0xf]
    %v2368 = vld [vmem:[#allocation14 + $0x68] sm:$0xf]
    %v2369 = vld [vmem:[#allocation14 + $0x6c] sm:$0xf]
    %v2370 = vld [vmem:[#allocation14 + $0x70] sm:$0xf]
    %v2371 = vld [vmem:[#allocation14 + $0x74] sm:$0xf]
    %v2372 = vld [vmem:[#allocation14 + $0x78] sm:$0xf]
    %v2373 = vld [vmem:[#allocation14 + $0x7c] sm:$0xf]
    %v2374 = vld [vmem:[#allocation14 + $0x80] sm:$0xf]
    %v2375 = vld [vmem:[#allocation14 + $0x84] sm:$0xf]
    %v2376 = vld [vmem:[#allocation14 + $0x88] sm:$0xf]
    %v2377 = vld [vmem:[#allocation14 + $0x8c] sm:$0xf]
    %v2378 = vld [vmem:[#allocation14 + $0x90] sm:$0xf]
    %v2379 = vld [vmem:[#allocation14 + $0x94] sm:$0xf]
    %v2380 = vld [vmem:[#allocation14 + $0x98] sm:$0xf]
    %v2381 = vld [vmem:[#allocation14 + $0x9c] sm:$0xf]
    %v2382 = vld [vmem:[#allocation14 + $0xa0] sm:$0xf]
    %v2383 = vld [vmem:[#allocation14 + $0xa4] sm:$0xf]
    %v2384 = vld [vmem:[#allocation14 + $0xa8] sm:$0xf]
    %v2385 = vld [vmem:[#allocation14 + $0xac] sm:$0xf]
    %v2386 = vld [vmem:[#allocation14 + $0xb0] sm:$0xf]
    %v2387 = vld [vmem:[#allocation14 + $0xb4] sm:$0xf]
    %v2388 = vld [vmem:[#allocation14 + $0xb8] sm:$0xf]
    %v2389 = vld [vmem:[#allocation14 + $0xbc] sm:$0xf]
    %v2390 = vld [vmem:[#allocation14 + $0xc0] sm:$0xf]
    %v2391 = vld [vmem:[#allocation14 + $0xc4] sm:$0xf]
    %v2392 = vld [vmem:[#allocation14 + $0xc8] sm:$0xf]
    %v2393 = vld [vmem:[#allocation14 + $0xcc] sm:$0xf]
    %v2394 = vld [vmem:[#allocation14 + $0xd0] sm:$0xf]
    %v2395 = vld [vmem:[#allocation14 + $0xd4] sm:$0xf]
    %v2396 = vld [vmem:[#allocation14 + $0xd8] sm:$0xf]
    %v2397 = vld [vmem:[#allocation14 + $0xdc] sm:$0xf]
    %v2398 = vld [vmem:[#allocation14 + $0xe0] sm:$0xf]
    %v2399 = vld [vmem:[#allocation14 + $0xe4] sm:$0xf]
    %v2400 = vld [vmem:[#allocation14 + $0xe8] sm:$0xf]
    %v2401 = vld [vmem:[#allocation14 + $0xec] sm:$0xf]
    %v2402 = vld [vmem:[#allocation14 + $0xf0] sm:$0xf]
    %v2403 = vld [vmem:[#allocation14 + $0xf4] sm:$0xf]
    %v2404 = vld [vmem:[#allocation14 + $0xf8] sm:$0xf]
    %v2405 = vld [vmem:[#allocation14 + $0xfc] sm:$0xf]
    %v2406 = vld [vmem:[%s11] sm:$0x1]
    %v2408 = vperm.slane %v2406, 0
    %v2474 = vunpack.c.l.b16 %v2342
    %v2475 = vunpack.c.l.b16 %v2343
    %v2476 = vunpack.c.l.b16 %v2344
    %v2477 = vunpack.c.l.b16 %v2345
    %v2478 = vunpack.c.l.b16 %v2346
    %v2479 = vunpack.c.l.b16 %v2347
    %v2480 = vunpack.c.l.b16 %v2348
    %v2481 = vunpack.c.l.b16 %v2349
    %v2482 = vunpack.c.l.b16 %v2350
    %v2483 = vunpack.c.l.b16 %v2351
    %v2484 = vunpack.c.l.b16 %v2352
    %v2485 = vunpack.c.l.b16 %v2353
    %v2486 = vunpack.c.l.b16 %v2354
    %v2487 = vunpack.c.l.b16 %v2355
    %v2488 = vunpack.c.l.b16 %v2356
    %v2489 = vunpack.c.l.b16 %v2357
    %v2490 = vunpack.c.l.b16 %v2358
    %v2491 = vunpack.c.l.b16 %v2359
    %v2492 = vunpack.c.l.b16 %v2360
    %v2493 = vunpack.c.l.b16 %v2361
    %v2494 = vunpack.c.l.b16 %v2362
    %v2495 = vunpack.c.l.b16 %v2363
    %v2496 = vunpack.c.l.b16 %v2364
    %v2497 = vunpack.c.l.b16 %v2365
    %v2498 = vunpack.c.l.b16 %v2366
    %v2499 = vunpack.c.l.b16 %v2367
    %v2500 = vunpack.c.l.b16 %v2368
    %v2501 = vunpack.c.l.b16 %v2369
    %v2502 = vunpack.c.l.b16 %v2370
    %v2503 = vunpack.c.l.b16 %v2371
    %v2504 = vunpack.c.l.b16 %v2372
    %v2505 = vunpack.c.l.b16 %v2373
    %v2506 = vunpack.c.l.b16 %v2374
    %v2507 = vunpack.c.l.b16 %v2375
    %v2508 = vunpack.c.l.b16 %v2376
    %v2509 = vunpack.c.l.b16 %v2377
    %v2510 = vunpack.c.l.b16 %v2378
    %v2511 = vunpack.c.l.b16 %v2379
    %v2512 = vunpack.c.l.b16 %v2380
    %v2513 = vunpack.c.l.b16 %v2381
    %v2514 = vunpack.c.l.b16 %v2382
    %v2515 = vunpack.c.l.b16 %v2383
    %v2516 = vunpack.c.l.b16 %v2384
    %v2517 = vunpack.c.l.b16 %v2385
    %v2518 = vunpack.c.l.b16 %v2386
    %v2519 = vunpack.c.l.b16 %v2387
    %v2520 = vunpack.c.l.b16 %v2388
    %v2521 = vunpack.c.l.b16 %v2389
    %v2522 = vunpack.c.l.b16 %v2390
    %v2523 = vunpack.c.l.b16 %v2391
    %v2524 = vunpack.c.l.b16 %v2392
    %v2525 = vunpack.c.l.b16 %v2393
    %v2526 = vunpack.c.l.b16 %v2394
    %v2527 = vunpack.c.l.b16 %v2395
    %v2528 = vunpack.c.l.b16 %v2396
    %v2529 = vunpack.c.l.b16 %v2397
    %v2530 = vunpack.c.l.b16 %v2398
    %v2531 = vunpack.c.l.b16 %v2399
    %v2532 = vunpack.c.l.b16 %v2400
    %v2533 = vunpack.c.l.b16 %v2401
    %v2534 = vunpack.c.l.b16 %v2402
    %v2535 = vunpack.c.l.b16 %v2403
    %v2536 = vunpack.c.l.b16 %v2404
    %v2537 = vunpack.c.l.b16 %v2405
    %v2538 = vpack.c.b16 %v2475, %v2474
    %v2539 = vpack.c.b16 %v2477, %v2476
    %v2540 = vpack.c.b16 %v2479, %v2478
    %v2541 = vpack.c.b16 %v2481, %v2480
    %v2542 = vpack.c.b16 %v2483, %v2482
    %v2543 = vpack.c.b16 %v2485, %v2484
    %v2544 = vpack.c.b16 %v2487, %v2486
    %v2545 = vpack.c.b16 %v2489, %v2488
    %v2546 = vpack.c.b16 %v2491, %v2490
    %v2547 = vpack.c.b16 %v2493, %v2492
    %v2548 = vpack.c.b16 %v2495, %v2494
    %v2549 = vpack.c.b16 %v2497, %v2496
    %v2550 = vpack.c.b16 %v2499, %v2498
    %v2551 = vpack.c.b16 %v2501, %v2500
    %v2552 = vpack.c.b16 %v2503, %v2502
    %v2553 = vpack.c.b16 %v2505, %v2504
    %v2554 = vpack.c.b16 %v2507, %v2506
    %v2555 = vpack.c.b16 %v2509, %v2508
    %v2556 = vpack.c.b16 %v2511, %v2510
    %v2557 = vpack.c.b16 %v2513, %v2512
    %v2558 = vpack.c.b16 %v2515, %v2514
    %v2559 = vpack.c.b16 %v2517, %v2516
    %v2560 = vpack.c.b16 %v2519, %v2518
    %v2561 = vpack.c.b16 %v2521, %v2520
    %v2562 = vpack.c.b16 %v2523, %v2522
    %v2563 = vpack.c.b16 %v2525, %v2524
    %v2564 = vpack.c.b16 %v2527, %v2526
    %v2565 = vpack.c.b16 %v2529, %v2528
    %v2566 = vpack.c.b16 %v2531, %v2530
    %v2567 = vpack.c.b16 %v2533, %v2532
    %v2568 = vpack.c.b16 %v2535, %v2534
    %v2569 = vpack.c.b16 %v2537, %v2536
    %2602 = vmatpush.bf16.msra.mxu0 %v2545
    %2603 = vmatpush.bf16.msra.mxu0 %v2544
    %2604 = vmatpush.bf16.msra.mxu0 %v2543
    %2605 = vmatpush.bf16.msra.mxu0 %v2542
    %2606 = vmatpush.bf16.msra.mxu0 %v2541
    %2607 = vmatpush.bf16.msra.mxu0 %v2540
    %2608 = vmatpush.bf16.msra.mxu0 %v2539
    %2609 = vmatpush.bf16.msra.mxu0 %v2538
    %2610 = vmatmul.bf16.gmra.mxu0 %v2334
    %v2611 = vpop.f32.mrf.mxu0
    %v2612 = vadd.f32 %v2408, %v2611
    %v2613 = vpop.f32.mrf.mxu0
    %v2614 = vadd.f32 %v2408, %v2613
    %2615 = vmatmul.bf16.gmra.mxu0 %v2338
    %v2616 = vpop.f32.mrf.mxu0
    %v2617 = vadd.f32 %v2408, %v2616
    %v2618 = vpop.f32.mrf.mxu0
    %v2619 = vadd.f32 %v2408, %v2618
    %2620 = vdwg.mxu0
    %2621 = vmatpush.bf16.msra.mxu0 %v2553
    %2622 = vmatpush.bf16.msra.mxu0 %v2552
    %2623 = vmatpush.bf16.msra.mxu0 %v2551
    %2624 = vmatpush.bf16.msra.mxu0 %v2550
    %2625 = vmatpush.bf16.msra.mxu0 %v2549
    %2626 = vmatpush.bf16.msra.mxu0 %v2548
    %2627 = vmatpush.bf16.msra.mxu0 %v2547
    %2628 = vmatpush.bf16.msra.mxu0 %v2546
    %2629 = vmatmul.bf16.gmra.mxu0 %v2335
    %v2630 = vpop.f32.mrf.mxu0
    %v2631 = vadd.f32 %v2612, %v2630
    %v2632 = vpop.f32.mrf.mxu0
    %v2633 = vadd.f32 %v2614, %v2632
    %2634 = vmatmul.bf16.gmra.mxu0 %v2339
    %v2635 = vpop.f32.mrf.mxu0
    %v2636 = vadd.f32 %v2617, %v2635
    %v2637 = vpop.f32.mrf.mxu0
    %v2638 = vadd.f32 %v2619, %v2637
    %2639 = vdwg.mxu0
    %2640 = vmatpush.bf16.msra.mxu0 %v2561
    %2641 = vmatpush.bf16.msra.mxu0 %v2560
    %2642 = vmatpush.bf16.msra.mxu0 %v2559
    %2643 = vmatpush.bf16.msra.mxu0 %v2558
    %2644 = vmatpush.bf16.msra.mxu0 %v2557
    %2645 = vmatpush.bf16.msra.mxu0 %v2556
    %2646 = vmatpush.bf16.msra.mxu0 %v2555
    %2647 = vmatpush.bf16.msra.mxu0 %v2554
    %2648 = vmatmul.bf16.gmra.mxu0 %v2336
    %v2649 = vpop.f32.mrf.mxu0
    %v2650 = vadd.f32 %v2631, %v2649
    %v2651 = vpop.f32.mrf.mxu0
    %v2652 = vadd.f32 %v2633, %v2651
    %2653 = vmatmul.bf16.gmra.mxu0 %v2340
    %v2654 = vpop.f32.mrf.mxu0
    %v2655 = vadd.f32 %v2636, %v2654
    %v2656 = vpop.f32.mrf.mxu0
    %v2657 = vadd.f32 %v2638, %v2656
    %2658 = vdwg.mxu0
    %2659 = vmatpush.bf16.msra.mxu0 %v2569
    %2660 = vmatpush.bf16.msra.mxu0 %v2568
    %2661 = vmatpush.bf16.msra.mxu0 %v2567
    %2662 = vmatpush.bf16.msra.mxu0 %v2566
    %2663 = vmatpush.bf16.msra.mxu0 %v2565
    %2664 = vmatpush.bf16.msra.mxu0 %v2564
    %2665 = vmatpush.bf16.msra.mxu0 %v2563
    %2666 = vmatpush.bf16.msra.mxu0 %v2562
    %2667 = vmatmul.bf16.gmra.mxu0 %v2337
    %v2668 = vpop.f32.mrf.mxu0
    %v2669 = vadd.f32 %v2650, %v2668
    %v2670 = vpop.f32.mrf.mxu0
    %v2671 = vadd.f32 %v2652, %v2670
    %2672 = vmatmul.bf16.gmra.mxu0 %v2341
    %v2673 = vpop.f32.mrf.mxu0
    %v2674 = vadd.f32 %v2655, %v2673
    %v2675 = vpop.f32.mrf.mxu0
    %v2676 = vadd.f32 %v2657, %v2675
    %2677 = vdwg.mxu0
    %v2678 = vadd.f32 %v1250, %v2669
    %v2679 = vadd.f32 %v1251, %v2671
    %v2680 = vadd.f32 %v1252, %v2674
    %v2681 = vadd.f32 %v1253, %v2676
    %2682 = vst [vmem:[#allocation15] sm:$0xff] %v2678
    %2683 = vst [vmem:[#allocation15 + $0x8] sm:$0xff] %v2679
    %2684 = vst [vmem:[#allocation15 + $0x10] sm:$0xff] %v2680
    %2685 = vst [vmem:[#allocation15 + $0x18] sm:$0xff] %v2681
    // Predicated region
    $region78: #{tpu_custom_call.1} parent=1 // pred_check
      _
    $region79: #{tpu_custom_call.1} parent=1 // pred_check_branch
      %2687 = sbr.rel (0) target = $region81
    $region80: #{tpu_custom_call.1} parent=1 // pred_region
      %2689 = vsyncadd [#allocation5], 0
      %s2690 = sshll.u32 [#allocation15], 4
      %s2691 = int_to_ptr.vmem [resolvable:$true] %s2690
      %s2692 = sshll.u32 %s12, 4
      %s2693 = int_to_ptr.hbm [resolvable:$true] %s2692
      %2698 = dma.vmem_to_hbm [thread:$0]  %s2691, 512, %s2693, [#allocation5], 128, 128, 8
    $region81: #{tpu_custom_call.1} parent=1 // pred_fallthru
      _
    // Predicated region
    $region82: #{tpu_custom_call.1} parent=1 // pred_check
      _
    $region83: #{tpu_custom_call.1} parent=1 // pred_check_branch
      %2700 = sbr.rel (0) target = $region85
    $region84: #{tpu_custom_call.1} parent=1 // pred_region
      %2702 = dma.done [#allocation5], 512
    $region85: #{tpu_custom_call.1} parent=1 // pred_fallthru
      _
    %2703 = vsyncpa [#allocation4], 1
    %2704 = vsyncpa [#allocation7], 1
    %2705 = vsyncpa [#allocation10], 1
    %2706 = vsyncpa [#allocation13], 1
    %2707 = vsyncpa [#allocation5], 1

// kernel: tpu_custom_call.1
$region0: #{tpu_custom_call.1}
  #allocation0 [shape = 'u32[]', space=smem, size = 0x4, offset = 0x4, fixed_abs, tag = 'smem constant byte address 0x4 - core index']
  #allocation1 [shape = 'u32[72,128]{1,0:T(1,128)}', space=vmem, size = 0x9000, scoped, tag = 'internal scratch']
  #allocation2 [shape = 'f32[32,128]{1,0:T(8,128)}', space=vmem, size = 0x4000, scoped, tag = 'scratch operand']
  %s0 = inlined_call_operand.hbm [shape: f32[2,16,128], index: 0, kind: input, shape index: {}]
  %s1 = inlined_call_operand.hbm [shape: f32[1,128], index: 1, kind: input, shape index: {}]
  %s2 = inlined_call_operand.vmem [shape: f32[1,128], index: 2, kind: input, shape index: {}]
  %s3 = inlined_call_operand.hbm [shape: bf16[128,384], index: 3, kind: input, shape index: {}]
  %s4 = inlined_call_operand.hbm [shape: bf16[128,128], index: 4, kind: input, shape index: {}]
  %s5 = inlined_call_operand.vmem [shape: f32[1,128], index: 5, kind: input, shape index: {}]
  %s6 = inlined_call_operand.vmem [shape: f32[1,128], index: 6, kind: input, shape index: {}]
  %s7 = inlined_call_operand.hbm [shape: f32[1,128], index: 7, kind: input, shape index: {}]
  %s8 = inlined_call_operand.hbm [shape: bf16[128,512], index: 8, kind: input, shape index: {}]
  %s9 = inlined_call_operand.vmem [shape: f32[1,512], index: 9, kind: input, shape index: {}]
  %s10 = inlined_call_operand.hbm [shape: bf16[512,128], index: 10, kind: input, shape index: {}]
  %s11 = inlined_call_operand.vmem [shape: f32[1,128], index: 11, kind: input, shape index: {}]
  %s12 = inlined_call_operand.hbm [shape: f32[2,16,128], index: 12, kind: output, shape index: {}]
  %s13 = sld [smem:[#allocation0]]
  $region86: #{tpu_custom_call.1} parent=0
    _
  %s15 = ssub.s32 1, %s13
  %s16 = scalar_select 0, %s15, %s13
  $region1: #{tpu_custom_call.1} parent=0
    #allocation3 [shape = 'u8[16384]{0}', space=vmem, size = 0x4000, scoped, tag = 'input window, operand 0, single buffered']
    #allocation4 [shape = 's32[1]{0}', space=sflag, size = 0x4, scoped, tag = 'scoped memory for tpu_custom_call.1']
    #allocation5 [shape = 's32[1]{0}', space=sflag, size = 0x4, scoped, tag = 'scoped memory for tpu_custom_call.1']
    #allocation6 [shape = 'u8[512]{0}', space=vmem, size = 0x400, scoped, tag = 'input window, operand 1, single buffered']
    #allocation7 [shape = 's32[1]{0}', space=sflag, size = 0x4, scoped, tag = 'scoped memory for tpu_custom_call.1']
    #allocation8 [shape = 'u8[98304]{0}', space=vmem, size = 0x18000, scoped, tag = 'input window, operand 3, single buffered']
    #allocation9 [shape = 'u8[32768]{0}', space=vmem, size = 0x8000, scoped, tag = 'input window, operand 4, single buffered']
    #allocation10 [shape = 's32[1]{0}', space=sflag, size = 0x4, scoped, tag = 'scoped memory for tpu_custom_call.1']
    #allocation11 [shape = 'u8[512]{0}', space=vmem, size = 0x400, scoped, tag = 'input window, operand 7, single buffered']
    #allocation12 [shape = 'u8[131072]{0}', space=vmem, size = 0x20000, scoped, tag = 'input window, operand 8, single buffered']
    #allocation13 [shape = 's32[1]{0}', space=sflag, size = 0x4, scoped, tag = 'scoped memory for tpu_custom_call.1']
    #allocation14 [shape = 'u8[131072]{0}', space=vmem, size = 0x20000, scoped, tag = 'input window, operand 10, single buffered']
    #allocation15 [shape = 'u8[16384]{0}', space=vmem, size = 0x4000, scoped, tag = 'output window, operand 0, single buffered']
    %17 = vsyncpa [#allocation4], 0
    %18 = vsyncpa [#allocation7], 0
    %19 = vsyncpa [#allocation10], 0
    %20 = vsyncpa [#allocation13], 0
    %21 = vsyncpa [#allocation5], 0
    // Predicated region
    $region2: #{tpu_custom_call.1} parent=1 // pred_check
      _
    $region3: #{tpu_custom_call.1} parent=1 // pred_check_branch
      %23 = sbr.rel (0) target = $region5
    $region4: #{tpu_custom_call.1} parent=1 // pred_region
      %25 = vsyncadd [#allocation4], 0
      %s26 = sshll.u32 %s0, 4
      %s27 = int_to_ptr.hbm [resolvable:$true] %s26
      %s28 = sshll.u32 [#allocation3], 4
      %s29 = int_to_ptr.vmem [resolvable:$true] %s28
      %34 = dma.hbm_to_vmem [thread:$0]  %s27, 512, %s29, [#allocation4], 128, 128, 8
    $region5: #{tpu_custom_call.1} parent=1 // pred_fallthru
      _
    // Predicated region
    $region6: #{tpu_custom_call.1} parent=1 // pred_check
      _
    $region7: #{tpu_custom_call.1} parent=1 // pred_check_branch
      %36 = sbr.rel (0) target = $region9
    $region8: #{tpu_custom_call.1} parent=1 // pred_region
      %38 = vsyncadd [#allocation7], 0
      %s40 = sshll.u32 %s1, 4
      %s41 = int_to_ptr.hbm [resolvable:$true] %s40
      %s42 = sshll.u32 [#allocation6], 4
      %s43 = int_to_ptr.vmem [resolvable:$true] %s42
      %45 = dma.hbm_to_vmem [thread:$0]  %s41, 16, %s43, [#allocation7]
    $region9: #{tpu_custom_call.1} parent=1 // pred_fallthru
      _
    // Predicated region
    $region10: #{tpu_custom_call.1} parent=1 // pred_check
      _
    $region11: #{tpu_custom_call.1} parent=1 // pred_check_branch
      %47 = sbr.rel (0) target = $region13
    $region12: #{tpu_custom_call.1} parent=1 // pred_region
      _
    $region13: #{tpu_custom_call.1} parent=1 // pred_fallthru
      _
    // Predicated region
    $region14: #{tpu_custom_call.1} parent=1 // pred_check
      _
    $region15: #{tpu_custom_call.1} parent=1 // pred_check_branch
      %49 = sbr.rel (0) target = $region17
    $region16: #{tpu_custom_call.1} parent=1 // pred_region
      %51 = vsyncadd [#allocation7], 0
      %s52 = sshll.u32 %s3, 4
      %s53 = int_to_ptr.hbm [resolvable:$true] %s52
      %s54 = sshll.u32 [#allocation8], 4
      %s55 = int_to_ptr.vmem [resolvable:$true] %s54
      %60 = dma.hbm_to_vmem [thread:$0]  %s53, 3072, %s55, [#allocation7], 192, 192, 12
    $region17: #{tpu_custom_call.1} parent=1 // pred_fallthru
      _
    // Predicated region
    $region18: #{tpu_custom_call.1} parent=1 // pred_check
      _
    $region19: #{tpu_custom_call.1} parent=1 // pred_check_branch
      %62 = sbr.rel (0) target = $region21
    $region20: #{tpu_custom_call.1} parent=1 // pred_region
      %64 = vsyncadd [#allocation10], 0
      %s65 = sshll.u32 %s4, 4
      %s66 = int_to_ptr.hbm [resolvable:$true] %s65
      %s67 = sshll.u32 [#allocation9], 4
      %s68 = int_to_ptr.vmem [resolvable:$true] %s67
      %73 = dma.hbm_to_vmem [thread:$0]  %s66, 1024, %s68, [#allocation10], 64, 64, 4
    $region21: #{tpu_custom_call.1} parent=1 // pred_fallthru
      _
    // Predicated region
    $region22: #{tpu_custom_call.1} parent=1 // pred_check
      _
    $region23: #{tpu_custom_call.1} parent=1 // pred_check_branch
      %75 = sbr.rel (0) target = $region25
    $region24: #{tpu_custom_call.1} parent=1 // pred_region
      _
    $region25: #{tpu_custom_call.1} parent=1 // pred_fallthru
      _
    // Predicated region
    $region26: #{tpu_custom_call.1} parent=1 // pred_check
      _
    $region27: #{tpu_custom_call.1} parent=1 // pred_check_branch
      %77 = sbr.rel (0) target = $region29
    $region28: #{tpu_custom_call.1} parent=1 // pred_region
      _
    $region29: #{tpu_custom_call.1} parent=1 // pred_fallthru
      _
    // Predicated region
    $region30: #{tpu_custom_call.1} parent=1 // pred_check
      _
    $region31: #{tpu_custom_call.1} parent=1 // pred_check_branch
      %79 = sbr.rel (0) target = $region33
    $region32: #{tpu_custom_call.1} parent=1 // pred_region
      %81 = vsyncadd [#allocation10], 0
      %s83 = sshll.u32 %s7, 4
      %s84 = int_to_ptr.hbm [resolvable:$true] %s83
      %s85 = sshll.u32 [#allocation11], 4
      %s86 = int_to_ptr.vmem [resolvable:$true] %s85
      %88 = dma.hbm_to_vmem [thread:$0]  %s84, 16, %s86, [#allocation10]
    $region33: #{tpu_custom_call.1} parent=1 // pred_fallthru
      _
    // Predicated region
    $region34: #{tpu_custom_call.1} parent=1 // pred_check
      _
    $region35: #{tpu_custom_call.1} parent=1 // pred_check_branch
      %90 = sbr.rel (0) target = $region37
    $region36: #{tpu_custom_call.1} parent=1 // pred_region
      %92 = vsyncadd [#allocation13], 0
      %s93 = sshll.u32 %s8, 4
      %s94 = int_to_ptr.hbm [resolvable:$true] %s93
      %s95 = sshll.u32 [#allocation12], 4
      %s96 = int_to_ptr.vmem [resolvable:$true] %s95
      %101 = dma.hbm_to_vmem [thread:$0]  %s94, 4096, %s96, [#allocation13], 256, 256, 16
    $region37: #{tpu_custom_call.1} parent=1 // pred_fallthru
      _
    // Predicated region
    $region38: #{tpu_custom_call.1} parent=1 // pred_check
      _
    $region39: #{tpu_custom_call.1} parent=1 // pred_check_branch
      %103 = sbr.rel (0) target = $region41
    $region40: #{tpu_custom_call.1} parent=1 // pred_region
      _
    $region41: #{tpu_custom_call.1} parent=1 // pred_fallthru
      _
    // Predicated region
    $region42: #{tpu_custom_call.1} parent=1 // pred_check
      _
    $region43: #{tpu_custom_call.1} parent=1 // pred_check_branch
      %105 = sbr.rel (0) target = $region45
    $region44: #{tpu_custom_call.1} parent=1 // pred_region
      %107 = vsyncadd [#allocation13], 0
      %s108 = sshll.u32 %s10, 4
      %s109 = int_to_ptr.hbm [resolvable:$true] %s108
      %s110 = sshll.u32 [#allocation14], 4
      %s111 = int_to_ptr.vmem [resolvable:$true] %s110
      %116 = dma.hbm_to_vmem [thread:$0]  %s109, 4096, %s111, [#allocation13], 64, 64, 4
    $region45: #{tpu_custom_call.1} parent=1 // pred_fallthru
      _
    // Predicated region
    $region46: #{tpu_custom_call.1} parent=1 // pred_check
      _
    $region47: #{tpu_custom_call.1} parent=1 // pred_check_branch
      %118 = sbr.rel (0) target = $region49
    $region48: #{tpu_custom_call.1} parent=1 // pred_region
      _
    $region49: #{tpu_custom_call.1} parent=1 // pred_fallthru
      _
    // Predicated region
    $region50: #{tpu_custom_call.1} parent=1 // pred_check
      _
    $region51: #{tpu_custom_call.1} parent=1 // pred_check_branch
      %120 = sbr.rel (0) target = $region53
    $region52: #{tpu_custom_call.1} parent=1 // pred_region
      %122 = dma.done [#allocation4], 512
    $region53: #{tpu_custom_call.1} parent=1 // pred_fallthru
      _
    // Predicated region
    $region54: #{tpu_custom_call.1} parent=1 // pred_check
      _
    $region55: #{tpu_custom_call.1} parent=1 // pred_check_branch
      %124 = sbr.rel (0) target = $region57
    $region56: #{tpu_custom_call.1} parent=1 // pred_region
      %126 = dma.done [#allocation7], 16
    $region57: #{tpu_custom_call.1} parent=1 // pred_fallthru
      _
    // Predicated region
    $region58: #{tpu_custom_call.1} parent=1 // pred_check
      _
    $region59: #{tpu_custom_call.1} parent=1 // pred_check_branch
      %128 = sbr.rel (0) target = $region61
    $region60: #{tpu_custom_call.1} parent=1 // pred_region
      %130 = dma.done [#allocation7], 3072
    $region61: #{tpu_custom_call.1} parent=1 // pred_fallthru
      _
    // Predicated region
    $region62: #{tpu_custom_call.1} parent=1 // pred_check
      _
    $region63: #{tpu_custom_call.1} parent=1 // pred_check_branch
      %132 = sbr.rel (0) target = $region65
    $region64: #{tpu_custom_call.1} parent=1 // pred_region
      %134 = dma.done [#allocation10], 1024
    $region65: #{tpu_custom_call.1} parent=1 // pred_fallthru
      _
    // Predicated region
    $region66: #{tpu_custom_call.1} parent=1 // pred_check
      _
    $region67: #{tpu_custom_call.1} parent=1 // pred_check_branch
      %136 = sbr.rel (0) target = $region69
    $region68: #{tpu_custom_call.1} parent=1 // pred_region
      %138 = dma.done [#allocation10], 16
    $region69: #{tpu_custom_call.1} parent=1 // pred_fallthru
      _
    // Predicated region
    $region70: #{tpu_custom_call.1} parent=1 // pred_check
      _
    $region71: #{tpu_custom_call.1} parent=1 // pred_check_branch
      %140 = sbr.rel (0) target = $region73
    $region72: #{tpu_custom_call.1} parent=1 // pred_region
      %142 = dma.done [#allocation13], 4096
    $region73: #{tpu_custom_call.1} parent=1 // pred_fallthru
      _
    // Predicated region
    $region74: #{tpu_custom_call.1} parent=1 // pred_check
      _
    $region75: #{tpu_custom_call.1} parent=1 // pred_check_branch
      %144 = sbr.rel (0) target = $region77
    $region76: #{tpu_custom_call.1} parent=1 // pred_region
      %146 = dma.done [#allocation13], 4096
    $region77: #{tpu_custom_call.1} parent=1 // pred_fallthru
      _
    %v148 = vld [vmem:[#allocation3] sm:$0xff]
    %v149 = vld [vmem:[#allocation3 + $0x8] sm:$0xff]
    %v150 = vld [vmem:[#allocation3 + $0x10] sm:$0xff]
    %v151 = vld [vmem:[#allocation3 + $0x18] sm:$0xff]
    %v152 = vld [vmem:[#allocation6] sm:$0x1]
    %v153 = vld [vmem:[%s2] sm:$0x1]
    %154 = vadd.xlane.f32.xlu0 %v148
    %v155 = vpop.xlane.xlu0 %154
    %156 = vadd.xlane.f32.xlu0 %v149
    %v157 = vpop.xlane.xlu0 %156
    %158 = vadd.xlane.f32.xlu0 %v150
    %v159 = vpop.xlane.xlu0 %158
    %160 = vadd.xlane.f32.xlu0 %v151
    %v161 = vpop.xlane.xlu0 %160
    %v162 = vrcp.pop 128.0
    %v163 = vmul.f32 128.0, %v162
    %v164 = vsub.f32 1.0, %v163
    %v165 = vmul.f32 %v162, %v164
    %v166 = vadd.f32 %v162, %v165
    %vm167 = vweird.f32 %v162
    %v168 = vsel %vm167, %v162, %v166
    %v169 = vmul.f32 %v155, %v168
    %v170 = vmul.f32 %v157, %v168
    %v171 = vmul.f32 %v159, %v168
    %v172 = vmul.f32 %v161, %v168
    %v173 = vsub.f32 %v148, %v169
    %v174 = vsub.f32 %v149, %v170
    %v175 = vsub.f32 %v150, %v171
    %v176 = vsub.f32 %v151, %v172
    %v177 = vmul.f32 %v173, %v173
    %v178 = vmul.f32 %v174, %v174
    %v179 = vmul.f32 %v175, %v175
    %v180 = vmul.f32 %v176, %v176
    %181 = vadd.xlane.f32.xlu0 %v177
    %v182 = vpop.xlane.xlu0 %181
    %183 = vadd.xlane.f32.xlu0 %v178
    %v184 = vpop.xlane.xlu0 %183
    %185 = vadd.xlane.f32.xlu0 %v179
    %v186 = vpop.xlane.xlu0 %185
    %187 = vadd.xlane.f32.xlu0 %v180
    %v188 = vpop.xlane.xlu0 %187
    %v189 = vmul.f32 %v182, %v168
    %v190 = vmul.f32 %v184, %v168
    %v191 = vmul.f32 %v186, %v168
    %v192 = vmul.f32 %v188, %v168
    %v193 = vadd.f32 %v189, 1e-05
    %v194 = vadd.f32 %v190, 1e-05
    %v195 = vadd.f32 %v191, 1e-05
    %v196 = vadd.f32 %v192, 1e-05
    %v197 = vrsqrt.pop %v193
    %v198 = vmul.f32 %v197, %v193
    %v199 = vmul.f32 %v198, %v197
    %v200 = vmul.f32 0.5, %v199
    %v201 = vsub.f32 1.5, %v200
    %v202 = vmul.f32 %v197, %v201
    %vm203 = vweird.f32 %v193
    %vm204 = vweird.f32 %v197
    %vm205 = vmor %vm203, %vm204
    %v206 = vsel %vm205, %v197, %v202
    %v207 = vrsqrt.pop %v194
    %v208 = vmul.f32 %v207, %v194
    %v209 = vmul.f32 %v208, %v207
    %v210 = vmul.f32 0.5, %v209
    %v211 = vsub.f32 1.5, %v210
    %v212 = vmul.f32 %v207, %v211
    %vm213 = vweird.f32 %v194
    %vm214 = vweird.f32 %v207
    %vm215 = vmor %vm213, %vm214
    %v216 = vsel %vm215, %v207, %v212
    %v217 = vrsqrt.pop %v195
    %v218 = vmul.f32 %v217, %v195
    %v219 = vmul.f32 %v218, %v217
    %v220 = vmul.f32 0.5, %v219
    %v221 = vsub.f32 1.5, %v220
    %v222 = vmul.f32 %v217, %v221
    %vm223 = vweird.f32 %v195
    %vm224 = vweird.f32 %v217
    %vm225 = vmor %vm223, %vm224
    %v226 = vsel %vm225, %v217, %v222
    %v227 = vrsqrt.pop %v196
    %v228 = vmul.f32 %v227, %v196
    %v229 = vmul.f32 %v228, %v227
    %v230 = vmul.f32 0.5, %v229
    %v231 = vsub.f32 1.5, %v230
    %v232 = vmul.f32 %v227, %v231
    %vm233 = vweird.f32 %v196
    %vm234 = vweird.f32 %v227
    %vm235 = vmor %vm233, %vm234
    %v236 = vsel %vm235, %v227, %v232
    %v237 = vmul.f32 %v173, %v206
    %v238 = vmul.f32 %v174, %v216
    %v239 = vmul.f32 %v175, %v226
    %v240 = vmul.f32 %v176, %v236
    %v242 = vperm.slane %v152, 0
    %v244 = vmul.f32 %v237, %v242
    %v245 = vmul.f32 %v238, %v242
    %v246 = vmul.f32 %v239, %v242
    %v247 = vmul.f32 %v240, %v242
    %v249 = vperm.slane %v153, 0
    %v251 = vadd.f32 %v244, %v249
    %v252 = vadd.f32 %v245, %v249
    %v253 = vadd.f32 %v246, %v249
    %v254 = vadd.f32 %v247, %v249
    %v255 = vpack.c.bf16 %v252, %v251
    %v256 = vpack.c.bf16 %v254, %v253
    %v257 = vld [vmem:[#allocation8] sm:$0xff]
    %v258 = vld [vmem:[#allocation8 + $0x8] sm:$0xf]
    %v259 = vld [vmem:[#allocation8 + $0xc] sm:$0xff]
    %v260 = vld [vmem:[#allocation8 + $0x14] sm:$0xf]
    %v261 = vld [vmem:[#allocation8 + $0x18] sm:$0xff]
    %v262 = vld [vmem:[#allocation8 + $0x20] sm:$0xf]
    %v263 = vld [vmem:[#allocation8 + $0x24] sm:$0xff]
    %v264 = vld [vmem:[#allocation8 + $0x2c] sm:$0xf]
    %v265 = vld [vmem:[#allocation8 + $0x30] sm:$0xff]
    %v266 = vld [vmem:[#allocation8 + $0x38] sm:$0xf]
    %v267 = vld [vmem:[#allocation8 + $0x3c] sm:$0xff]
    %v268 = vld [vmem:[#allocation8 + $0x44] sm:$0xf]
    %v269 = vld [vmem:[#allocation8 + $0x48] sm:$0xff]
    %v270 = vld [vmem:[#allocation8 + $0x50] sm:$0xf]
    %v271 = vld [vmem:[#allocation8 + $0x54] sm:$0xff]
    %v272 = vld [vmem:[#allocation8 + $0x5c] sm:$0xf]
    %v273 = vld [vmem:[#allocation8 + $0x60] sm:$0xff]
    %v274 = vld [vmem:[#allocation8 + $0x68] sm:$0xf]
    %v275 = vld [vmem:[#allocation8 + $0x6c] sm:$0xff]
    %v276 = vld [vmem:[#allocation8 + $0x74] sm:$0xf]
    %v277 = vld [vmem:[#allocation8 + $0x78] sm:$0xff]
    %v278 = vld [vmem:[#allocation8 + $0x80] sm:$0xf]
    %v279 = vld [vmem:[#allocation8 + $0x84] sm:$0xff]
    %v280 = vld [vmem:[#allocation8 + $0x8c] sm:$0xf]
    %v281 = vld [vmem:[#allocation8 + $0x90] sm:$0xff]
    %v282 = vld [vmem:[#allocation8 + $0x98] sm:$0xf]
    %v283 = vld [vmem:[#allocation8 + $0x9c] sm:$0xff]
    %v284 = vld [vmem:[#allocation8 + $0xa4] sm:$0xf]
    %v285 = vld [vmem:[#allocation8 + $0xa8] sm:$0xff]
    %v286 = vld [vmem:[#allocation8 + $0xb0] sm:$0xf]
    %v287 = vld [vmem:[#allocation8 + $0xb4] sm:$0xff]
    %v288 = vld [vmem:[#allocation8 + $0xbc] sm:$0xf]
    %v321 = vunpack.c.l.b16 %v257
    %v322 = vunpack.c.h.b16 %v257
    %v323 = vunpack.c.l.b16 %v258
    %v324 = vunpack.c.l.b16 %v259
    %v325 = vunpack.c.h.b16 %v259
    %v326 = vunpack.c.l.b16 %v260
    %v327 = vunpack.c.l.b16 %v261
    %v328 = vunpack.c.h.b16 %v261
    %v329 = vunpack.c.l.b16 %v262
    %v330 = vunpack.c.l.b16 %v263
    %v331 = vunpack.c.h.b16 %v263
    %v332 = vunpack.c.l.b16 %v264
    %v333 = vunpack.c.l.b16 %v265
    %v334 = vunpack.c.h.b16 %v265
    %v335 = vunpack.c.l.b16 %v266
    %v336 = vunpack.c.l.b16 %v267
    %v337 = vunpack.c.h.b16 %v267
    %v338 = vunpack.c.l.b16 %v268
    %v339 = vunpack.c.l.b16 %v269
    %v340 = vunpack.c.h.b16 %v269
    %v341 = vunpack.c.l.b16 %v270
    %v342 = vunpack.c.l.b16 %v271
    %v343 = vunpack.c.h.b16 %v271
    %v344 = vunpack.c.l.b16 %v272
    %v345 = vunpack.c.l.b16 %v273
    %v346 = vunpack.c.h.b16 %v273
    %v347 = vunpack.c.l.b16 %v274
    %v348 = vunpack.c.l.b16 %v275
    %v349 = vunpack.c.h.b16 %v275
    %v350 = vunpack.c.l.b16 %v276
    %v351 = vunpack.c.l.b16 %v277
    %v352 = vunpack.c.h.b16 %v277
    %v353 = vunpack.c.l.b16 %v278
    %v354 = vunpack.c.l.b16 %v279
    %v355 = vunpack.c.h.b16 %v279
    %v356 = vunpack.c.l.b16 %v280
    %v357 = vunpack.c.l.b16 %v281
    %v358 = vunpack.c.h.b16 %v281
    %v359 = vunpack.c.l.b16 %v282
    %v360 = vunpack.c.l.b16 %v283
    %v361 = vunpack.c.h.b16 %v283
    %v362 = vunpack.c.l.b16 %v284
    %v363 = vunpack.c.l.b16 %v285
    %v364 = vunpack.c.h.b16 %v285
    %v365 = vunpack.c.l.b16 %v286
    %v366 = vunpack.c.l.b16 %v287
    %v367 = vunpack.c.h.b16 %v287
    %v368 = vunpack.c.l.b16 %v288
    %v369 = vpack.c.b16 %v324, %v321
    %v370 = vpack.c.b16 %v325, %v322
    %v371 = vpack.c.b16 %v326, %v323
    %v372 = vpack.c.b16 %v330, %v327
    %v373 = vpack.c.b16 %v331, %v328
    %v374 = vpack.c.b16 %v332, %v329
    %v375 = vpack.c.b16 %v336, %v333
    %v376 = vpack.c.b16 %v337, %v334
    %v377 = vpack.c.b16 %v338, %v335
    %v378 = vpack.c.b16 %v342, %v339
    %v379 = vpack.c.b16 %v343, %v340
    %v380 = vpack.c.b16 %v344, %v341
    %v381 = vpack.c.b16 %v348, %v345
    %v382 = vpack.c.b16 %v349, %v346
    %v383 = vpack.c.b16 %v350, %v347
    %v384 = vpack.c.b16 %v354, %v351
    %v385 = vpack.c.b16 %v355, %v352
    %v386 = vpack.c.b16 %v356, %v353
    %v387 = vpack.c.b16 %v360, %v357
    %v388 = vpack.c.b16 %v361, %v358
    %v389 = vpack.c.b16 %v362, %v359
    %v390 = vpack.c.b16 %v366, %v363
    %v391 = vpack.c.b16 %v367, %v364
    %v392 = vpack.c.b16 %v368, %v365
    %417 = vmatpush.bf16.msra.mxu0 %v390
    %418 = vmatpush.bf16.msra.mxu0 %v387
    %419 = vmatpush.bf16.msra.mxu0 %v384
    %420 = vmatpush.bf16.msra.mxu0 %v381
    %421 = vmatpush.bf16.msra.mxu0 %v378
    %422 = vmatpush.bf16.msra.mxu0 %v375
    %423 = vmatpush.bf16.msra.mxu0 %v372
    %424 = vmatpush.bf16.msra.mxu0 %v369
    %425 = vmatmul.bf16.gmra.mxu0 %v255
    %v426 = vpop.f32.mrf.mxu0
    %v427 = vadd.f32 0.0, %v426
    %v428 = vpop.f32.mrf.mxu0
    %v429 = vadd.f32 0.0, %v428
    %430 = vmatmul.bf16.gmra.mxu0 %v256
    %v431 = vpop.f32.mrf.mxu0
    %v432 = vadd.f32 0.0, %v431
    %v433 = vpop.f32.mrf.mxu0
    %v434 = vadd.f32 0.0, %v433
    %435 = vdwg.mxu0
    %436 = vmatpush.bf16.msra.mxu0 %v391
    %437 = vmatpush.bf16.msra.mxu0 %v388
    %438 = vmatpush.bf16.msra.mxu0 %v385
    %439 = vmatpush.bf16.msra.mxu0 %v382
    %440 = vmatpush.bf16.msra.mxu0 %v379
    %441 = vmatpush.bf16.msra.mxu0 %v376
    %442 = vmatpush.bf16.msra.mxu0 %v373
    %443 = vmatpush.bf16.msra.mxu0 %v370
    %444 = vmatmul.bf16.gmra.mxu0 %v255
    %v445 = vpop.f32.mrf.mxu0
    %v446 = vadd.f32 0.0, %v445
    %v447 = vpop.f32.mrf.mxu0
    %v448 = vadd.f32 0.0, %v447
    %449 = vmatmul.bf16.gmra.mxu0 %v256
    %v450 = vpop.f32.mrf.mxu0
    %v451 = vadd.f32 0.0, %v450
    %v452 = vpop.f32.mrf.mxu0
    %v453 = vadd.f32 0.0, %v452
    %454 = vdwg.mxu0
    %455 = vmatpush.bf16.msra.mxu0 %v392
    %456 = vmatpush.bf16.msra.mxu0 %v389
    %457 = vmatpush.bf16.msra.mxu0 %v386
    %458 = vmatpush.bf16.msra.mxu0 %v383
    %459 = vmatpush.bf16.msra.mxu0 %v380
    %460 = vmatpush.bf16.msra.mxu0 %v377
    %461 = vmatpush.bf16.msra.mxu0 %v374
    %462 = vmatpush.bf16.msra.mxu0 %v371
    %463 = vmatmul.bf16.gmra.mxu0 %v255
    %v464 = vpop.f32.mrf.mxu0
    %v465 = vadd.f32 0.0, %v464
    %v466 = vpop.f32.mrf.mxu0
    %v467 = vadd.f32 0.0, %v466
    %468 = vmatmul.bf16.gmra.mxu0 %v256
    %v469 = vpop.f32.mrf.mxu0
    %v470 = vadd.f32 0.0, %v469
    %v471 = vpop.f32.mrf.mxu0
    %v472 = vadd.f32 0.0, %v471
    %473 = vdwg.mxu0
    %v474 = vpack.c.bf16 %v427, %v427
    %v475 = vpack.c.bf16 %v429, %v429
    %v476 = vpack.c.bf16 %v432, %v432
    %v477 = vpack.c.bf16 %v434, %v434
    %v478 = vpack.c.bf16 %v446, %v446
    %v479 = vpack.c.bf16 %v448, %v448
    %v480 = vpack.c.bf16 %v451, %v451
    %v481 = vpack.c.bf16 %v453, %v453
    %v482 = vpack.c.bf16 %v465, %v465
    %v483 = vpack.c.bf16 %v467, %v467
    %v484 = vpack.c.bf16 %v470, %v470
    %v485 = vpack.c.bf16 %v472, %v472
    %v488 = vunpack.c.l.b16 %v474
    %v489 = vunpack.c.l.b16 %v475
    %v490 = vpack.c.b16 %v489, %v488
    %v493 = vunpack.c.l.b16 %v478
    %v494 = vunpack.c.l.b16 %v479
    %v495 = vpack.c.b16 %v494, %v493
    %vm496 = vcmask 261120
    %v498 = vsel %vm496, %v490, 0
    %v501 = vsel %vm496, %v495, 0
    %503 = vmatpush.bf16.xpose.msra.mxu0 0
    %504 = vmatpush.bf16.xpose.msra.mxu0 0
    %505 = vmatpush.bf16.xpose.msra.mxu0 0
    %506 = vmatpush.bf16.xpose.msra.mxu0 0
    %507 = vmatpush.bf16.xpose.msra.mxu0 0
    %508 = vmatpush.bf16.xpose.msra.mxu0 0
    %509 = vmatpush.bf16.xpose.msra.mxu0 0
    %510 = vmatpush.bf16.xpose.msra.mxu0 %v501
    %511 = vmatmul.bf16.gmra.mxu0 %v498
    %v512 = vpop.f32.mrf.mxu0
    %v513 = vadd.f32 0.0, %v512
    %v514 = vpop.f32.mrf.mxu0
    %v515 = vadd.f32 0.0, %v514
    %516 = vdwg.mxu0
    %v519 = vunpack.c.l.b16 %v476
    %v520 = vunpack.c.l.b16 %v477
    %v521 = vpack.c.b16 %v520, %v519
    %v524 = vunpack.c.l.b16 %v480
    %v525 = vunpack.c.l.b16 %v481
    %v526 = vpack.c.b16 %v525, %v524
    %v528 = vsel %vm496, %v521, 0
    %v531 = vsel %vm496, %v526, 0
    %533 = vmatpush.bf16.xpose.msra.mxu0 0
    %534 = vmatpush.bf16.xpose.msra.mxu0 0
    %535 = vmatpush.bf16.xpose.msra.mxu0 0
    %536 = vmatpush.bf16.xpose.msra.mxu0 0
    %537 = vmatpush.bf16.xpose.msra.mxu0 0
    %538 = vmatpush.bf16.xpose.msra.mxu0 0
    %539 = vmatpush.bf16.xpose.msra.mxu0 0
    %540 = vmatpush.bf16.xpose.msra.mxu0 %v531
    %541 = vmatmul.bf16.gmra.mxu0 %v528
    %v542 = vpop.f32.mrf.mxu0
    %v543 = vadd.f32 0.0, %v542
    %v544 = vpop.f32.mrf.mxu0
    %v545 = vadd.f32 0.0, %v544
    %546 = vdwg.mxu0
    %vm547 = vcmask 130048
    %v548 = vsel %vm547, %v513, -inf
    %549 = vmax.xlane.f32.xlu0 %v548
    %v550 = vpop.xlane.xlu0 %549
    %v551 = vsel %vm547, %v515, -inf
    %552 = vmax.xlane.f32.xlu0 %v551
    %v553 = vpop.xlane.xlu0 %552
    %v554 = vsel %vm547, %v543, -inf
    %555 = vmax.xlane.f32.xlu0 %v554
    %v556 = vpop.xlane.xlu0 %555
    %v557 = vsel %vm547, %v545, -inf
    %558 = vmax.xlane.f32.xlu0 %v557
    %v559 = vpop.xlane.xlu0 %558
    %v560 = vsub.f32 %v513, %v550
    %v561 = vsub.f32 %v515, %v553
    %v562 = vsub.f32 %v543, %v556
    %v563 = vsub.f32 %v545, %v559
    %v564 = vmul.f32 %v560, 1.442695
    %v565 = vpow.pop %v564
    %v566 = vmul.f32 %v561, 1.442695
    %v567 = vpow.pop %v566
    %v568 = vmul.f32 %v562, 1.442695
    %v569 = vpow.pop %v568
    %v570 = vmul.f32 %v563, 1.442695
    %v571 = vpow.pop %v570
    %v572 = vsel %vm547, %v565, 0.0
    %573 = vadd.xlane.f32.xlu0 %v572
    %v574 = vpop.xlane.xlu0 %573
    %v575 = vsel %vm547, %v567, 0.0
    %576 = vadd.xlane.f32.xlu0 %v575
    %v577 = vpop.xlane.xlu0 %576
    %v578 = vsel %vm547, %v569, 0.0
    %579 = vadd.xlane.f32.xlu0 %v578
    %v580 = vpop.xlane.xlu0 %579
    %v581 = vsel %vm547, %v571, 0.0
    %582 = vadd.xlane.f32.xlu0 %v581
    %v583 = vpop.xlane.xlu0 %582
    %v584 = vpack.c.bf16 %v565, %v565
    %v585 = vpack.c.bf16 %v567, %v567
    %v586 = vpack.c.bf16 %v569, %v569
    %v587 = vpack.c.bf16 %v571, %v571
    %v590 = vunpack.c.l.b16 %v584
    %v591 = vunpack.c.l.b16 %v585
    %v592 = vpack.c.b16 %v591, %v590
    %v595 = vunpack.c.l.b16 %v482
    %v596 = vunpack.c.l.b16 %v483
    %v597 = vpack.c.b16 %v596, %v595
    %v600 = vsel %vm547, %v592, 0
    %602 = vmatpush.bf16.msra.mxu0 0
    %603 = vmatpush.bf16.msra.mxu0 0
    %604 = vmatpush.bf16.msra.mxu0 0
    %605 = vmatpush.bf16.msra.mxu0 0
    %606 = vmatpush.bf16.msra.mxu0 0
    %607 = vmatpush.bf16.msra.mxu0 0
    %608 = vmatpush.bf16.msra.mxu0 0
    %609 = vmatpush.bf16.msra.mxu0 %v597
    %610 = vmatmul.bf16.gmra.mxu0 %v600
    %v611 = vpop.f32.mrf.mxu0
    %v612 = vadd.f32 0.0, %v611
    %v613 = vpop.f32.mrf.mxu0
    %v614 = vadd.f32 0.0, %v613
    %615 = vdwg.mxu0
    %v618 = vunpack.c.l.b16 %v586
    %v619 = vunpack.c.l.b16 %v587
    %v620 = vpack.c.b16 %v619, %v618
    %v623 = vunpack.c.l.b16 %v484
    %v624 = vunpack.c.l.b16 %v485
    %v625 = vpack.c.b16 %v624, %v623
    %v628 = vsel %vm547, %v620, 0
    %630 = vmatpush.bf16.msra.mxu0 0
    %631 = vmatpush.bf16.msra.mxu0 0
    %632 = vmatpush.bf16.msra.mxu0 0
    %633 = vmatpush.bf16.msra.mxu0 0
    %634 = vmatpush.bf16.msra.mxu0 0
    %635 = vmatpush.bf16.msra.mxu0 0
    %636 = vmatpush.bf16.msra.mxu0 0
    %637 = vmatpush.bf16.msra.mxu0 %v625
    %638 = vmatmul.bf16.gmra.mxu0 %v628
    %v639 = vpop.f32.mrf.mxu0
    %v640 = vadd.f32 0.0, %v639
    %v641 = vpop.f32.mrf.mxu0
    %v642 = vadd.f32 0.0, %v641
    %643 = vdwg.mxu0
    %v644 = vrcp.pop %v574
    %v645 = vrcp.pop %v577
    %v646 = vrcp.pop %v580
    %v647 = vrcp.pop %v583
    %v648 = vmul.f32 %v612, %v644
    %v649 = vmul.f32 %v614, %v645
    %v650 = vmul.f32 %v640, %v646
    %v651 = vmul.f32 %v642, %v647
    %652 = vst.msk [vmem:[#allocation2] sm:$0xff] %vm496, %v648
    %653 = vst.msk [vmem:[#allocation2 + $0x8] sm:$0xff] %vm496, %v649
    %654 = vst.msk [vmem:[#allocation2 + $0x10] sm:$0xff] %vm496, %v650
    %655 = vst.msk [vmem:[#allocation2 + $0x18] sm:$0xff] %vm496, %v651
    %656 = vrot.lane.b32.xlu0 %v490, 96
    %v657 = vpop.permute.xlu0 %656
    %658 = vrot.lane.b32.xlu0 %v495, 96
    %v659 = vpop.permute.xlu0 %658
    %v661 = vsel %vm496, %v657, 0
    %v664 = vsel %vm496, %v659, 0
    %666 = vmatpush.bf16.xpose.msra.mxu0 0
    %667 = vmatpush.bf16.xpose.msra.mxu0 0
    %668 = vmatpush.bf16.xpose.msra.mxu0 0
    %669 = vmatpush.bf16.xpose.msra.mxu0 0
    %670 = vmatpush.bf16.xpose.msra.mxu0 0
    %671 = vmatpush.bf16.xpose.msra.mxu0 0
    %672 = vmatpush.bf16.xpose.msra.mxu0 0
    %673 = vmatpush.bf16.xpose.msra.mxu0 %v664
    %674 = vmatmul.bf16.gmra.mxu0 %v661
    %v675 = vpop.f32.mrf.mxu0
    %v676 = vadd.f32 0.0, %v675
    %v677 = vpop.f32.mrf.mxu0
    %v678 = vadd.f32 0.0, %v677
    %679 = vdwg.mxu0
    %680 = vrot.lane.b32.xlu0 %v521, 96
    %v681 = vpop.permute.xlu0 %680
    %682 = vrot.lane.b32.xlu0 %v526, 96
    %v683 = vpop.permute.xlu0 %682
    %v685 = vsel %vm496, %v681, 0
    %v688 = vsel %vm496, %v683, 0
    %690 = vmatpush.bf16.xpose.msra.mxu0 0
    %691 = vmatpush.bf16.xpose.msra.mxu0 0
    %692 = vmatpush.bf16.xpose.msra.mxu0 0
    %693 = vmatpush.bf16.xpose.msra.mxu0 0
    %694 = vmatpush.bf16.xpose.msra.mxu0 0
    %695 = vmatpush.bf16.xpose.msra.mxu0 0
    %696 = vmatpush.bf16.xpose.msra.mxu0 0
    %697 = vmatpush.bf16.xpose.msra.mxu0 %v688
    %698 = vmatmul.bf16.gmra.mxu0 %v685
    %v699 = vpop.f32.mrf.mxu0
    %v700 = vadd.f32 0.0, %v699
    %v701 = vpop.f32.mrf.mxu0
    %v702 = vadd.f32 0.0, %v701
    %703 = vdwg.mxu0
    %v704 = vsel %vm547, %v676, -inf
    %705 = vmax.xlane.f32.xlu0 %v704
    %v706 = vpop.xlane.xlu0 %705
    %v707 = vsel %vm547, %v678, -inf
    %708 = vmax.xlane.f32.xlu0 %v707
    %v709 = vpop.xlane.xlu0 %708
    %v710 = vsel %vm547, %v700, -inf
    %711 = vmax.xlane.f32.xlu0 %v710
    %v712 = vpop.xlane.xlu0 %711
    %v713 = vsel %vm547, %v702, -inf
    %714 = vmax.xlane.f32.xlu0 %v713
    %v715 = vpop.xlane.xlu0 %714
    %v716 = vsub.f32 %v676, %v706
    %v717 = vsub.f32 %v678, %v709
    %v718 = vsub.f32 %v700, %v712
    %v719 = vsub.f32 %v702, %v715
    %v720 = vmul.f32 %v716, 1.442695
    %v721 = vpow.pop %v720
    %v722 = vmul.f32 %v717, 1.442695
    %v723 = vpow.pop %v722
    %v724 = vmul.f32 %v718, 1.442695
    %v725 = vpow.pop %v724
    %v726 = vmul.f32 %v719, 1.442695
    %v727 = vpow.pop %v726
    %v728 = vsel %vm547, %v721, 0.0
    %729 = vadd.xlane.f32.xlu0 %v728
    %v730 = vpop.xlane.xlu0 %729
    %v731 = vsel %vm547, %v723, 0.0
    %732 = vadd.xlane.f32.xlu0 %v731
    %v733 = vpop.xlane.xlu0 %732
    %v734 = vsel %vm547, %v725, 0.0
    %735 = vadd.xlane.f32.xlu0 %v734
    %v736 = vpop.xlane.xlu0 %735
    %v737 = vsel %vm547, %v727, 0.0
    %738 = vadd.xlane.f32.xlu0 %v737
    %v739 = vpop.xlane.xlu0 %738
    %v740 = vpack.c.bf16 %v721, %v721
    %v741 = vpack.c.bf16 %v723, %v723
    %v742 = vpack.c.bf16 %v725, %v725
    %v743 = vpack.c.bf16 %v727, %v727
    %v746 = vunpack.c.l.b16 %v740
    %v747 = vunpack.c.l.b16 %v741
    %v748 = vpack.c.b16 %v747, %v746
    %749 = vrot.lane.b32.xlu0 %v597, 96
    %v750 = vpop.permute.xlu0 %749
    %v753 = vsel %vm547, %v748, 0
    %755 = vmatpush.bf16.msra.mxu0 0
    %756 = vmatpush.bf16.msra.mxu0 0
    %757 = vmatpush.bf16.msra.mxu0 0
    %758 = vmatpush.bf16.msra.mxu0 0
    %759 = vmatpush.bf16.msra.mxu0 0
    %760 = vmatpush.bf16.msra.mxu0 0
    %761 = vmatpush.bf16.msra.mxu0 0
    %762 = vmatpush.bf16.msra.mxu0 %v750
    %763 = vmatmul.bf16.gmra.mxu0 %v753
    %v764 = vpop.f32.mrf.mxu0
    %v765 = vadd.f32 0.0, %v764
    %v766 = vpop.f32.mrf.mxu0
    %v767 = vadd.f32 0.0, %v766
    %768 = vdwg.mxu0
    %v771 = vunpack.c.l.b16 %v742
    %v772 = vunpack.c.l.b16 %v743
    %v773 = vpack.c.b16 %v772, %v771
    %774 = vrot.lane.b32.xlu0 %v625, 96
    %v775 = vpop.permute.xlu0 %774
    %v778 = vsel %vm547, %v773, 0
    %780 = vmatpush.bf16.msra.mxu0 0
    %781 = vmatpush.bf16.msra.mxu0 0
    %782 = vmatpush.bf16.msra.mxu0 0
    %783 = vmatpush.bf16.msra.mxu0 0
    %784 = vmatpush.bf16.msra.mxu0 0
    %785 = vmatpush.bf16.msra.mxu0 0
    %786 = vmatpush.bf16.msra.mxu0 0
    %787 = vmatpush.bf16.msra.mxu0 %v775
    %788 = vmatmul.bf16.gmra.mxu0 %v778
    %v789 = vpop.f32.mrf.mxu0
    %v790 = vadd.f32 0.0, %v789
    %v791 = vpop.f32.mrf.mxu0
    %v792 = vadd.f32 0.0, %v791
    %793 = vdwg.mxu0
    %v794 = vrcp.pop %v730
    %v795 = vrcp.pop %v733
    %v796 = vrcp.pop %v736
    %v797 = vrcp.pop %v739
    %v798 = vmul.f32 %v765, %v794
    %v799 = vmul.f32 %v767, %v795
    %v800 = vmul.f32 %v790, %v796
    %v801 = vmul.f32 %v792, %v797
    %806 = vrot.lane.b32.xlu0 %v798, 32
    %v807 = vpop.permute.xlu0 %806
    %808 = vrot.lane.b32.xlu0 %v799, 32
    %v809 = vpop.permute.xlu0 %808
    %810 = vrot.lane.b32.xlu0 %v800, 32
    %v811 = vpop.permute.xlu0 %810
    %812 = vrot.lane.b32.xlu0 %v801, 32
    %v813 = vpop.permute.xlu0 %812
    %vm818 = vcmask 523520
    %819 = vst.msk [vmem:[#allocation2] sm:$0xff] %vm818, %v807
    %820 = vst.msk [vmem:[#allocation2 + $0x8] sm:$0xff] %vm818, %v809
    %821 = vst.msk [vmem:[#allocation2 + $0x10] sm:$0xff] %vm818, %v811
    %822 = vst.msk [vmem:[#allocation2 + $0x18] sm:$0xff] %vm818, %v813
    %823 = vrot.lane.b32.xlu0 %v490, 64
    %v824 = vpop.permute.xlu0 %823
    %825 = vrot.lane.b32.xlu0 %v495, 64
    %v826 = vpop.permute.xlu0 %825
    %v828 = vsel %vm496, %v824, 0
    %v831 = vsel %vm496, %v826, 0
    %833 = vmatpush.bf16.xpose.msra.mxu0 0
    %834 = vmatpush.bf16.xpose.msra.mxu0 0
    %835 = vmatpush.bf16.xpose.msra.mxu0 0
    %836 = vmatpush.bf16.xpose.msra.mxu0 0
    %837 = vmatpush.bf16.xpose.msra.mxu0 0
    %838 = vmatpush.bf16.xpose.msra.mxu0 0
    %839 = vmatpush.bf16.xpose.msra.mxu0 0
    %840 = vmatpush.bf16.xpose.msra.mxu0 %v831
    %841 = vmatmul.bf16.gmra.mxu0 %v828
    %v842 = vpop.f32.mrf.mxu0
    %v843 = vadd.f32 0.0, %v842
    %v844 = vpop.f32.mrf.mxu0
    %v845 = vadd.f32 0.0, %v844
    %846 = vdwg.mxu0
    %847 = vrot.lane.b32.xlu0 %v521, 64
    %v848 = vpop.permute.xlu0 %847
    %849 = vrot.lane.b32.xlu0 %v526, 64
    %v850 = vpop.permute.xlu0 %849
    %v852 = vsel %vm496, %v848, 0
    %v855 = vsel %vm496, %v850, 0
    %857 = vmatpush.bf16.xpose.msra.mxu0 0
    %858 = vmatpush.bf16.xpose.msra.mxu0 0
    %859 = vmatpush.bf16.xpose.msra.mxu0 0
    %860 = vmatpush.bf16.xpose.msra.mxu0 0
    %861 = vmatpush.bf16.xpose.msra.mxu0 0
    %862 = vmatpush.bf16.xpose.msra.mxu0 0
    %863 = vmatpush.bf16.xpose.msra.mxu0 0
    %864 = vmatpush.bf16.xpose.msra.mxu0 %v855
    %865 = vmatmul.bf16.gmra.mxu0 %v852
    %v866 = vpop.f32.mrf.mxu0
    %v867 = vadd.f32 0.0, %v866
    %v868 = vpop.f32.mrf.mxu0
    %v869 = vadd.f32 0.0, %v868
    %870 = vdwg.mxu0
    %v871 = vsel %vm547, %v843, -inf
    %872 = vmax.xlane.f32.xlu0 %v871
    %v873 = vpop.xlane.xlu0 %872
    %v874 = vsel %vm547, %v845, -inf
    %875 = vmax.xlane.f32.xlu0 %v874
    %v876 = vpop.xlane.xlu0 %875
    %v877 = vsel %vm547, %v867, -inf
    %878 = vmax.xlane.f32.xlu0 %v877
    %v879 = vpop.xlane.xlu0 %878
    %v880 = vsel %vm547, %v869, -inf
    %881 = vmax.xlane.f32.xlu0 %v880
    %v882 = vpop.xlane.xlu0 %881
    %v883 = vsub.f32 %v843, %v873
    %v884 = vsub.f32 %v845, %v876
    %v885 = vsub.f32 %v867, %v879
    %v886 = vsub.f32 %v869, %v882
    %v887 = vmul.f32 %v883, 1.442695
    %v888 = vpow.pop %v887
    %v889 = vmul.f32 %v884, 1.442695
    %v890 = vpow.pop %v889
    %v891 = vmul.f32 %v885, 1.442695
    %v892 = vpow.pop %v891
    %v893 = vmul.f32 %v886, 1.442695
    %v894 = vpow.pop %v893
    %v895 = vsel %vm547, %v888, 0.0
    %896 = vadd.xlane.f32.xlu0 %v895
    %v897 = vpop.xlane.xlu0 %896
    %v898 = vsel %vm547, %v890, 0.0
    %899 = vadd.xlane.f32.xlu0 %v898
    %v900 = vpop.xlane.xlu0 %899
    %v901 = vsel %vm547, %v892, 0.0
    %902 = vadd.xlane.f32.xlu0 %v901
    %v903 = vpop.xlane.xlu0 %902
    %v904 = vsel %vm547, %v894, 0.0
    %905 = vadd.xlane.f32.xlu0 %v904
    %v906 = vpop.xlane.xlu0 %905
    %v907 = vpack.c.bf16 %v888, %v888
    %v908 = vpack.c.bf16 %v890, %v890
    %v909 = vpack.c.bf16 %v892, %v892
    %v910 = vpack.c.bf16 %v894, %v894
    %v913 = vunpack.c.l.b16 %v907
    %v914 = vunpack.c.l.b16 %v908
    %v915 = vpack.c.b16 %v914, %v913
    %916 = vrot.lane.b32.xlu0 %v597, 64
    %v917 = vpop.permute.xlu0 %916
    %v920 = vsel %vm547, %v915, 0
    %922 = vmatpush.bf16.msra.mxu0 0
    %923 = vmatpush.bf16.msra.mxu0 0
    %924 = vmatpush.bf16.msra.mxu0 0
    %925 = vmatpush.bf16.msra.mxu0 0
    %926 = vmatpush.bf16.msra.mxu0 0
    %927 = vmatpush.bf16.msra.mxu0 0
    %928 = vmatpush.bf16.msra.mxu0 0
    %929 = vmatpush.bf16.msra.mxu0 %v917
    %930 = vmatmul.bf16.gmra.mxu0 %v920
    %v931 = vpop.f32.mrf.mxu0
    %v932 = vadd.f32 0.0, %v931
    %v933 = vpop.f32.mrf.mxu0
    %v934 = vadd.f32 0.0, %v933
    %935 = vdwg.mxu0
    %v938 = vunpack.c.l.b16 %v909
    %v939 = vunpack.c.l.b16 %v910
    %v940 = vpack.c.b16 %v939, %v938
    %941 = vrot.lane.b32.xlu0 %v625, 64
    %v942 = vpop.permute.xlu0 %941
    %v945 = vsel %vm547, %v940, 0
    %947 = vmatpush.bf16.msra.mxu0 0
    %948 = vmatpush.bf16.msra.mxu0 0
    %949 = vmatpush.bf16.msra.mxu0 0
    %950 = vmatpush.bf16.msra.mxu0 0
    %951 = vmatpush.bf16.msra.mxu0 0
    %952 = vmatpush.bf16.msra.mxu0 0
    %953 = vmatpush.bf16.msra.mxu0 0
    %954 = vmatpush.bf16.msra.mxu0 %v942
    %955 = vmatmul.bf16.gmra.mxu0 %v945
    %v956 = vpop.f32.mrf.mxu0
    %v957 = vadd.f32 0.0, %v956
    %v958 = vpop.f32.mrf.mxu0
    %v959 = vadd.f32 0.0, %v958
    %960 = vdwg.mxu0
    %v961 = vrcp.pop %v897
    %v962 = vrcp.pop %v900
    %v963 = vrcp.pop %v903
    %v964 = vrcp.pop %v906
    %v965 = vmul.f32 %v932, %v961
    %v966 = vmul.f32 %v934, %v962
    %v967 = vmul.f32 %v957, %v963
    %v968 = vmul.f32 %v959, %v964
    %973 = vrot.lane.b32.xlu0 %v965, 64
    %v974 = vpop.permute.xlu0 %973
    %975 = vrot.lane.b32.xlu0 %v966, 64
    %v976 = vpop.permute.xlu0 %975
    %977 = vrot.lane.b32.xlu0 %v967, 64
    %v978 = vpop.permute.xlu0 %977
    %979 = vrot.lane.b32.xlu0 %v968, 64
    %v980 = vpop.permute.xlu0 %979
    %vm985 = vcmask 785920
    %986 = vst.msk [vmem:[#allocation2] sm:$0xff] %vm985, %v974
    %987 = vst.msk [vmem:[#allocation2 + $0x8] sm:$0xff] %vm985, %v976
    %988 = vst.msk [vmem:[#allocation2 + $0x10] sm:$0xff] %vm985, %v978
    %989 = vst.msk [vmem:[#allocation2 + $0x18] sm:$0xff] %vm985, %v980
    %990 = vrot.lane.b32.xlu0 %v490, 32
    %v991 = vpop.permute.xlu0 %990
    %992 = vrot.lane.b32.xlu0 %v495, 32
    %v993 = vpop.permute.xlu0 %992
    %v995 = vsel %vm496, %v991, 0
    %v998 = vsel %vm496, %v993, 0
    %1000 = vmatpush.bf16.xpose.msra.mxu0 0
    %1001 = vmatpush.bf16.xpose.msra.mxu0 0
    %1002 = vmatpush.bf16.xpose.msra.mxu0 0
    %1003 = vmatpush.bf16.xpose.msra.mxu0 0
    %1004 = vmatpush.bf16.xpose.msra.mxu0 0
    %1005 = vmatpush.bf16.xpose.msra.mxu0 0
    %1006 = vmatpush.bf16.xpose.msra.mxu0 0
    %1007 = vmatpush.bf16.xpose.msra.mxu0 %v998
    %1008 = vmatmul.bf16.gmra.mxu0 %v995
    %v1009 = vpop.f32.mrf.mxu0
    %v1010 = vadd.f32 0.0, %v1009
    %v1011 = vpop.f32.mrf.mxu0
    %v1012 = vadd.f32 0.0, %v1011
    %1013 = vdwg.mxu0
    %1014 = vrot.lane.b32.xlu0 %v521, 32
    %v1015 = vpop.permute.xlu0 %1014
    %1016 = vrot.lane.b32.xlu0 %v526, 32
    %v1017 = vpop.permute.xlu0 %1016
    %v1019 = vsel %vm496, %v1015, 0
    %v1022 = vsel %vm496, %v1017, 0
    %1024 = vmatpush.bf16.xpose.msra.mxu0 0
    %1025 = vmatpush.bf16.xpose.msra.mxu0 0
    %1026 = vmatpush.bf16.xpose.msra.mxu0 0
    %1027 = vmatpush.bf16.xpose.msra.mxu0 0
    %1028 = vmatpush.bf16.xpose.msra.mxu0 0
    %1029 = vmatpush.bf16.xpose.msra.mxu0 0
    %1030 = vmatpush.bf16.xpose.msra.mxu0 0
    %1031 = vmatpush.bf16.xpose.msra.mxu0 %v1022
    %1032 = vmatmul.bf16.gmra.mxu0 %v1019
    %v1033 = vpop.f32.mrf.mxu0
    %v1034 = vadd.f32 0.0, %v1033
    %v1035 = vpop.f32.mrf.mxu0
    %v1036 = vadd.f32 0.0, %v1035
    %1037 = vdwg.mxu0
    %v1038 = vsel %vm547, %v1010, -inf
    %1039 = vmax.xlane.f32.xlu0 %v1038
    %v1040 = vpop.xlane.xlu0 %1039
    %v1041 = vsel %vm547, %v1012, -inf
    %1042 = vmax.xlane.f32.xlu0 %v1041
    %v1043 = vpop.xlane.xlu0 %1042
    %v1044 = vsel %vm547, %v1034, -inf
    %1045 = vmax.xlane.f32.xlu0 %v1044
    %v1046 = vpop.xlane.xlu0 %1045
    %v1047 = vsel %vm547, %v1036, -inf
    %1048 = vmax.xlane.f32.xlu0 %v1047
    %v1049 = vpop.xlane.xlu0 %1048
    %v1050 = vsub.f32 %v1010, %v1040
    %v1051 = vsub.f32 %v1012, %v1043
    %v1052 = vsub.f32 %v1034, %v1046
    %v1053 = vsub.f32 %v1036, %v1049
    %v1054 = vmul.f32 %v1050, 1.442695
    %v1055 = vpow.pop %v1054
    %v1056 = vmul.f32 %v1051, 1.442695
    %v1057 = vpow.pop %v1056
    %v1058 = vmul.f32 %v1052, 1.442695
    %v1059 = vpow.pop %v1058
    %v1060 = vmul.f32 %v1053, 1.442695
    %v1061 = vpow.pop %v1060
    %v1062 = vsel %vm547, %v1055, 0.0
    %1063 = vadd.xlane.f32.xlu0 %v1062
    %v1064 = vpop.xlane.xlu0 %1063
    %v1065 = vsel %vm547, %v1057, 0.0
    %1066 = vadd.xlane.f32.xlu0 %v1065
    %v1067 = vpop.xlane.xlu0 %1066
    %v1068 = vsel %vm547, %v1059, 0.0
    %1069 = vadd.xlane.f32.xlu0 %v1068
    %v1070 = vpop.xlane.xlu0 %1069
    %v1071 = vsel %vm547, %v1061, 0.0
    %1072 = vadd.xlane.f32.xlu0 %v1071
    %v1073 = vpop.xlane.xlu0 %1072
    %v1074 = vpack.c.bf16 %v1055, %v1055
    %v1075 = vpack.c.bf16 %v1057, %v1057
    %v1076 = vpack.c.bf16 %v1059, %v1059
    %v1077 = vpack.c.bf16 %v1061, %v1061
    %v1080 = vunpack.c.l.b16 %v1074
    %v1081 = vunpack.c.l.b16 %v1075
    %v1082 = vpack.c.b16 %v1081, %v1080
    %1083 = vrot.lane.b32.xlu0 %v597, 32
    %v1084 = vpop.permute.xlu0 %1083
    %v1087 = vsel %vm547, %v1082, 0
    %1089 = vmatpush.bf16.msra.mxu0 0
    %1090 = vmatpush.bf16.msra.mxu0 0
    %1091 = vmatpush.bf16.msra.mxu0 0
    %1092 = vmatpush.bf16.msra.mxu0 0
    %1093 = vmatpush.bf16.msra.mxu0 0
    %1094 = vmatpush.bf16.msra.mxu0 0
    %1095 = vmatpush.bf16.msra.mxu0 0
    %1096 = vmatpush.bf16.msra.mxu0 %v1084
    %1097 = vmatmul.bf16.gmra.mxu0 %v1087
    %v1098 = vpop.f32.mrf.mxu0
    %v1099 = vadd.f32 0.0, %v1098
    %v1100 = vpop.f32.mrf.mxu0
    %v1101 = vadd.f32 0.0, %v1100
    %1102 = vdwg.mxu0
    %v1105 = vunpack.c.l.b16 %v1076
    %v1106 = vunpack.c.l.b16 %v1077
    %v1107 = vpack.c.b16 %v1106, %v1105
    %1108 = vrot.lane.b32.xlu0 %v625, 32
    %v1109 = vpop.permute.xlu0 %1108
    %v1112 = vsel %vm547, %v1107, 0
    %1114 = vmatpush.bf16.msra.mxu0 0
    %1115 = vmatpush.bf16.msra.mxu0 0
    %1116 = vmatpush.bf16.msra.mxu0 0
    %1117 = vmatpush.bf16.msra.mxu0 0
    %1118 = vmatpush.bf16.msra.mxu0 0
    %1119 = vmatpush.bf16.msra.mxu0 0
    %1120 = vmatpush.bf16.msra.mxu0 0
    %1121 = vmatpush.bf16.msra.mxu0 %v1109
    %1122 = vmatmul.bf16.gmra.mxu0 %v1112
    %v1123 = vpop.f32.mrf.mxu0
    %v1124 = vadd.f32 0.0, %v1123
    %v1125 = vpop.f32.mrf.mxu0
    %v1126 = vadd.f32 0.0, %v1125
    %1127 = vdwg.mxu0
    %v1128 = vrcp.pop %v1064
    %v1129 = vrcp.pop %v1067
    %v1130 = vrcp.pop %v1070
    %v1131 = vrcp.pop %v1073
    %v1132 = vmul.f32 %v1099, %v1128
    %v1133 = vmul.f32 %v1101, %v1129
    %v1134 = vmul.f32 %v1124, %v1130
    %v1135 = vmul.f32 %v1126, %v1131
    %1140 = vrot.lane.b32.xlu0 %v1132, 96
    %v1141 = vpop.permute.xlu0 %1140
    %1142 = vrot.lane.b32.xlu0 %v1133, 96
    %v1143 = vpop.permute.xlu0 %1142
    %1144 = vrot.lane.b32.xlu0 %v1134, 96
    %v1145 = vpop.permute.xlu0 %1144
    %1146 = vrot.lane.b32.xlu0 %v1135, 96
    %v1147 = vpop.permute.xlu0 %1146
    %vm1152 = vcmask 1048320
    %1153 = vst.msk [vmem:[#allocation2] sm:$0xff] %vm1152, %v1141
    %1154 = vst.msk [vmem:[#allocation2 + $0x8] sm:$0xff] %vm1152, %v1143
    %1155 = vst.msk [vmem:[#allocation2 + $0x10] sm:$0xff] %vm1152, %v1145
    %1156 = vst.msk [vmem:[#allocation2 + $0x18] sm:$0xff] %vm1152, %v1147
    %v1157 = vld [vmem:[#allocation2] sm:$0xff]
    %v1158 = vld [vmem:[#allocation2 + $0x8] sm:$0xff]
    %v1159 = vld [vmem:[#allocation2 + $0x10] sm:$0xff]
    %v1160 = vld [vmem:[#allocation2 + $0x18] sm:$0xff]
    %v1161 = vpack.c.bf16 %v1158, %v1157
    %v1162 = vpack.c.bf16 %v1160, %v1159
    %v1163 = vld [vmem:[#allocation9] sm:$0xf]
    %v1164 = vld [vmem:[#allocation9 + $0x4] sm:$0xf]
    %v1165 = vld [vmem:[#allocation9 + $0x8] sm:$0xf]
    %v1166 = vld [vmem:[#allocation9 + $0xc] sm:$0xf]
    %v1167 = vld [vmem:[#allocation9 + $0x10] sm:$0xf]
    %v1168 = vld [vmem:[#allocation9 + $0x14] sm:$0xf]
    %v1169 = vld [vmem:[#allocation9 + $0x18] sm:$0xf]
    %v1170 = vld [vmem:[#allocation9 + $0x1c] sm:$0xf]
    %v1171 = vld [vmem:[#allocation9 + $0x20] sm:$0xf]
    %v1172 = vld [vmem:[#allocation9 + $0x24] sm:$0xf]
    %v1173 = vld [vmem:[#allocation9 + $0x28] sm:$0xf]
    %v1174 = vld [vmem:[#allocation9 + $0x2c] sm:$0xf]
    %v1175 = vld [vmem:[#allocation9 + $0x30] sm:$0xf]
    %v1176 = vld [vmem:[#allocation9 + $0x34] sm:$0xf]
    %v1177 = vld [vmem:[#allocation9 + $0x38] sm:$0xf]
    %v1178 = vld [vmem:[#allocation9 + $0x3c] sm:$0xf]
    %v1179 = vld [vmem:[%s5] sm:$0x1]
    %v1181 = vperm.slane %v1179, 0
    %v1199 = vunpack.c.l.b16 %v1163
    %v1200 = vunpack.c.l.b16 %v1164
    %v1201 = vunpack.c.l.b16 %v1165
    %v1202 = vunpack.c.l.b16 %v1166
    %v1203 = vunpack.c.l.b16 %v1167
    %v1204 = vunpack.c.l.b16 %v1168
    %v1205 = vunpack.c.l.b16 %v1169
    %v1206 = vunpack.c.l.b16 %v1170
    %v1207 = vunpack.c.l.b16 %v1171
    %v1208 = vunpack.c.l.b16 %v1172
    %v1209 = vunpack.c.l.b16 %v1173
    %v1210 = vunpack.c.l.b16 %v1174
    %v1211 = vunpack.c.l.b16 %v1175
    %v1212 = vunpack.c.l.b16 %v1176
    %v1213 = vunpack.c.l.b16 %v1177
    %v1214 = vunpack.c.l.b16 %v1178
    %v1215 = vpack.c.b16 %v1200, %v1199
    %v1216 = vpack.c.b16 %v1202, %v1201
    %v1217 = vpack.c.b16 %v1204, %v1203
    %v1218 = vpack.c.b16 %v1206, %v1205
    %v1219 = vpack.c.b16 %v1208, %v1207
    %v1220 = vpack.c.b16 %v1210, %v1209
    %v1221 = vpack.c.b16 %v1212, %v1211
    %v1222 = vpack.c.b16 %v1214, %v1213
    %1231 = vmatpush.bf16.msra.mxu0 %v1222
    %1232 = vmatpush.bf16.msra.mxu0 %v1221
    %1233 = vmatpush.bf16.msra.mxu0 %v1220
    %1234 = vmatpush.bf16.msra.mxu0 %v1219
    %1235 = vmatpush.bf16.msra.mxu0 %v1218
    %1236 = vmatpush.bf16.msra.mxu0 %v1217
    %1237 = vmatpush.bf16.msra.mxu0 %v1216
    %1238 = vmatpush.bf16.msra.mxu0 %v1215
    %1239 = vmatmul.bf16.gmra.mxu0 %v1161
    %v1240 = vpop.f32.mrf.mxu0
    %v1241 = vadd.f32 %v1181, %v1240
    %v1242 = vpop.f32.mrf.mxu0
    %v1243 = vadd.f32 %v1181, %v1242
    %1244 = vmatmul.bf16.gmra.mxu0 %v1162
    %v1245 = vpop.f32.mrf.mxu0
    %v1246 = vadd.f32 %v1181, %v1245
    %v1247 = vpop.f32.mrf.mxu0
    %v1248 = vadd.f32 %v1181, %v1247
    %1249 = vdwg.mxu0
    %v1250 = vadd.f32 %v148, %v1241
    %v1251 = vadd.f32 %v149, %v1243
    %v1252 = vadd.f32 %v150, %v1246
    %v1253 = vadd.f32 %v151, %v1248
    %v1254 = vld [vmem:[%s6] sm:$0x1]
    %v1255 = vld [vmem:[#allocation11] sm:$0x1]
    %1256 = vadd.xlane.f32.xlu0 %v1250
    %v1257 = vpop.xlane.xlu0 %1256
    %1258 = vadd.xlane.f32.xlu0 %v1251
    %v1259 = vpop.xlane.xlu0 %1258
    %1260 = vadd.xlane.f32.xlu0 %v1252
    %v1261 = vpop.xlane.xlu0 %1260
    %1262 = vadd.xlane.f32.xlu0 %v1253
    %v1263 = vpop.xlane.xlu0 %1262
    %v1264 = vmul.f32 %v1257, %v168
    %v1265 = vmul.f32 %v1259, %v168
    %v1266 = vmul.f32 %v1261, %v168
    %v1267 = vmul.f32 %v1263, %v168
    %v1268 = vsub.f32 %v1250, %v1264
    %v1269 = vsub.f32 %v1251, %v1265
    %v1270 = vsub.f32 %v1252, %v1266
    %v1271 = vsub.f32 %v1253, %v1267
    %v1272 = vmul.f32 %v1268, %v1268
    %v1273 = vmul.f32 %v1269, %v1269
    %v1274 = vmul.f32 %v1270, %v1270
    %v1275 = vmul.f32 %v1271, %v1271
    %1276 = vadd.xlane.f32.xlu0 %v1272
    %v1277 = vpop.xlane.xlu0 %1276
    %1278 = vadd.xlane.f32.xlu0 %v1273
    %v1279 = vpop.xlane.xlu0 %1278
    %1280 = vadd.xlane.f32.xlu0 %v1274
    %v1281 = vpop.xlane.xlu0 %1280
    %1282 = vadd.xlane.f32.xlu0 %v1275
    %v1283 = vpop.xlane.xlu0 %1282
    %v1284 = vmul.f32 %v1277, %v168
    %v1285 = vmul.f32 %v1279, %v168
    %v1286 = vmul.f32 %v1281, %v168
    %v1287 = vmul.f32 %v1283, %v168
    %v1288 = vadd.f32 %v1284, 1e-05
    %v1289 = vadd.f32 %v1285, 1e-05
    %v1290 = vadd.f32 %v1286, 1e-05
    %v1291 = vadd.f32 %v1287, 1e-05
    %v1292 = vrsqrt.pop %v1288
    %v1293 = vmul.f32 %v1292, %v1288
    %v1294 = vmul.f32 %v1293, %v1292
    %v1295 = vmul.f32 0.5, %v1294
    %v1296 = vsub.f32 1.5, %v1295
    %v1297 = vmul.f32 %v1292, %v1296
    %vm1298 = vweird.f32 %v1288
    %vm1299 = vweird.f32 %v1292
    %vm1300 = vmor %vm1298, %vm1299
    %v1301 = vsel %vm1300, %v1292, %v1297
    %v1302 = vrsqrt.pop %v1289
    %v1303 = vmul.f32 %v1302, %v1289
    %v1304 = vmul.f32 %v1303, %v1302
    %v1305 = vmul.f32 0.5, %v1304
    %v1306 = vsub.f32 1.5, %v1305
    %v1307 = vmul.f32 %v1302, %v1306
    %vm1308 = vweird.f32 %v1289
    %vm1309 = vweird.f32 %v1302
    %vm1310 = vmor %vm1308, %vm1309
    %v1311 = vsel %vm1310, %v1302, %v1307
    %v1312 = vrsqrt.pop %v1290
    %v1313 = vmul.f32 %v1312, %v1290
    %v1314 = vmul.f32 %v1313, %v1312
    %v1315 = vmul.f32 0.5, %v1314
    %v1316 = vsub.f32 1.5, %v1315
    %v1317 = vmul.f32 %v1312, %v1316
    %vm1318 = vweird.f32 %v1290
    %vm1319 = vweird.f32 %v1312
    %vm1320 = vmor %vm1318, %vm1319
    %v1321 = vsel %vm1320, %v1312, %v1317
    %v1322 = vrsqrt.pop %v1291
    %v1323 = vmul.f32 %v1322, %v1291
    %v1324 = vmul.f32 %v1323, %v1322
    %v1325 = vmul.f32 0.5, %v1324
    %v1326 = vsub.f32 1.5, %v1325
    %v1327 = vmul.f32 %v1322, %v1326
    %vm1328 = vweird.f32 %v1291
    %vm1329 = vweird.f32 %v1322
    %vm1330 = vmor %vm1328, %vm1329
    %v1331 = vsel %vm1330, %v1322, %v1327
    %v1332 = vmul.f32 %v1268, %v1301
    %v1333 = vmul.f32 %v1269, %v1311
    %v1334 = vmul.f32 %v1270, %v1321
    %v1335 = vmul.f32 %v1271, %v1331
    %v1337 = vperm.slane %v1254, 0
    %v1339 = vmul.f32 %v1332, %v1337
    %v1340 = vmul.f32 %v1333, %v1337
    %v1341 = vmul.f32 %v1334, %v1337
    %v1342 = vmul.f32 %v1335, %v1337
    %v1344 = vperm.slane %v1255, 0
    %v1346 = vadd.f32 %v1339, %v1344
    %v1347 = vadd.f32 %v1340, %v1344
    %v1348 = vadd.f32 %v1341, %v1344
    %v1349 = vadd.f32 %v1342, %v1344
    %v1350 = vpack.c.bf16 %v1347, %v1346
    %v1351 = vpack.c.bf16 %v1349, %v1348
    %v1352 = vld [vmem:[#allocation12] sm:$0xff]
    %v1353 = vld [vmem:[#allocation12 + $0x8] sm:$0xff]
    %v1354 = vld [vmem:[#allocation12 + $0x10] sm:$0xff]
    %v1355 = vld [vmem:[#allocation12 + $0x18] sm:$0xff]
    %v1356 = vld [vmem:[#allocation12 + $0x20] sm:$0xff]
    %v1357 = vld [vmem:[#allocation12 + $0x28] sm:$0xff]
    %v1358 = vld [vmem:[#allocation12 + $0x30] sm:$0xff]
    %v1359 = vld [vmem:[#allocation12 + $0x38] sm:$0xff]
    %v1360 = vld [vmem:[#allocation12 + $0x40] sm:$0xff]
    %v1361 = vld [vmem:[#allocation12 + $0x48] sm:$0xff]
    %v1362 = vld [vmem:[#allocation12 + $0x50] sm:$0xff]
    %v1363 = vld [vmem:[#allocation12 + $0x58] sm:$0xff]
    %v1364 = vld [vmem:[#allocation12 + $0x60] sm:$0xff]
    %v1365 = vld [vmem:[#allocation12 + $0x68] sm:$0xff]
    %v1366 = vld [vmem:[#allocation12 + $0x70] sm:$0xff]
    %v1367 = vld [vmem:[#allocation12 + $0x78] sm:$0xff]
    %v1368 = vld [vmem:[#allocation12 + $0x80] sm:$0xff]
    %v1369 = vld [vmem:[#allocation12 + $0x88] sm:$0xff]
    %v1370 = vld [vmem:[#allocation12 + $0x90] sm:$0xff]
    %v1371 = vld [vmem:[#allocation12 + $0x98] sm:$0xff]
    %v1372 = vld [vmem:[#allocation12 + $0xa0] sm:$0xff]
    %v1373 = vld [vmem:[#allocation12 + $0xa8] sm:$0xff]
    %v1374 = vld [vmem:[#allocation12 + $0xb0] sm:$0xff]
    %v1375 = vld [vmem:[#allocation12 + $0xb8] sm:$0xff]
    %v1376 = vld [vmem:[#allocation12 + $0xc0] sm:$0xff]
    %v1377 = vld [vmem:[#allocation12 + $0xc8] sm:$0xff]
    %v1378 = vld [vmem:[#allocation12 + $0xd0] sm:$0xff]
    %v1379 = vld [vmem:[#allocation12 + $0xd8] sm:$0xff]
    %v1380 = vld [vmem:[#allocation12 + $0xe0] sm:$0xff]
    %v1381 = vld [vmem:[#allocation12 + $0xe8] sm:$0xff]
    %v1382 = vld [vmem:[#allocation12 + $0xf0] sm:$0xff]
    %v1383 = vld [vmem:[#allocation12 + $0xf8] sm:$0xff]
    %v1384 = vld [vmem:[%s9] sm:$0xf]
    %v1386 = vperm.slane %v1384, 0
    %v1387 = vperm.slane %v1384, 1
    %v1388 = vperm.slane %v1384, 2
    %v1389 = vperm.slane %v1384, 3
    %v1426 = vunpack.c.l.b16 %v1352
    %v1427 = vunpack.c.h.b16 %v1352
    %v1428 = vunpack.c.l.b16 %v1353
    %v1429 = vunpack.c.h.b16 %v1353
    %v1430 = vunpack.c.l.b16 %v1354
    %v1431 = vunpack.c.h.b16 %v1354
    %v1432 = vunpack.c.l.b16 %v1355
    %v1433 = vunpack.c.h.b16 %v1355
    %v1434 = vunpack.c.l.b16 %v1356
    %v1435 = vunpack.c.h.b16 %v1356
    %v1436 = vunpack.c.l.b16 %v1357
    %v1437 = vunpack.c.h.b16 %v1357
    %v1438 = vunpack.c.l.b16 %v1358
    %v1439 = vunpack.c.h.b16 %v1358
    %v1440 = vunpack.c.l.b16 %v1359
    %v1441 = vunpack.c.h.b16 %v1359
    %v1442 = vunpack.c.l.b16 %v1360
    %v1443 = vunpack.c.h.b16 %v1360
    %v1444 = vunpack.c.l.b16 %v1361
    %v1445 = vunpack.c.h.b16 %v1361
    %v1446 = vunpack.c.l.b16 %v1362
    %v1447 = vunpack.c.h.b16 %v1362
    %v1448 = vunpack.c.l.b16 %v1363
    %v1449 = vunpack.c.h.b16 %v1363
    %v1450 = vunpack.c.l.b16 %v1364
    %v1451 = vunpack.c.h.b16 %v1364
    %v1452 = vunpack.c.l.b16 %v1365
    %v1453 = vunpack.c.h.b16 %v1365
    %v1454 = vunpack.c.l.b16 %v1366
    %v1455 = vunpack.c.h.b16 %v1366
    %v1456 = vunpack.c.l.b16 %v1367
    %v1457 = vunpack.c.h.b16 %v1367
    %v1458 = vunpack.c.l.b16 %v1368
    %v1459 = vunpack.c.h.b16 %v1368
    %v1460 = vunpack.c.l.b16 %v1369
    %v1461 = vunpack.c.h.b16 %v1369
    %v1462 = vunpack.c.l.b16 %v1370
    %v1463 = vunpack.c.h.b16 %v1370
    %v1464 = vunpack.c.l.b16 %v1371
    %v1465 = vunpack.c.h.b16 %v1371
    %v1466 = vunpack.c.l.b16 %v1372
    %v1467 = vunpack.c.h.b16 %v1372
    %v1468 = vunpack.c.l.b16 %v1373
    %v1469 = vunpack.c.h.b16 %v1373
    %v1470 = vunpack.c.l.b16 %v1374
    %v1471 = vunpack.c.h.b16 %v1374
    %v1472 = vunpack.c.l.b16 %v1375
    %v1473 = vunpack.c.h.b16 %v1375
    %v1474 = vunpack.c.l.b16 %v1376
    %v1475 = vunpack.c.h.b16 %v1376
    %v1476 = vunpack.c.l.b16 %v1377
    %v1477 = vunpack.c.h.b16 %v1377
    %v1478 = vunpack.c.l.b16 %v1378
    %v1479 = vunpack.c.h.b16 %v1378
    %v1480 = vunpack.c.l.b16 %v1379
    %v1481 = vunpack.c.h.b16 %v1379
    %v1482 = vunpack.c.l.b16 %v1380
    %v1483 = vunpack.c.h.b16 %v1380
    %v1484 = vunpack.c.l.b16 %v1381
    %v1485 = vunpack.c.h.b16 %v1381
    %v1486 = vunpack.c.l.b16 %v1382
    %v1487 = vunpack.c.h.b16 %v1382
    %v1488 = vunpack.c.l.b16 %v1383
    %v1489 = vunpack.c.h.b16 %v1383
    %v1490 = vpack.c.b16 %v1430, %v1426
    %v1491 = vpack.c.b16 %v1431, %v1427
    %v1492 = vpack.c.b16 %v1432, %v1428
    %v1493 = vpack.c.b16 %v1433, %v1429
    %v1494 = vpack.c.b16 %v1438, %v1434
    %v1495 = vpack.c.b16 %v1439, %v1435
    %v1496 = vpack.c.b16 %v1440, %v1436
    %v1497 = vpack.c.b16 %v1441, %v1437
    %v1498 = vpack.c.b16 %v1446, %v1442
    %v1499 = vpack.c.b16 %v1447, %v1443
    %v1500 = vpack.c.b16 %v1448, %v1444
    %v1501 = vpack.c.b16 %v1449, %v1445
    %v1502 = vpack.c.b16 %v1454, %v1450
    %v1503 = vpack.c.b16 %v1455, %v1451
    %v1504 = vpack.c.b16 %v1456, %v1452
    %v1505 = vpack.c.b16 %v1457, %v1453
    %v1506 = vpack.c.b16 %v1462, %v1458
    %v1507 = vpack.c.b16 %v1463, %v1459
    %v1508 = vpack.c.b16 %v1464, %v1460
    %v1509 = vpack.c.b16 %v1465, %v1461
    %v1510 = vpack.c.b16 %v1470, %v1466
    %v1511 = vpack.c.b16 %v1471, %v1467
    %v1512 = vpack.c.b16 %v1472, %v1468
    %v1513 = vpack.c.b16 %v1473, %v1469
    %v1514 = vpack.c.b16 %v1478, %v1474
    %v1515 = vpack.c.b16 %v1479, %v1475
    %v1516 = vpack.c.b16 %v1480, %v1476
    %v1517 = vpack.c.b16 %v1481, %v1477
    %v1518 = vpack.c.b16 %v1486, %v1482
    %v1519 = vpack.c.b16 %v1487, %v1483
    %v1520 = vpack.c.b16 %v1488, %v1484
    %v1521 = vpack.c.b16 %v1489, %v1485
    %1554 = vmatpush.bf16.msra.mxu0 %v1518
    %1555 = vmatpush.bf16.msra.mxu0 %v1514
    %1556 = vmatpush.bf16.msra.mxu0 %v1510
    %1557 = vmatpush.bf16.msra.mxu0 %v1506
    %1558 = vmatpush.bf16.msra.mxu0 %v1502
    %1559 = vmatpush.bf16.msra.mxu0 %v1498
    %1560 = vmatpush.bf16.msra.mxu0 %v1494
    %1561 = vmatpush.bf16.msra.mxu0 %v1490
    %1562 = vmatmul.bf16.gmra.mxu0 %v1350
    %v1563 = vpop.f32.mrf.mxu0
    %v1564 = vadd.f32 %v1386, %v1563
    %v1565 = vpop.f32.mrf.mxu0
    %v1566 = vadd.f32 %v1386, %v1565
    %1567 = vmatmul.bf16.gmra.mxu0 %v1351
    %v1568 = vpop.f32.mrf.mxu0
    %v1569 = vadd.f32 %v1386, %v1568
    %v1570 = vpop.f32.mrf.mxu0
    %v1571 = vadd.f32 %v1386, %v1570
    %1572 = vdwg.mxu0
    %1573 = vmatpush.bf16.msra.mxu0 %v1519
    %1574 = vmatpush.bf16.msra.mxu0 %v1515
    %1575 = vmatpush.bf16.msra.mxu0 %v1511
    %1576 = vmatpush.bf16.msra.mxu0 %v1507
    %1577 = vmatpush.bf16.msra.mxu0 %v1503
    %1578 = vmatpush.bf16.msra.mxu0 %v1499
    %1579 = vmatpush.bf16.msra.mxu0 %v1495
    %1580 = vmatpush.bf16.msra.mxu0 %v1491
    %1581 = vmatmul.bf16.gmra.mxu0 %v1350
    %v1582 = vpop.f32.mrf.mxu0
    %v1583 = vadd.f32 %v1387, %v1582
    %v1584 = vpop.f32.mrf.mxu0
    %v1585 = vadd.f32 %v1387, %v1584
    %1586 = vmatmul.bf16.gmra.mxu0 %v1351
    %v1587 = vpop.f32.mrf.mxu0
    %v1588 = vadd.f32 %v1387, %v1587
    %v1589 = vpop.f32.mrf.mxu0
    %v1590 = vadd.f32 %v1387, %v1589
    %1591 = vdwg.mxu0
    %1592 = vmatpush.bf16.msra.mxu0 %v1520
    %1593 = vmatpush.bf16.msra.mxu0 %v1516
    %1594 = vmatpush.bf16.msra.mxu0 %v1512
    %1595 = vmatpush.bf16.msra.mxu0 %v1508
    %1596 = vmatpush.bf16.msra.mxu0 %v1504
    %1597 = vmatpush.bf16.msra.mxu0 %v1500
    %1598 = vmatpush.bf16.msra.mxu0 %v1496
    %1599 = vmatpush.bf16.msra.mxu0 %v1492
    %1600 = vmatmul.bf16.gmra.mxu0 %v1350
    %v1601 = vpop.f32.mrf.mxu0
    %v1602 = vadd.f32 %v1388, %v1601
    %v1603 = vpop.f32.mrf.mxu0
    %v1604 = vadd.f32 %v1388, %v1603
    %1605 = vmatmul.bf16.gmra.mxu0 %v1351
    %v1606 = vpop.f32.mrf.mxu0
    %v1607 = vadd.f32 %v1388, %v1606
    %v1608 = vpop.f32.mrf.mxu0
    %v1609 = vadd.f32 %v1388, %v1608
    %1610 = vdwg.mxu0
    %1611 = vmatpush.bf16.msra.mxu0 %v1521
    %1612 = vmatpush.bf16.msra.mxu0 %v1517
    %1613 = vmatpush.bf16.msra.mxu0 %v1513
    %1614 = vmatpush.bf16.msra.mxu0 %v1509
    %1615 = vmatpush.bf16.msra.mxu0 %v1505
    %1616 = vmatpush.bf16.msra.mxu0 %v1501
    %1617 = vmatpush.bf16.msra.mxu0 %v1497
    %1618 = vmatpush.bf16.msra.mxu0 %v1493
    %1619 = vmatmul.bf16.gmra.mxu0 %v1350
    %v1620 = vpop.f32.mrf.mxu0
    %v1621 = vadd.f32 %v1389, %v1620
    %v1622 = vpop.f32.mrf.mxu0
    %v1623 = vadd.f32 %v1389, %v1622
    %1624 = vmatmul.bf16.gmra.mxu0 %v1351
    %v1625 = vpop.f32.mrf.mxu0
    %v1626 = vadd.f32 %v1389, %v1625
    %v1627 = vpop.f32.mrf.mxu0
    %v1628 = vadd.f32 %v1389, %v1627
    %1629 = vdwg.mxu0
    %v1630 = vmul.f32 %v1564, 0.5
    %v1631 = vmul.f32 %v1583, 0.5
    %v1632 = vmul.f32 %v1602, 0.5
    %v1633 = vmul.f32 %v1621, 0.5
    %v1634 = vmul.f32 %v1566, 0.5
    %v1635 = vmul.f32 %v1585, 0.5
    %v1636 = vmul.f32 %v1604, 0.5
    %v1637 = vmul.f32 %v1623, 0.5
    %v1638 = vmul.f32 %v1569, 0.5
    %v1639 = vmul.f32 %v1588, 0.5
    %v1640 = vmul.f32 %v1607, 0.5
    %v1641 = vmul.f32 %v1626, 0.5
    %v1642 = vmul.f32 %v1571, 0.5
    %v1643 = vmul.f32 %v1590, 0.5
    %v1644 = vmul.f32 %v1609, 0.5
    %v1645 = vmul.f32 %v1628, 0.5
    %v1646 = vmul.f32 %v1564, 0.70710677
    %v1647 = vmul.f32 %v1583, 0.70710677
    %v1648 = vmul.f32 %v1602, 0.70710677
    %v1649 = vmul.f32 %v1621, 0.70710677
    %v1650 = vmul.f32 %v1566, 0.70710677
    %v1651 = vmul.f32 %v1585, 0.70710677
    %v1652 = vmul.f32 %v1604, 0.70710677
    %v1653 = vmul.f32 %v1623, 0.70710677
    %v1654 = vmul.f32 %v1569, 0.70710677
    %v1655 = vmul.f32 %v1588, 0.70710677
    %v1656 = vmul.f32 %v1607, 0.70710677
    %v1657 = vmul.f32 %v1626, 0.70710677
    %v1658 = vmul.f32 %v1571, 0.70710677
    %v1659 = vmul.f32 %v1590, 0.70710677
    %v1660 = vmul.f32 %v1609, 0.70710677
    %v1661 = vmul.f32 %v1628, 0.70710677
    %v1662 = vmul.f32 %v1646, %v1646
    %v1663 = vmin.f32 16.0, %v1662
    %v1664 = vmul.f32 %v1663, 2.1237322e-06
    %v1665 = vadd.f32 %v1664, 0.00028619796
    %v1666 = vmul.f32 %v1663, %v1665
    %v1667 = vadd.f32 %v1666, 0.0036580483
    %v1668 = vmul.f32 %v1663, %v1667
    %v1669 = vadd.f32 %v1668, 0.05243302
    %v1670 = vmul.f32 %v1663, %v1669
    %v1671 = vadd.f32 %v1670, 0.18741608
    %v1672 = vmul.f32 %v1663, %v1671
    %v1673 = vadd.f32 %v1672, 1.1283791
    %v1674 = vmul.f32 %v1646, %v1673
    %v1675 = vmul.f32 %v1663, 3.8918573e-05
    %v1676 = vadd.f32 %v1675, 0.001143296
    %v1677 = vmul.f32 %v1663, %v1676
    %v1678 = vadd.f32 %v1677, 0.014752088
    %v1679 = vmul.f32 %v1663, %v1678
    %v1680 = vadd.f32 %v1679, 0.112945676
    %v1681 = vmul.f32 %v1663, %v1680
    %v1682 = vadd.f32 %v1681, 0.4994258
    %v1683 = vmul.f32 %v1663, %v1682
    %v1684 = vadd.f32 %v1683, 1.0
    %v1685 = vrcp.pop %v1684
    %v1686 = vmul.f32 %v1684, %v1685
    %v1687 = vsub.f32 1.0, %v1686
    %v1688 = vmul.f32 %v1685, %v1687
    %v1689 = vadd.f32 %v1685, %v1688
    %vm1690 = vweird.f32 %v1684
    %vm1691 = vweird.f32 %v1685
    %vm1692 = vmor %vm1690, %vm1691
    %v1693 = vsel %vm1692, %v1685, %v1689
    %v1694 = vand.u32 2147483647, %v1684
    %vm1695 = vcmp.eq.f32.partialorder %v1694, 8.507059e+37
    %v1696 = vand.u32 %v1684, 2147483648
    %v1697 = vor.u32 1.1754944e-38, %v1696
    %v1698 = vsel %vm1695, %v1697, %v1693
    %v1699 = vmul.f32 %v1674, %v1698
    %v1700 = vmin.f32 %v1699, 1.0
    %v1701 = vmax.f32 %v1700, -1.0
    %v1702 = vmul.f32 %v1647, %v1647
    %v1703 = vmin.f32 16.0, %v1702
    %v1704 = vmul.f32 %v1703, 2.1237322e-06
    %v1705 = vadd.f32 %v1704, 0.00028619796
    %v1706 = vmul.f32 %v1703, %v1705
    %v1707 = vadd.f32 %v1706, 0.0036580483
    %v1708 = vmul.f32 %v1703, %v1707
    %v1709 = vadd.f32 %v1708, 0.05243302
    %v1710 = vmul.f32 %v1703, %v1709
    %v1711 = vadd.f32 %v1710, 0.18741608
    %v1712 = vmul.f32 %v1703, %v1711
    %v1713 = vadd.f32 %v1712, 1.1283791
    %v1714 = vmul.f32 %v1647, %v1713
    %v1715 = vmul.f32 %v1703, 3.8918573e-05
    %v1716 = vadd.f32 %v1715, 0.001143296
    %v1717 = vmul.f32 %v1703, %v1716
    %v1718 = vadd.f32 %v1717, 0.014752088
    %v1719 = vmul.f32 %v1703, %v1718
    %v1720 = vadd.f32 %v1719, 0.112945676
    %v1721 = vmul.f32 %v1703, %v1720
    %v1722 = vadd.f32 %v1721, 0.4994258
    %v1723 = vmul.f32 %v1703, %v1722
    %v1724 = vadd.f32 %v1723, 1.0
    %v1725 = vrcp.pop %v1724
    %v1726 = vmul.f32 %v1724, %v1725
    %v1727 = vsub.f32 1.0, %v1726
    %v1728 = vmul.f32 %v1725, %v1727
    %v1729 = vadd.f32 %v1725, %v1728
    %vm1730 = vweird.f32 %v1724
    %vm1731 = vweird.f32 %v1725
    %vm1732 = vmor %vm1730, %vm1731
    %v1733 = vsel %vm1732, %v1725, %v1729
    %v1734 = vand.u32 2147483647, %v1724
    %vm1735 = vcmp.eq.f32.partialorder %v1734, 8.507059e+37
    %v1736 = vand.u32 %v1724, 2147483648
    %v1737 = vor.u32 1.1754944e-38, %v1736
    %v1738 = vsel %vm1735, %v1737, %v1733
    %v1739 = vmul.f32 %v1714, %v1738
    %v1740 = vmin.f32 %v1739, 1.0
    %v1741 = vmax.f32 %v1740, -1.0
    %v1742 = vmul.f32 %v1648, %v1648
    %v1743 = vmin.f32 16.0, %v1742
    %v1744 = vmul.f32 %v1743, 2.1237322e-06
    %v1745 = vadd.f32 %v1744, 0.00028619796
    %v1746 = vmul.f32 %v1743, %v1745
    %v1747 = vadd.f32 %v1746, 0.0036580483
    %v1748 = vmul.f32 %v1743, %v1747
    %v1749 = vadd.f32 %v1748, 0.05243302
    %v1750 = vmul.f32 %v1743, %v1749
    %v1751 = vadd.f32 %v1750, 0.18741608
    %v1752 = vmul.f32 %v1743, %v1751
    %v1753 = vadd.f32 %v1752, 1.1283791
    %v1754 = vmul.f32 %v1648, %v1753
    %v1755 = vmul.f32 %v1743, 3.8918573e-05
    %v1756 = vadd.f32 %v1755, 0.001143296
    %v1757 = vmul.f32 %v1743, %v1756
    %v1758 = vadd.f32 %v1757, 0.014752088
    %v1759 = vmul.f32 %v1743, %v1758
    %v1760 = vadd.f32 %v1759, 0.112945676
    %v1761 = vmul.f32 %v1743, %v1760
    %v1762 = vadd.f32 %v1761, 0.4994258
    %v1763 = vmul.f32 %v1743, %v1762
    %v1764 = vadd.f32 %v1763, 1.0
    %v1765 = vrcp.pop %v1764
    %v1766 = vmul.f32 %v1764, %v1765
    %v1767 = vsub.f32 1.0, %v1766
    %v1768 = vmul.f32 %v1765, %v1767
    %v1769 = vadd.f32 %v1765, %v1768
    %vm1770 = vweird.f32 %v1764
    %vm1771 = vweird.f32 %v1765
    %vm1772 = vmor %vm1770, %vm1771
    %v1773 = vsel %vm1772, %v1765, %v1769
    %v1774 = vand.u32 2147483647, %v1764
    %vm1775 = vcmp.eq.f32.partialorder %v1774, 8.507059e+37
    %v1776 = vand.u32 %v1764, 2147483648
    %v1777 = vor.u32 1.1754944e-38, %v1776
    %v1778 = vsel %vm1775, %v1777, %v1773
    %v1779 = vmul.f32 %v1754, %v1778
    %v1780 = vmin.f32 %v1779, 1.0
    %v1781 = vmax.f32 %v1780, -1.0
    %v1782 = vmul.f32 %v1649, %v1649
    %v1783 = vmin.f32 16.0, %v1782
    %v1784 = vmul.f32 %v1783, 2.1237322e-06
    %v1785 = vadd.f32 %v1784, 0.00028619796
    %v1786 = vmul.f32 %v1783, %v1785
    %v1787 = vadd.f32 %v1786, 0.0036580483
    %v1788 = vmul.f32 %v1783, %v1787
    %v1789 = vadd.f32 %v1788, 0.05243302
    %v1790 = vmul.f32 %v1783, %v1789
    %v1791 = vadd.f32 %v1790, 0.18741608
    %v1792 = vmul.f32 %v1783, %v1791
    %v1793 = vadd.f32 %v1792, 1.1283791
    %v1794 = vmul.f32 %v1649, %v1793
    %v1795 = vmul.f32 %v1783, 3.8918573e-05
    %v1796 = vadd.f32 %v1795, 0.001143296
    %v1797 = vmul.f32 %v1783, %v1796
    %v1798 = vadd.f32 %v1797, 0.014752088
    %v1799 = vmul.f32 %v1783, %v1798
    %v1800 = vadd.f32 %v1799, 0.112945676
    %v1801 = vmul.f32 %v1783, %v1800
    %v1802 = vadd.f32 %v1801, 0.4994258
    %v1803 = vmul.f32 %v1783, %v1802
    %v1804 = vadd.f32 %v1803, 1.0
    %v1805 = vrcp.pop %v1804
    %v1806 = vmul.f32 %v1804, %v1805
    %v1807 = vsub.f32 1.0, %v1806
    %v1808 = vmul.f32 %v1805, %v1807
    %v1809 = vadd.f32 %v1805, %v1808
    %vm1810 = vweird.f32 %v1804
    %vm1811 = vweird.f32 %v1805
    %vm1812 = vmor %vm1810, %vm1811
    %v1813 = vsel %vm1812, %v1805, %v1809
    %v1814 = vand.u32 2147483647, %v1804
    %vm1815 = vcmp.eq.f32.partialorder %v1814, 8.507059e+37
    %v1816 = vand.u32 %v1804, 2147483648
    %v1817 = vor.u32 1.1754944e-38, %v1816
    %v1818 = vsel %vm1815, %v1817, %v1813
    %v1819 = vmul.f32 %v1794, %v1818
    %v1820 = vmin.f32 %v1819, 1.0
    %v1821 = vmax.f32 %v1820, -1.0
    %v1822 = vmul.f32 %v1650, %v1650
    %v1823 = vmin.f32 16.0, %v1822
    %v1824 = vmul.f32 %v1823, 2.1237322e-06
    %v1825 = vadd.f32 %v1824, 0.00028619796
    %v1826 = vmul.f32 %v1823, %v1825
    %v1827 = vadd.f32 %v1826, 0.0036580483
    %v1828 = vmul.f32 %v1823, %v1827
    %v1829 = vadd.f32 %v1828, 0.05243302
    %v1830 = vmul.f32 %v1823, %v1829
    %v1831 = vadd.f32 %v1830, 0.18741608
    %v1832 = vmul.f32 %v1823, %v1831
    %v1833 = vadd.f32 %v1832, 1.1283791
    %v1834 = vmul.f32 %v1650, %v1833
    %v1835 = vmul.f32 %v1823, 3.8918573e-05
    %v1836 = vadd.f32 %v1835, 0.001143296
    %v1837 = vmul.f32 %v1823, %v1836
    %v1838 = vadd.f32 %v1837, 0.014752088
    %v1839 = vmul.f32 %v1823, %v1838
    %v1840 = vadd.f32 %v1839, 0.112945676
    %v1841 = vmul.f32 %v1823, %v1840
    %v1842 = vadd.f32 %v1841, 0.4994258
    %v1843 = vmul.f32 %v1823, %v1842
    %v1844 = vadd.f32 %v1843, 1.0
    %v1845 = vrcp.pop %v1844
    %v1846 = vmul.f32 %v1844, %v1845
    %v1847 = vsub.f32 1.0, %v1846
    %v1848 = vmul.f32 %v1845, %v1847
    %v1849 = vadd.f32 %v1845, %v1848
    %vm1850 = vweird.f32 %v1844
    %vm1851 = vweird.f32 %v1845
    %vm1852 = vmor %vm1850, %vm1851
    %v1853 = vsel %vm1852, %v1845, %v1849
    %v1854 = vand.u32 2147483647, %v1844
    %vm1855 = vcmp.eq.f32.partialorder %v1854, 8.507059e+37
    %v1856 = vand.u32 %v1844, 2147483648
    %v1857 = vor.u32 1.1754944e-38, %v1856
    %v1858 = vsel %vm1855, %v1857, %v1853
    %v1859 = vmul.f32 %v1834, %v1858
    %v1860 = vmin.f32 %v1859, 1.0
    %v1861 = vmax.f32 %v1860, -1.0
    %v1862 = vmul.f32 %v1651, %v1651
    %v1863 = vmin.f32 16.0, %v1862
    %v1864 = vmul.f32 %v1863, 2.1237322e-06
    %v1865 = vadd.f32 %v1864, 0.00028619796
    %v1866 = vmul.f32 %v1863, %v1865
    %v1867 = vadd.f32 %v1866, 0.0036580483
    %v1868 = vmul.f32 %v1863, %v1867
    %v1869 = vadd.f32 %v1868, 0.05243302
    %v1870 = vmul.f32 %v1863, %v1869
    %v1871 = vadd.f32 %v1870, 0.18741608
    %v1872 = vmul.f32 %v1863, %v1871
    %v1873 = vadd.f32 %v1872, 1.1283791
    %v1874 = vmul.f32 %v1651, %v1873
    %v1875 = vmul.f32 %v1863, 3.8918573e-05
    %v1876 = vadd.f32 %v1875, 0.001143296
    %v1877 = vmul.f32 %v1863, %v1876
    %v1878 = vadd.f32 %v1877, 0.014752088
    %v1879 = vmul.f32 %v1863, %v1878
    %v1880 = vadd.f32 %v1879, 0.112945676
    %v1881 = vmul.f32 %v1863, %v1880
    %v1882 = vadd.f32 %v1881, 0.4994258
    %v1883 = vmul.f32 %v1863, %v1882
    %v1884 = vadd.f32 %v1883, 1.0
    %v1885 = vrcp.pop %v1884
    %v1886 = vmul.f32 %v1884, %v1885
    %v1887 = vsub.f32 1.0, %v1886
    %v1888 = vmul.f32 %v1885, %v1887
    %v1889 = vadd.f32 %v1885, %v1888
    %vm1890 = vweird.f32 %v1884
    %vm1891 = vweird.f32 %v1885
    %vm1892 = vmor %vm1890, %vm1891
    %v1893 = vsel %vm1892, %v1885, %v1889
    %v1894 = vand.u32 2147483647, %v1884
    %vm1895 = vcmp.eq.f32.partialorder %v1894, 8.507059e+37
    %v1896 = vand.u32 %v1884, 2147483648
    %v1897 = vor.u32 1.1754944e-38, %v1896
    %v1898 = vsel %vm1895, %v1897, %v1893
    %v1899 = vmul.f32 %v1874, %v1898
    %v1900 = vmin.f32 %v1899, 1.0
    %v1901 = vmax.f32 %v1900, -1.0
    %v1902 = vmul.f32 %v1652, %v1652
    %v1903 = vmin.f32 16.0, %v1902
    %v1904 = vmul.f32 %v1903, 2.1237322e-06
    %v1905 = vadd.f32 %v1904, 0.00028619796
    %v1906 = vmul.f32 %v1903, %v1905
    %v1907 = vadd.f32 %v1906, 0.0036580483
    %v1908 = vmul.f32 %v1903, %v1907
    %v1909 = vadd.f32 %v1908, 0.05243302
    %v1910 = vmul.f32 %v1903, %v1909
    %v1911 = vadd.f32 %v1910, 0.18741608
    %v1912 = vmul.f32 %v1903, %v1911
    %v1913 = vadd.f32 %v1912, 1.1283791
    %v1914 = vmul.f32 %v1652, %v1913
    %v1915 = vmul.f32 %v1903, 3.8918573e-05
    %v1916 = vadd.f32 %v1915, 0.001143296
    %v1917 = vmul.f32 %v1903, %v1916
    %v1918 = vadd.f32 %v1917, 0.014752088
    %v1919 = vmul.f32 %v1903, %v1918
    %v1920 = vadd.f32 %v1919, 0.112945676
    %v1921 = vmul.f32 %v1903, %v1920
    %v1922 = vadd.f32 %v1921, 0.4994258
    %v1923 = vmul.f32 %v1903, %v1922
    %v1924 = vadd.f32 %v1923, 1.0
    %v1925 = vrcp.pop %v1924
    %v1926 = vmul.f32 %v1924, %v1925
    %v1927 = vsub.f32 1.0, %v1926
    %v1928 = vmul.f32 %v1925, %v1927
    %v1929 = vadd.f32 %v1925, %v1928
    %vm1930 = vweird.f32 %v1924
    %vm1931 = vweird.f32 %v1925
    %vm1932 = vmor %vm1930, %vm1931
    %v1933 = vsel %vm1932, %v1925, %v1929
    %v1934 = vand.u32 2147483647, %v1924
    %vm1935 = vcmp.eq.f32.partialorder %v1934, 8.507059e+37
    %v1936 = vand.u32 %v1924, 2147483648
    %v1937 = vor.u32 1.1754944e-38, %v1936
    %v1938 = vsel %vm1935, %v1937, %v1933
    %v1939 = vmul.f32 %v1914, %v1938
    %v1940 = vmin.f32 %v1939, 1.0
    %v1941 = vmax.f32 %v1940, -1.0
    %v1942 = vmul.f32 %v1653, %v1653
    %v1943 = vmin.f32 16.0, %v1942
    %v1944 = vmul.f32 %v1943, 2.1237322e-06
    %v1945 = vadd.f32 %v1944, 0.00028619796
    %v1946 = vmul.f32 %v1943, %v1945
    %v1947 = vadd.f32 %v1946, 0.0036580483
    %v1948 = vmul.f32 %v1943, %v1947
    %v1949 = vadd.f32 %v1948, 0.05243302
    %v1950 = vmul.f32 %v1943, %v1949
    %v1951 = vadd.f32 %v1950, 0.18741608
    %v1952 = vmul.f32 %v1943, %v1951
    %v1953 = vadd.f32 %v1952, 1.1283791
    %v1954 = vmul.f32 %v1653, %v1953
    %v1955 = vmul.f32 %v1943, 3.8918573e-05
    %v1956 = vadd.f32 %v1955, 0.001143296
    %v1957 = vmul.f32 %v1943, %v1956
    %v1958 = vadd.f32 %v1957, 0.014752088
    %v1959 = vmul.f32 %v1943, %v1958
    %v1960 = vadd.f32 %v1959, 0.112945676
    %v1961 = vmul.f32 %v1943, %v1960
    %v1962 = vadd.f32 %v1961, 0.4994258
    %v1963 = vmul.f32 %v1943, %v1962
    %v1964 = vadd.f32 %v1963, 1.0
    %v1965 = vrcp.pop %v1964
    %v1966 = vmul.f32 %v1964, %v1965
    %v1967 = vsub.f32 1.0, %v1966
    %v1968 = vmul.f32 %v1965, %v1967
    %v1969 = vadd.f32 %v1965, %v1968
    %vm1970 = vweird.f32 %v1964
    %vm1971 = vweird.f32 %v1965
    %vm1972 = vmor %vm1970, %vm1971
    %v1973 = vsel %vm1972, %v1965, %v1969
    %v1974 = vand.u32 2147483647, %v1964
    %vm1975 = vcmp.eq.f32.partialorder %v1974, 8.507059e+37
    %v1976 = vand.u32 %v1964, 2147483648
    %v1977 = vor.u32 1.1754944e-38, %v1976
    %v1978 = vsel %vm1975, %v1977, %v1973
    %v1979 = vmul.f32 %v1954, %v1978
    %v1980 = vmin.f32 %v1979, 1.0
    %v1981 = vmax.f32 %v1980, -1.0
    %v1982 = vmul.f32 %v1654, %v1654
    %v1983 = vmin.f32 16.0, %v1982
    %v1984 = vmul.f32 %v1983, 2.1237322e-06
    %v1985 = vadd.f32 %v1984, 0.00028619796
    %v1986 = vmul.f32 %v1983, %v1985
    %v1987 = vadd.f32 %v1986, 0.0036580483
    %v1988 = vmul.f32 %v1983, %v1987
    %v1989 = vadd.f32 %v1988, 0.05243302
    %v1990 = vmul.f32 %v1983, %v1989
    %v1991 = vadd.f32 %v1990, 0.18741608
    %v1992 = vmul.f32 %v1983, %v1991
    %v1993 = vadd.f32 %v1992, 1.1283791
    %v1994 = vmul.f32 %v1654, %v1993
    %v1995 = vmul.f32 %v1983, 3.8918573e-05
    %v1996 = vadd.f32 %v1995, 0.001143296
    %v1997 = vmul.f32 %v1983, %v1996
    %v1998 = vadd.f32 %v1997, 0.014752088
    %v1999 = vmul.f32 %v1983, %v1998
    %v2000 = vadd.f32 %v1999, 0.112945676
    %v2001 = vmul.f32 %v1983, %v2000
    %v2002 = vadd.f32 %v2001, 0.4994258
    %v2003 = vmul.f32 %v1983, %v2002
    %v2004 = vadd.f32 %v2003, 1.0
    %v2005 = vrcp.pop %v2004
    %v2006 = vmul.f32 %v2004, %v2005
    %v2007 = vsub.f32 1.0, %v2006
    %v2008 = vmul.f32 %v2005, %v2007
    %v2009 = vadd.f32 %v2005, %v2008
    %vm2010 = vweird.f32 %v2004
    %vm2011 = vweird.f32 %v2005
    %vm2012 = vmor %vm2010, %vm2011
    %v2013 = vsel %vm2012, %v2005, %v2009
    %v2014 = vand.u32 2147483647, %v2004
    %vm2015 = vcmp.eq.f32.partialorder %v2014, 8.507059e+37
    %v2016 = vand.u32 %v2004, 2147483648
    %v2017 = vor.u32 1.1754944e-38, %v2016
    %v2018 = vsel %vm2015, %v2017, %v2013
    %v2019 = vmul.f32 %v1994, %v2018
    %v2020 = vmin.f32 %v2019, 1.0
    %v2021 = vmax.f32 %v2020, -1.0
    %v2022 = vmul.f32 %v1655, %v1655
    %v2023 = vmin.f32 16.0, %v2022
    %v2024 = vmul.f32 %v2023, 2.1237322e-06
    %v2025 = vadd.f32 %v2024, 0.00028619796
    %v2026 = vmul.f32 %v2023, %v2025
    %v2027 = vadd.f32 %v2026, 0.0036580483
    %v2028 = vmul.f32 %v2023, %v2027
    %v2029 = vadd.f32 %v2028, 0.05243302
    %v2030 = vmul.f32 %v2023, %v2029
    %v2031 = vadd.f32 %v2030, 0.18741608
    %v2032 = vmul.f32 %v2023, %v2031
    %v2033 = vadd.f32 %v2032, 1.1283791
    %v2034 = vmul.f32 %v1655, %v2033
    %v2035 = vmul.f32 %v2023, 3.8918573e-05
    %v2036 = vadd.f32 %v2035, 0.001143296
    %v2037 = vmul.f32 %v2023, %v2036
    %v2038 = vadd.f32 %v2037, 0.014752088
    %v2039 = vmul.f32 %v2023, %v2038
    %v2040 = vadd.f32 %v2039, 0.112945676
    %v2041 = vmul.f32 %v2023, %v2040
    %v2042 = vadd.f32 %v2041, 0.4994258
    %v2043 = vmul.f32 %v2023, %v2042
    %v2044 = vadd.f32 %v2043, 1.0
    %v2045 = vrcp.pop %v2044
    %v2046 = vmul.f32 %v2044, %v2045
    %v2047 = vsub.f32 1.0, %v2046
    %v2048 = vmul.f32 %v2045, %v2047
    %v2049 = vadd.f32 %v2045, %v2048
    %vm2050 = vweird.f32 %v2044
    %vm2051 = vweird.f32 %v2045
    %vm2052 = vmor %vm2050, %vm2051
    %v2053 = vsel %vm2052, %v2045, %v2049
    %v2054 = vand.u32 2147483647, %v2044
    %vm2055 = vcmp.eq.f32.partialorder %v2054, 8.507059e+37
    %v2056 = vand.u32 %v2044, 2147483648
    %v2057 = vor.u32 1.1754944e-38, %v2056
    %v2058 = vsel %vm2055, %v2057, %v2053
    %v2059 = vmul.f32 %v2034, %v2058
    %v2060 = vmin.f32 %v2059, 1.0
    %v2061 = vmax.f32 %v2060, -1.0
    %v2062 = vmul.f32 %v1656, %v1656
    %v2063 = vmin.f32 16.0, %v2062
    %v2064 = vmul.f32 %v2063, 2.1237322e-06
    %v2065 = vadd.f32 %v2064, 0.00028619796
    %v2066 = vmul.f32 %v2063, %v2065
    %v2067 = vadd.f32 %v2066, 0.0036580483
    %v2068 = vmul.f32 %v2063, %v2067
    %v2069 = vadd.f32 %v2068, 0.05243302
    %v2070 = vmul.f32 %v2063, %v2069
    %v2071 = vadd.f32 %v2070, 0.18741608
    %v2072 = vmul.f32 %v2063, %v2071
    %v2073 = vadd.f32 %v2072, 1.1283791
    %v2074 = vmul.f32 %v1656, %v2073
    %v2075 = vmul.f32 %v2063, 3.8918573e-05
    %v2076 = vadd.f32 %v2075, 0.001143296
    %v2077 = vmul.f32 %v2063, %v2076
    %v2078 = vadd.f32 %v2077, 0.014752088
    %v2079 = vmul.f32 %v2063, %v2078
    %v2080 = vadd.f32 %v2079, 0.112945676
    %v2081 = vmul.f32 %v2063, %v2080
    %v2082 = vadd.f32 %v2081, 0.4994258
    %v2083 = vmul.f32 %v2063, %v2082
    %v2084 = vadd.f32 %v2083, 1.0
    %v2085 = vrcp.pop %v2084
    %v2086 = vmul.f32 %v2084, %v2085
    %v2087 = vsub.f32 1.0, %v2086
    %v2088 = vmul.f32 %v2085, %v2087
    %v2089 = vadd.f32 %v2085, %v2088
    %vm2090 = vweird.f32 %v2084
    %vm2091 = vweird.f32 %v2085
    %vm2092 = vmor %vm2090, %vm2091
    %v2093 = vsel %vm2092, %v2085, %v2089
    %v2094 = vand.u32 2147483647, %v2084
    %vm2095 = vcmp.eq.f32.partialorder %v2094, 8.507059e+37
    %v2096 = vand.u32 %v2084, 2147483648
    %v2097 = vor.u32 1.1754944e-38, %v2096
    %v2098 = vsel %vm2095, %v2097, %v2093
    %v2099 = vmul.f32 %v2074, %v2098
    %v2100 = vmin.f32 %v2099, 1.0
    %v2101 = vmax.f32 %v2100, -1.0
    %v2102 = vmul.f32 %v1657, %v1657
    %v2103 = vmin.f32 16.0, %v2102
    %v2104 = vmul.f32 %v2103, 2.1237322e-06
    %v2105 = vadd.f32 %v2104, 0.00028619796
    %v2106 = vmul.f32 %v2103, %v2105
    %v2107 = vadd.f32 %v2106, 0.0036580483
    %v2108 = vmul.f32 %v2103, %v2107
    %v2109 = vadd.f32 %v2108, 0.05243302
    %v2110 = vmul.f32 %v2103, %v2109
    %v2111 = vadd.f32 %v2110, 0.18741608
    %v2112 = vmul.f32 %v2103, %v2111
    %v2113 = vadd.f32 %v2112, 1.1283791
    %v2114 = vmul.f32 %v1657, %v2113
    %v2115 = vmul.f32 %v2103, 3.8918573e-05
    %v2116 = vadd.f32 %v2115, 0.001143296
    %v2117 = vmul.f32 %v2103, %v2116
    %v2118 = vadd.f32 %v2117, 0.014752088
    %v2119 = vmul.f32 %v2103, %v2118
    %v2120 = vadd.f32 %v2119, 0.112945676
    %v2121 = vmul.f32 %v2103, %v2120
    %v2122 = vadd.f32 %v2121, 0.4994258
    %v2123 = vmul.f32 %v2103, %v2122
    %v2124 = vadd.f32 %v2123, 1.0
    %v2125 = vrcp.pop %v2124
    %v2126 = vmul.f32 %v2124, %v2125
    %v2127 = vsub.f32 1.0, %v2126
    %v2128 = vmul.f32 %v2125, %v2127
    %v2129 = vadd.f32 %v2125, %v2128
    %vm2130 = vweird.f32 %v2124
    %vm2131 = vweird.f32 %v2125
    %vm2132 = vmor %vm2130, %vm2131
    %v2133 = vsel %vm2132, %v2125, %v2129
    %v2134 = vand.u32 2147483647, %v2124
    %vm2135 = vcmp.eq.f32.partialorder %v2134, 8.507059e+37
    %v2136 = vand.u32 %v2124, 2147483648
    %v2137 = vor.u32 1.1754944e-38, %v2136
    %v2138 = vsel %vm2135, %v2137, %v2133
    %v2139 = vmul.f32 %v2114, %v2138
    %v2140 = vmin.f32 %v2139, 1.0
    %v2141 = vmax.f32 %v2140, -1.0
    %v2142 = vmul.f32 %v1658, %v1658
    %v2143 = vmin.f32 16.0, %v2142
    %v2144 = vmul.f32 %v2143, 2.1237322e-06
    %v2145 = vadd.f32 %v2144, 0.00028619796
    %v2146 = vmul.f32 %v2143, %v2145
    %v2147 = vadd.f32 %v2146, 0.0036580483
    %v2148 = vmul.f32 %v2143, %v2147
    %v2149 = vadd.f32 %v2148, 0.05243302
    %v2150 = vmul.f32 %v2143, %v2149
    %v2151 = vadd.f32 %v2150, 0.18741608
    %v2152 = vmul.f32 %v2143, %v2151
    %v2153 = vadd.f32 %v2152, 1.1283791
    %v2154 = vmul.f32 %v1658, %v2153
    %v2155 = vmul.f32 %v2143, 3.8918573e-05
    %v2156 = vadd.f32 %v2155, 0.001143296
    %v2157 = vmul.f32 %v2143, %v2156
    %v2158 = vadd.f32 %v2157, 0.014752088
    %v2159 = vmul.f32 %v2143, %v2158
    %v2160 = vadd.f32 %v2159, 0.112945676
    %v2161 = vmul.f32 %v2143, %v2160
    %v2162 = vadd.f32 %v2161, 0.4994258
    %v2163 = vmul.f32 %v2143, %v2162
    %v2164 = vadd.f32 %v2163, 1.0
    %v2165 = vrcp.pop %v2164
    %v2166 = vmul.f32 %v2164, %v2165
    %v2167 = vsub.f32 1.0, %v2166
    %v2168 = vmul.f32 %v2165, %v2167
    %v2169 = vadd.f32 %v2165, %v2168
    %vm2170 = vweird.f32 %v2164
    %vm2171 = vweird.f32 %v2165
    %vm2172 = vmor %vm2170, %vm2171
    %v2173 = vsel %vm2172, %v2165, %v2169
    %v2174 = vand.u32 2147483647, %v2164
    %vm2175 = vcmp.eq.f32.partialorder %v2174, 8.507059e+37
    %v2176 = vand.u32 %v2164, 2147483648
    %v2177 = vor.u32 1.1754944e-38, %v2176
    %v2178 = vsel %vm2175, %v2177, %v2173
    %v2179 = vmul.f32 %v2154, %v2178
    %v2180 = vmin.f32 %v2179, 1.0
    %v2181 = vmax.f32 %v2180, -1.0
    %v2182 = vmul.f32 %v1659, %v1659
    %v2183 = vmin.f32 16.0, %v2182
    %v2184 = vmul.f32 %v2183, 2.1237322e-06
    %v2185 = vadd.f32 %v2184, 0.00028619796
    %v2186 = vmul.f32 %v2183, %v2185
    %v2187 = vadd.f32 %v2186, 0.0036580483
    %v2188 = vmul.f32 %v2183, %v2187
    %v2189 = vadd.f32 %v2188, 0.05243302
    %v2190 = vmul.f32 %v2183, %v2189
    %v2191 = vadd.f32 %v2190, 0.18741608
    %v2192 = vmul.f32 %v2183, %v2191
    %v2193 = vadd.f32 %v2192, 1.1283791
    %v2194 = vmul.f32 %v1659, %v2193
    %v2195 = vmul.f32 %v2183, 3.8918573e-05
    %v2196 = vadd.f32 %v2195, 0.001143296
    %v2197 = vmul.f32 %v2183, %v2196
    %v2198 = vadd.f32 %v2197, 0.014752088
    %v2199 = vmul.f32 %v2183, %v2198
    %v2200 = vadd.f32 %v2199, 0.112945676
    %v2201 = vmul.f32 %v2183, %v2200
    %v2202 = vadd.f32 %v2201, 0.4994258
    %v2203 = vmul.f32 %v2183, %v2202
    %v2204 = vadd.f32 %v2203, 1.0
    %v2205 = vrcp.pop %v2204
    %v2206 = vmul.f32 %v2204, %v2205
    %v2207 = vsub.f32 1.0, %v2206
    %v2208 = vmul.f32 %v2205, %v2207
    %v2209 = vadd.f32 %v2205, %v2208
    %vm2210 = vweird.f32 %v2204
    %vm2211 = vweird.f32 %v2205
    %vm2212 = vmor %vm2210, %vm2211
    %v2213 = vsel %vm2212, %v2205, %v2209
    %v2214 = vand.u32 2147483647, %v2204
    %vm2215 = vcmp.eq.f32.partialorder %v2214, 8.507059e+37
    %v2216 = vand.u32 %v2204, 2147483648
    %v2217 = vor.u32 1.1754944e-38, %v2216
    %v2218 = vsel %vm2215, %v2217, %v2213
    %v2219 = vmul.f32 %v2194, %v2218
    %v2220 = vmin.f32 %v2219, 1.0
    %v2221 = vmax.f32 %v2220, -1.0
    %v2222 = vmul.f32 %v1660, %v1660
    %v2223 = vmin.f32 16.0, %v2222
    %v2224 = vmul.f32 %v2223, 2.1237322e-06
    %v2225 = vadd.f32 %v2224, 0.00028619796
    %v2226 = vmul.f32 %v2223, %v2225
    %v2227 = vadd.f32 %v2226, 0.0036580483
    %v2228 = vmul.f32 %v2223, %v2227
    %v2229 = vadd.f32 %v2228, 0.05243302
    %v2230 = vmul.f32 %v2223, %v2229
    %v2231 = vadd.f32 %v2230, 0.18741608
    %v2232 = vmul.f32 %v2223, %v2231
    %v2233 = vadd.f32 %v2232, 1.1283791
    %v2234 = vmul.f32 %v1660, %v2233
    %v2235 = vmul.f32 %v2223, 3.8918573e-05
    %v2236 = vadd.f32 %v2235, 0.001143296
    %v2237 = vmul.f32 %v2223, %v2236
    %v2238 = vadd.f32 %v2237, 0.014752088
    %v2239 = vmul.f32 %v2223, %v2238
    %v2240 = vadd.f32 %v2239, 0.112945676
    %v2241 = vmul.f32 %v2223, %v2240
    %v2242 = vadd.f32 %v2241, 0.4994258
    %v2243 = vmul.f32 %v2223, %v2242
    %v2244 = vadd.f32 %v2243, 1.0
    %v2245 = vrcp.pop %v2244
    %v2246 = vmul.f32 %v2244, %v2245
    %v2247 = vsub.f32 1.0, %v2246
    %v2248 = vmul.f32 %v2245, %v2247
    %v2249 = vadd.f32 %v2245, %v2248
    %vm2250 = vweird.f32 %v2244
    %vm2251 = vweird.f32 %v2245
    %vm2252 = vmor %vm2250, %vm2251
    %v2253 = vsel %vm2252, %v2245, %v2249
    %v2254 = vand.u32 2147483647, %v2244
    %vm2255 = vcmp.eq.f32.partialorder %v2254, 8.507059e+37
    %v2256 = vand.u32 %v2244, 2147483648
    %v2257 = vor.u32 1.1754944e-38, %v2256
    %v2258 = vsel %vm2255, %v2257, %v2253
    %v2259 = vmul.f32 %v2234, %v2258
    %v2260 = vmin.f32 %v2259, 1.0
    %v2261 = vmax.f32 %v2260, -1.0
    %v2262 = vmul.f32 %v1661, %v1661
    %v2263 = vmin.f32 16.0, %v2262
    %v2264 = vmul.f32 %v2263, 2.1237322e-06
    %v2265 = vadd.f32 %v2264, 0.00028619796
    %v2266 = vmul.f32 %v2263, %v2265
    %v2267 = vadd.f32 %v2266, 0.0036580483
    %v2268 = vmul.f32 %v2263, %v2267
    %v2269 = vadd.f32 %v2268, 0.05243302
    %v2270 = vmul.f32 %v2263, %v2269
    %v2271 = vadd.f32 %v2270, 0.18741608
    %v2272 = vmul.f32 %v2263, %v2271
    %v2273 = vadd.f32 %v2272, 1.1283791
    %v2274 = vmul.f32 %v1661, %v2273
    %v2275 = vmul.f32 %v2263, 3.8918573e-05
    %v2276 = vadd.f32 %v2275, 0.001143296
    %v2277 = vmul.f32 %v2263, %v2276
    %v2278 = vadd.f32 %v2277, 0.014752088
    %v2279 = vmul.f32 %v2263, %v2278
    %v2280 = vadd.f32 %v2279, 0.112945676
    %v2281 = vmul.f32 %v2263, %v2280
    %v2282 = vadd.f32 %v2281, 0.4994258
    %v2283 = vmul.f32 %v2263, %v2282
    %v2284 = vadd.f32 %v2283, 1.0
    %v2285 = vrcp.pop %v2284
    %v2286 = vmul.f32 %v2284, %v2285
    %v2287 = vsub.f32 1.0, %v2286
    %v2288 = vmul.f32 %v2285, %v2287
    %v2289 = vadd.f32 %v2285, %v2288
    %vm2290 = vweird.f32 %v2284
    %vm2291 = vweird.f32 %v2285
    %vm2292 = vmor %vm2290, %vm2291
    %v2293 = vsel %vm2292, %v2285, %v2289
    %v2294 = vand.u32 2147483647, %v2284
    %vm2295 = vcmp.eq.f32.partialorder %v2294, 8.507059e+37
    %v2296 = vand.u32 %v2284, 2147483648
    %v2297 = vor.u32 1.1754944e-38, %v2296
    %v2298 = vsel %vm2295, %v2297, %v2293
    %v2299 = vmul.f32 %v2274, %v2298
    %v2300 = vmin.f32 %v2299, 1.0
    %v2301 = vmax.f32 %v2300, -1.0
    %v2302 = vadd.f32 %v1701, 1.0
    %v2303 = vadd.f32 %v1741, 1.0
    %v2304 = vadd.f32 %v1781, 1.0
    %v2305 = vadd.f32 %v1821, 1.0
    %v2306 = vadd.f32 %v1861, 1.0
    %v2307 = vadd.f32 %v1901, 1.0
    %v2308 = vadd.f32 %v1941, 1.0
    %v2309 = vadd.f32 %v1981, 1.0
    %v2310 = vadd.f32 %v2021, 1.0
    %v2311 = vadd.f32 %v2061, 1.0
    %v2312 = vadd.f32 %v2101, 1.0
    %v2313 = vadd.f32 %v2141, 1.0
    %v2314 = vadd.f32 %v2181, 1.0
    %v2315 = vadd.f32 %v2221, 1.0
    %v2316 = vadd.f32 %v2261, 1.0
    %v2317 = vadd.f32 %v2301, 1.0
    %v2318 = vmul.f32 %v1630, %v2302
    %v2319 = vmul.f32 %v1631, %v2303
    %v2320 = vmul.f32 %v1632, %v2304
    %v2321 = vmul.f32 %v1633, %v2305
    %v2322 = vmul.f32 %v1634, %v2306
    %v2323 = vmul.f32 %v1635, %v2307
    %v2324 = vmul.f32 %v1636, %v2308
    %v2325 = vmul.f32 %v1637, %v2309
    %v2326 = vmul.f32 %v1638, %v2310
    %v2327 = vmul.f32 %v1639, %v2311
    %v2328 = vmul.f32 %v1640, %v2312
    %v2329 = vmul.f32 %v1641, %v2313
    %v2330 = vmul.f32 %v1642, %v2314
    %v2331 = vmul.f32 %v1643, %v2315
    %v2332 = vmul.f32 %v1644, %v2316
    %v2333 = vmul.f32 %v1645, %v2317
    %v2334 = vpack.c.bf16 %v2322, %v2318
    %v2335 = vpack.c.bf16 %v2323, %v2319
    %v2336 = vpack.c.bf16 %v2324, %v2320
    %v2337 = vpack.c.bf16 %v2325, %v2321
    %v2338 = vpack.c.bf16 %v2330, %v2326
    %v2339 = vpack.c.bf16 %v2331, %v2327
    %v2340 = vpack.c.bf16 %v2332, %v2328
    %v2341 = vpack.c.bf16 %v2333, %v2329
    %v2342 = vld [vmem:[#allocation14] sm:$0xf]
    %v2343 = vld [vmem:[#allocation14 + $0x4] sm:$0xf]
    %v2344 = vld [vmem:[#allocation14 + $0x8] sm:$0xf]
    %v2345 = vld [vmem:[#allocation14 + $0xc] sm:$0xf]
    %v2346 = vld [vmem:[#allocation14 + $0x10] sm:$0xf]
    %v2347 = vld [vmem:[#allocation14 + $0x14] sm:$0xf]
    %v2348 = vld [vmem:[#allocation14 + $0x18] sm:$0xf]
    %v2349 = vld [vmem:[#allocation14 + $0x1c] sm:$0xf]
    %v2350 = vld [vmem:[#allocation14 + $0x20] sm:$0xf]
    %v2351 = vld [vmem:[#allocation14 + $0x24] sm:$0xf]
    %v2352 = vld [vmem:[#allocation14 + $0x28] sm:$0xf]
    %v2353 = vld [vmem:[#allocation14 + $0x2c] sm:$0xf]
    %v2354 = vld [vmem:[#allocation14 + $0x30] sm:$0xf]
    %v2355 = vld [vmem:[#allocation14 + $0x34] sm:$0xf]
    %v2356 = vld [vmem:[#allocation14 + $0x38] sm:$0xf]
    %v2357 = vld [vmem:[#allocation14 + $0x3c] sm:$0xf]
    %v2358 = vld [vmem:[#allocation14 + $0x40] sm:$0xf]
    %v2359 = vld [vmem:[#allocation14 + $0x44] sm:$0xf]
    %v2360 = vld [vmem:[#allocation14 + $0x48] sm:$0xf]
    %v2361 = vld [vmem:[#allocation14 + $0x4c] sm:$0xf]
    %v2362 = vld [vmem:[#allocation14 + $0x50] sm:$0xf]
    %v2363 = vld [vmem:[#allocation14 + $0x54] sm:$0xf]
    %v2364 = vld [vmem:[#allocation14 + $0x58] sm:$0xf]
    %v2365 = vld [vmem:[#allocation14 + $0x5c] sm:$0xf]
    %v2366 = vld [vmem:[#allocation14 + $0x60] sm:$0xf]
    %v2367 = vld [vmem:[#allocation14 + $0x64] sm:$0xf]
    %v2368 = vld [vmem:[#allocation14 + $0x68] sm:$0xf]
    %v2369 = vld [vmem:[#allocation14 + $0x6c] sm:$0xf]
    %v2370 = vld [vmem:[#allocation14 + $0x70] sm:$0xf]
    %v2371 = vld [vmem:[#allocation14 + $0x74] sm:$0xf]
    %v2372 = vld [vmem:[#allocation14 + $0x78] sm:$0xf]
    %v2373 = vld [vmem:[#allocation14 + $0x7c] sm:$0xf]
    %v2374 = vld [vmem:[#allocation14 + $0x80] sm:$0xf]
    %v2375 = vld [vmem:[#allocation14 + $0x84] sm:$0xf]
    %v2376 = vld [vmem:[#allocation14 + $0x88] sm:$0xf]
    %v2377 = vld [vmem:[#allocation14 + $0x8c] sm:$0xf]
    %v2378 = vld [vmem:[#allocation14 + $0x90] sm:$0xf]
    %v2379 = vld [vmem:[#allocation14 + $0x94] sm:$0xf]
    %v2380 = vld [vmem:[#allocation14 + $0x98] sm:$0xf]
    %v2381 = vld [vmem:[#allocation14 + $0x9c] sm:$0xf]
    %v2382 = vld [vmem:[#allocation14 + $0xa0] sm:$0xf]
    %v2383 = vld [vmem:[#allocation14 + $0xa4] sm:$0xf]
    %v2384 = vld [vmem:[#allocation14 + $0xa8] sm:$0xf]
    %v2385 = vld [vmem:[#allocation14 + $0xac] sm:$0xf]
    %v2386 = vld [vmem:[#allocation14 + $0xb0] sm:$0xf]
    %v2387 = vld [vmem:[#allocation14 + $0xb4] sm:$0xf]
    %v2388 = vld [vmem:[#allocation14 + $0xb8] sm:$0xf]
    %v2389 = vld [vmem:[#allocation14 + $0xbc] sm:$0xf]
    %v2390 = vld [vmem:[#allocation14 + $0xc0] sm:$0xf]
    %v2391 = vld [vmem:[#allocation14 + $0xc4] sm:$0xf]
    %v2392 = vld [vmem:[#allocation14 + $0xc8] sm:$0xf]
    %v2393 = vld [vmem:[#allocation14 + $0xcc] sm:$0xf]
    %v2394 = vld [vmem:[#allocation14 + $0xd0] sm:$0xf]
    %v2395 = vld [vmem:[#allocation14 + $0xd4] sm:$0xf]
    %v2396 = vld [vmem:[#allocation14 + $0xd8] sm:$0xf]
    %v2397 = vld [vmem:[#allocation14 + $0xdc] sm:$0xf]
    %v2398 = vld [vmem:[#allocation14 + $0xe0] sm:$0xf]
    %v2399 = vld [vmem:[#allocation14 + $0xe4] sm:$0xf]
    %v2400 = vld [vmem:[#allocation14 + $0xe8] sm:$0xf]
    %v2401 = vld [vmem:[#allocation14 + $0xec] sm:$0xf]
    %v2402 = vld [vmem:[#allocation14 + $0xf0] sm:$0xf]
    %v2403 = vld [vmem:[#allocation14 + $0xf4] sm:$0xf]
    %v2404 = vld [vmem:[#allocation14 + $0xf8] sm:$0xf]
    %v2405 = vld [vmem:[#allocation14 + $0xfc] sm:$0xf]
    %v2406 = vld [vmem:[%s11] sm:$0x1]
    %v2408 = vperm.slane %v2406, 0
    %v2474 = vunpack.c.l.b16 %v2342
    %v2475 = vunpack.c.l.b16 %v2343
    %v2476 = vunpack.c.l.b16 %v2344
    %v2477 = vunpack.c.l.b16 %v2345
    %v2478 = vunpack.c.l.b16 %v2346
    %v2479 = vunpack.c.l.b16 %v2347
    %v2480 = vunpack.c.l.b16 %v2348
    %v2481 = vunpack.c.l.b16 %v2349
    %v2482 = vunpack.c.l.b16 %v2350
    %v2483 = vunpack.c.l.b16 %v2351
    %v2484 = vunpack.c.l.b16 %v2352
    %v2485 = vunpack.c.l.b16 %v2353
    %v2486 = vunpack.c.l.b16 %v2354
    %v2487 = vunpack.c.l.b16 %v2355
    %v2488 = vunpack.c.l.b16 %v2356
    %v2489 = vunpack.c.l.b16 %v2357
    %v2490 = vunpack.c.l.b16 %v2358
    %v2491 = vunpack.c.l.b16 %v2359
    %v2492 = vunpack.c.l.b16 %v2360
    %v2493 = vunpack.c.l.b16 %v2361
    %v2494 = vunpack.c.l.b16 %v2362
    %v2495 = vunpack.c.l.b16 %v2363
    %v2496 = vunpack.c.l.b16 %v2364
    %v2497 = vunpack.c.l.b16 %v2365
    %v2498 = vunpack.c.l.b16 %v2366
    %v2499 = vunpack.c.l.b16 %v2367
    %v2500 = vunpack.c.l.b16 %v2368
    %v2501 = vunpack.c.l.b16 %v2369
    %v2502 = vunpack.c.l.b16 %v2370
    %v2503 = vunpack.c.l.b16 %v2371
    %v2504 = vunpack.c.l.b16 %v2372
    %v2505 = vunpack.c.l.b16 %v2373
    %v2506 = vunpack.c.l.b16 %v2374
    %v2507 = vunpack.c.l.b16 %v2375
    %v2508 = vunpack.c.l.b16 %v2376
    %v2509 = vunpack.c.l.b16 %v2377
    %v2510 = vunpack.c.l.b16 %v2378
    %v2511 = vunpack.c.l.b16 %v2379
    %v2512 = vunpack.c.l.b16 %v2380
    %v2513 = vunpack.c.l.b16 %v2381
    %v2514 = vunpack.c.l.b16 %v2382
    %v2515 = vunpack.c.l.b16 %v2383
    %v2516 = vunpack.c.l.b16 %v2384
    %v2517 = vunpack.c.l.b16 %v2385
    %v2518 = vunpack.c.l.b16 %v2386
    %v2519 = vunpack.c.l.b16 %v2387
    %v2520 = vunpack.c.l.b16 %v2388
    %v2521 = vunpack.c.l.b16 %v2389
    %v2522 = vunpack.c.l.b16 %v2390
    %v2523 = vunpack.c.l.b16 %v2391
    %v2524 = vunpack.c.l.b16 %v2392
    %v2525 = vunpack.c.l.b16 %v2393
    %v2526 = vunpack.c.l.b16 %v2394
    %v2527 = vunpack.c.l.b16 %v2395
    %v2528 = vunpack.c.l.b16 %v2396
    %v2529 = vunpack.c.l.b16 %v2397
    %v2530 = vunpack.c.l.b16 %v2398
    %v2531 = vunpack.c.l.b16 %v2399
    %v2532 = vunpack.c.l.b16 %v2400
    %v2533 = vunpack.c.l.b16 %v2401
    %v2534 = vunpack.c.l.b16 %v2402
    %v2535 = vunpack.c.l.b16 %v2403
    %v2536 = vunpack.c.l.b16 %v2404
    %v2537 = vunpack.c.l.b16 %v2405
    %v2538 = vpack.c.b16 %v2475, %v2474
    %v2539 = vpack.c.b16 %v2477, %v2476
    %v2540 = vpack.c.b16 %v2479, %v2478
    %v2541 = vpack.c.b16 %v2481, %v2480
    %v2542 = vpack.c.b16 %v2483, %v2482
    %v2543 = vpack.c.b16 %v2485, %v2484
    %v2544 = vpack.c.b16 %v2487, %v2486
    %v2545 = vpack.c.b16 %v2489, %v2488
    %v2546 = vpack.c.b16 %v2491, %v2490
    %v2547 = vpack.c.b16 %v2493, %v2492
    %v2548 = vpack.c.b16 %v2495, %v2494
    %v2549 = vpack.c.b16 %v2497, %v2496
    %v2550 = vpack.c.b16 %v2499, %v2498
    %v2551 = vpack.c.b16 %v2501, %v2500
    %v2552 = vpack.c.b16 %v2503, %v2502
    %v2553 = vpack.c.b16 %v2505, %v2504
    %v2554 = vpack.c.b16 %v2507, %v2506
    %v2555 = vpack.c.b16 %v2509, %v2508
    %v2556 = vpack.c.b16 %v2511, %v2510
    %v2557 = vpack.c.b16 %v2513, %v2512
    %v2558 = vpack.c.b16 %v2515, %v2514
    %v2559 = vpack.c.b16 %v2517, %v2516
    %v2560 = vpack.c.b16 %v2519, %v2518
    %v2561 = vpack.c.b16 %v2521, %v2520
    %v2562 = vpack.c.b16 %v2523, %v2522
    %v2563 = vpack.c.b16 %v2525, %v2524
    %v2564 = vpack.c.b16 %v2527, %v2526
    %v2565 = vpack.c.b16 %v2529, %v2528
    %v2566 = vpack.c.b16 %v2531, %v2530
    %v2567 = vpack.c.b16 %v2533, %v2532
    %v2568 = vpack.c.b16 %v2535, %v2534
    %v2569 = vpack.c.b16 %v2537, %v2536
    %2602 = vmatpush.bf16.msra.mxu0 %v2545
    %2603 = vmatpush.bf16.msra.mxu0 %v2544
    %2604 = vmatpush.bf16.msra.mxu0 %v2543
    %2605 = vmatpush.bf16.msra.mxu0 %v2542
    %2606 = vmatpush.bf16.msra.mxu0 %v2541
    %2607 = vmatpush.bf16.msra.mxu0 %v2540
    %2608 = vmatpush.bf16.msra.mxu0 %v2539
    %2609 = vmatpush.bf16.msra.mxu0 %v2538
    %2610 = vmatmul.bf16.gmra.mxu0 %v2334
    %v2611 = vpop.f32.mrf.mxu0
    %v2612 = vadd.f32 %v2408, %v2611
    %v2613 = vpop.f32.mrf.mxu0
    %v2614 = vadd.f32 %v2408, %v2613
    %2615 = vmatmul.bf16.gmra.mxu0 %v2338
    %v2616 = vpop.f32.mrf.mxu0
    %v2617 = vadd.f32 %v2408, %v2616
    %v2618 = vpop.f32.mrf.mxu0
    %v2619 = vadd.f32 %v2408, %v2618
    %2620 = vdwg.mxu0
    %2621 = vmatpush.bf16.msra.mxu0 %v2553
    %2622 = vmatpush.bf16.msra.mxu0 %v2552
    %2623 = vmatpush.bf16.msra.mxu0 %v2551
    %2624 = vmatpush.bf16.msra.mxu0 %v2550
    %2625 = vmatpush.bf16.msra.mxu0 %v2549
    %2626 = vmatpush.bf16.msra.mxu0 %v2548
    %2627 = vmatpush.bf16.msra.mxu0 %v2547
    %2628 = vmatpush.bf16.msra.mxu0 %v2546
    %2629 = vmatmul.bf16.gmra.mxu0 %v2335
    %v2630 = vpop.f32.mrf.mxu0
    %v2631 = vadd.f32 %v2612, %v2630
    %v2632 = vpop.f32.mrf.mxu0
    %v2633 = vadd.f32 %v2614, %v2632
    %2634 = vmatmul.bf16.gmra.mxu0 %v2339
    %v2635 = vpop.f32.mrf.mxu0
    %v2636 = vadd.f32 %v2617, %v2635
    %v2637 = vpop.f32.mrf.mxu0
    %v2638 = vadd.f32 %v2619, %v2637
    %2639 = vdwg.mxu0
    %2640 = vmatpush.bf16.msra.mxu0 %v2561
    %2641 = vmatpush.bf16.msra.mxu0 %v2560
    %2642 = vmatpush.bf16.msra.mxu0 %v2559
    %2643 = vmatpush.bf16.msra.mxu0 %v2558
    %2644 = vmatpush.bf16.msra.mxu0 %v2557
    %2645 = vmatpush.bf16.msra.mxu0 %v2556
    %2646 = vmatpush.bf16.msra.mxu0 %v2555
    %2647 = vmatpush.bf16.msra.mxu0 %v2554
    %2648 = vmatmul.bf16.gmra.mxu0 %v2336
    %v2649 = vpop.f32.mrf.mxu0
    %v2650 = vadd.f32 %v2631, %v2649
    %v2651 = vpop.f32.mrf.mxu0
    %v2652 = vadd.f32 %v2633, %v2651
    %2653 = vmatmul.bf16.gmra.mxu0 %v2340
    %v2654 = vpop.f32.mrf.mxu0
    %v2655 = vadd.f32 %v2636, %v2654
    %v2656 = vpop.f32.mrf.mxu0
    %v2657 = vadd.f32 %v2638, %v2656
    %2658 = vdwg.mxu0
    %2659 = vmatpush.bf16.msra.mxu0 %v2569
    %2660 = vmatpush.bf16.msra.mxu0 %v2568
    %2661 = vmatpush.bf16.msra.mxu0 %v2567
    %2662 = vmatpush.bf16.msra.mxu0 %v2566
    %2663 = vmatpush.bf16.msra.mxu0 %v2565
    %2664 = vmatpush.bf16.msra.mxu0 %v2564
    %2665 = vmatpush.bf16.msra.mxu0 %v2563
    %2666 = vmatpush.bf16.msra.mxu0 %v2562
    %2667 = vmatmul.bf16.gmra.mxu0 %v2337
    %v2668 = vpop.f32.mrf.mxu0
    %v2669 = vadd.f32 %v2650, %v2668
    %v2670 = vpop.f32.mrf.mxu0
    %v2671 = vadd.f32 %v2652, %v2670
    %2672 = vmatmul.bf16.gmra.mxu0 %v2341
    %v2673 = vpop.f32.mrf.mxu0
    %v2674 = vadd.f32 %v2655, %v2673
    %v2675 = vpop.f32.mrf.mxu0
    %v2676 = vadd.f32 %v2657, %v2675
    %2677 = vdwg.mxu0
    %v2678 = vadd.f32 %v1250, %v2669
    %v2679 = vadd.f32 %v1251, %v2671
    %v2680 = vadd.f32 %v1252, %v2674
    %v2681 = vadd.f32 %v1253, %v2676
    %2682 = vst [vmem:[#allocation15] sm:$0xff] %v2678
    %2683 = vst [vmem:[#allocation15 + $0x8] sm:$0xff] %v2679
    %2684 = vst [vmem:[#allocation15 + $0x10] sm:$0xff] %v2680
    %2685 = vst [vmem:[#allocation15 + $0x18] sm:$0xff] %v2681
    // Predicated region
    $region78: #{tpu_custom_call.1} parent=1 // pred_check
      _
    $region79: #{tpu_custom_call.1} parent=1 // pred_check_branch
      %2687 = sbr.rel (0) target = $region81
    $region80: #{tpu_custom_call.1} parent=1 // pred_region
      %2689 = vsyncadd [#allocation5], 0
      %s2690 = sshll.u32 [#allocation15], 4
      %s2691 = int_to_ptr.vmem [resolvable:$true] %s2690
      %s2692 = sshll.u32 %s12, 4
      %s2693 = int_to_ptr.hbm [resolvable:$true] %s2692
      %2698 = dma.vmem_to_hbm [thread:$0]  %s2691, 512, %s2693, [#allocation5], 128, 128, 8
    $region81: #{tpu_custom_call.1} parent=1 // pred_fallthru
      _
    // Predicated region
    $region82: #{tpu_custom_call.1} parent=1 // pred_check
      _
    $region83: #{tpu_custom_call.1} parent=1 // pred_check_branch
      %2700 = sbr.rel (0) target = $region85
    $region84: #{tpu_custom_call.1} parent=1 // pred_region
      %2702 = dma.done [#allocation5], 512
    $region85: #{tpu_custom_call.1} parent=1 // pred_fallthru
      _
    %2703 = vsyncpa [#allocation4], 1
    %2704 = vsyncpa [#allocation7], 1
    %2705 = vsyncpa [#allocation10], 1
    %2706 = vsyncpa [#allocation13], 1
    %2707 = vsyncpa [#allocation5], 1

</llo_original>
